<compile_context>
chip_gen: v5e
topology: v5e:2x2
jax: 0.10.0
libtpu: 0.0.40
codegen_flags: <defaults>
</compile_context>

<pallas_src>
import math
from functools import partial

import jax
import jax.numpy as jnp
from jax.experimental import pallas as pl
from jax.experimental.pallas import tpu as pltpu


# ---------------- synthetic "args" ----------------
class Args:
    n_agents = 3
    n_actions = 6
    attn_embed_dim = 64
    attn_n_heads = 2
    rnn_hidden_dim = 64
    pooling_type = None
    double_attn = False


ARGS = Args()

BS, TS, NE = 2, 3, 6      # batch, timesteps, entities
ED = 11                   # per-entity feature dim (input_shape)

LANE = 128                # padded lane width for gate-logit / Q outputs
MXU_DTYPE = jnp.float32   # set to jnp.bfloat16 on v6e/v7x (matmul operands only)


def _mm(a, b):
    """Matmul on the MXU; operands cast to MXU_DTYPE, accumulate in f32."""
    return jnp.dot(a.astype(MXU_DTYPE), b.astype(MXU_DTYPE),
                   preferred_element_type=jnp.float32)


def _mm_nt(a, b):
    """a @ b.T on the MXU (contract last dims), f32 accumulation."""
    return jax.lax.dot_general(a.astype(MXU_DTYPE), b.astype(MXU_DTYPE),
                               (((1,), (1,)), ((), ())),
                               preferred_element_type=jnp.float32)


# ---------------- fused kernel: entity/attn/gate/fc2 + GRU step + fc3 ----------------
def fused_kernel(nab, nh, hd,
                 ents_ref, pre_ref, full_ref, amask_ref, h0_ref,
                 fc1_w, fc1_b, msg1_w, msg1_b, gate1_w, gate1_b,
                 a_wq, a_wk, a_wv, a_wo, a_bo,
                 m_wq, m_wk, m_wv, m_wo, m_bo,
                 g_wq, g_wk, g_wv, g_wo, g_bo,
                 gm_wq, gm_wk, gm_wv, gm_wo, gm_bo,
                 gate2_w, gate2_b, fc2_wa, fc2_wb, fc2_b,
                 gru_wih, gru_bih, gru_whh, gru_bhh,
                 fc3_w, fc3_b,
                 hs_ref, q_ref, gl_ref,
                 h_scr):
    t = pl.program_id(1)
    scale = 1.0 / math.sqrt(hd)

    ents = ents_ref[...]              # (BB*NE, ED)   interleaved rows: j*BB + b
    pre_masked = pre_ref[...] > 0.0   # (BB*NA, BB*NE) block-diagonal obs mask
    full_masked = full_ref[...] > 0.0 # (BB*NA, BB*NA) block-diagonal agent mask
    amask = amask_ref[...]            # (BB*NA, 1)     post mask (1 = dead agent)

    def attn(x, wq, wk, wv, wo, bo, masked):
        # x: (rows, D); queries = first `nab` rows, keys/values = all rows.
        xq = x[:nab]
        out = None
        for h in range(nh):            # nh is tiny & static -> unrolled
            q = _mm(xq, wq[h])                           # (nab, hd)
            k = _mm(x, wk[h])                            # (rows, hd)
            v = _mm(x, wv[h])                            # (rows, hd)
            logits = _mm_nt(q, k) * scale                # (nab, rows)
            logits = jnp.where(masked, -1e30, logits)
            rowmax = jnp.max(logits, axis=-1, keepdims=True)
            e = jnp.where(masked, 0.0, jnp.exp(logits - rowmax))
            denom = jnp.sum(e, axis=-1, keepdims=True)
            p = e / jnp.where(denom > 0.0, denom, 1.0)   # fully-masked row -> 0
            term = _mm(_mm(p, v), wo[h])                 # (nab, D), heads accumulate
            out = term if out is None else out + term
        out = out + bo[...]
        return jnp.where(amask > 0.0, 0.0, out)          # post-mask dead agents

    # entity encoders (batched rows -> decent MXU M dimension)
    x1 = jax.nn.relu(_mm(ents, fc1_w[...]) + fc1_b[...])
    x1m = jax.nn.relu(_mm(ents, msg1_w[...]) + msg1_b[...])
    x1g = jax.nn.relu(_mm(ents, gate1_w[...]) + gate1_b[...])

    x2 = attn(x1, a_wq, a_wk, a_wv, a_wo, a_bo, pre_masked)
    x2m = attn(x1m, m_wq, m_wk, m_wv, m_wo, m_bo, pre_masked)
    x2g = attn(x1g, g_wq, g_wk, g_wv, g_wo, g_bo, pre_masked)

    # gate logits through zero-padded weights -> lane-dense (nab, 128) store
    gl = _mm(x2g, gate2_w[...]) + gate2_b[...]
    # argmax(softmax(logits)) over 2 classes == (logit1 > logit0); ties -> 0 (torch argmax-first)
    gate = (gl[:, 1:2] > gl[:, 0:1]).astype(jnp.float32)
    # TODO(synk): train_id / force_msg gate override is a host-side conditional; train_id=None path only.
    gated = x2m * gate

    gmsg = attn(gated, gm_wq, gm_wk, gm_wv, gm_wo, gm_bo, full_masked)

    # fc2 split into two halves: concat([x2, gmsg]) @ W == x2 @ Wa + gmsg @ Wb
    x3 = jax.nn.relu(_mm(x2, fc2_wa[...]) + _mm(gmsg, fc2_wb[...]) + fc2_b[...])

    # ---- GRUCell step: hidden state lives in VMEM scratch across the t axis ----
    @pl.when(t == 0)
    def _():
        h_scr[...] = h0_ref[...]

    h = h_scr[...]
    r = jax.nn.sigmoid(_mm(x3, gru_wih[0]) + gru_bih[0] +
                       _mm(h, gru_whh[0]) + gru_bhh[0])
    z = jax.nn.sigmoid(_mm(x3, gru_wih[1]) + gru_bih[1] +
                       _mm(h, gru_whh[1]) + gru_bhh[1])
    n = jnp.tanh(_mm(x3, gru_wih[2]) + gru_bih[2] +
                 r * (_mm(h, gru_whh[2]) + gru_bhh[2]))
    h_new = (1.0 - z) * n + z * h
    h_scr[...] = h_new

    # Q head through zero-padded fc3 -> lane-dense (nab, 128) store
    q = _mm(h_new, fc3_w[...]) + fc3_b[...]
    q = jnp.where(amask > 0.0, 0.0, q)

    hs_ref[...] = h_new
    q_ref[...] = q
    gl_ref[...] = gl


# ---------------- host-side weight re-packing for the kernel ----------------
def _kernel_weights(p, args, gp, qp):
    D = args.attn_embed_dim
    nh = args.attn_n_heads
    hd = D // nh
    H = args.rnn_hidden_dim
    f32 = jnp.float32
    wm = lambda x: x.astype(MXU_DTYPE)   # matmul operands
    bf = lambda x: x.astype(f32)         # post-matmul adds stay f32

    def split_attn(in_name, out_name, ob_name):
        w_in = p[in_name]                                      # (D, 3D), cols [q|k|v]
        wq, wk, wv = w_in[:, :D], w_in[:, D:2 * D], w_in[:, 2 * D:]
        cols = lambda m: jnp.stack([m[:, h * hd:(h + 1) * hd] for h in range(nh)], 0)
        wo = jnp.stack([p[out_name][h * hd:(h + 1) * hd, :] for h in range(nh)], 0)
        return [wm(cols(wq)), wm(cols(wk)), wm(cols(wv)), wm(wo), bf(p[ob_name])]

    def pad_cols(m, width):
        out = jnp.zeros((m.shape[0], width), m.dtype)
        return out.at[:, :m.shape[1]].set(m)

    gates = lambda m: jnp.stack([m[:, g * H:(g + 1) * H] for g in range(3)], 0)

    weights = [wm(p['fc1_w']), bf(p['fc1_b']),
               wm(p['msg1_w']), bf(p['msg1_b']),
               wm(p['gate1_w']), bf(p['gate1_b'])]
    weights += split_attn('attn_in_w', 'attn_out_w', 'attn_out_b')
    weights += split_attn('lmsg_in_w', 'lmsg_out_w', 'lmsg_out_b')
    weights += split_attn('gattn_in_w', 'gattn_out_w', 'gattn_out_b')
    weights += split_attn('gmsg_in_w', 'gmsg_out_w', 'gmsg_out_b')
    weights += [wm(pad_cols(p['gate2_w'], gp)), bf(pad_cols(p['gate2_b'], gp)),
                wm(p['fc2_w'][:D]), wm(p['fc2_w'][D:]), bf(p['fc2_b']),
                wm(gates(p['gru_wih'])), bf(gates(p['gru_bih'])),
                wm(gates(p['gru_whh'])), bf(gates(p['gru_bhh'])),
                wm(pad_cols(p['fc3_w'], qp)), bf(pad_cols(p['fc3_b'], qp))]
    return weights


# ---------------- full forward (single pallas_call + cheap XLA re-layouts) ----------------
def forward(params, entities, obs_mask, entity_mask, hidden_state, args,
            batch_block=None):
    bs, ts, ne, ed = entities.shape
    na = args.n_agents
    D = args.attn_embed_dim
    nh = args.attn_n_heads
    hd = D // nh
    H = args.rnn_hidden_dim
    A = args.n_actions

    BB = bs if batch_block is None else batch_block
    assert bs % BB == 0
    NB = bs // BB                      # "parallel" grid axis (use BB = bs//2 on v7x)
    NEB, NAB = BB * ne, BB * na
    GP = QP = LANE

    f32 = jnp.float32
    ents = entities.astype(f32)
    obs_m = obs_mask.astype(f32)
    ent_m = entity_mask.astype(f32)

    agent_mask = ent_m[..., :na]                               # (bs, ts, na)
    pre_mask = obs_m[:, :, :na, :]                             # (bs, ts, na, ne)
    full_mask = 1.0 - (1.0 - agent_mask[..., None, :]) * (1.0 - agent_mask[..., :, None])

    # ---- host-side (XLA) re-layout into interleaved per-block slabs ----
    def to_rows(x):
        # (bs, ts, R, C) -> (NB, ts, R*BB, C), row index = r*BB + b
        _, _, R, C = x.shape
        x = x.reshape(NB, BB, ts, R, C).transpose(0, 2, 3, 1, 4)
        return x.reshape(NB, ts, R * BB, C)

    def blockdiag(m):
        # (bs, ts, NQ, NK) -> (NB, ts, NQ*BB, NK*BB); cross-element entries = 1 (masked)
        _, _, NQ, NK = m.shape
        m = m.reshape(NB, BB, ts, NQ, NK).transpose(0, 2, 3, 1, 4)   # (NB, ts, NQ, BB, NK)
        eye = jnp.eye(BB, dtype=f32)
        big = 1.0 - eye[None, None, None, :, None, :] * (1.0 - m[..., None])
        return big.reshape(NB, ts, NQ * BB, NK * BB)

    ents_blk = to_rows(ents)                                    # (NB, ts, NEB, ED)
    pre_big = blockdiag(pre_mask)                               # (NB, ts, NAB, NEB)
    full_big = blockdiag(full_mask)                             # (NB, ts, NAB, NAB)
    am_blk = (agent_mask.reshape(NB, BB, ts, na)
              .transpose(0, 2, 3, 1).reshape(NB, ts, NAB, 1))   # (NB, ts, NAB, 1)
    h0_blk = (hidden_state.astype(f32).reshape(NB, BB, na, H)
              .transpose(0, 2, 1, 3).reshape(NB, NAB, H))       # (NB, NAB, H)

    weights = _kernel_weights(params, args, GP, QP)

    dmap = lambda ib, t: (ib, t, 0, 0)

    def rep(shape):
        # constant block index -> Pallas fetches once and keeps VMEM-resident
        nd = len(shape)
        return pl.BlockSpec(shape, lambda ib, t, _nd=nd: (0,) * _nd)

    in_specs = [
        pl.BlockSpec((None, None, NEB, ed), dmap),
        pl.BlockSpec((None, None, NAB, NEB), dmap),
        pl.BlockSpec((None, None, NAB, NAB), dmap),
        pl.BlockSpec((None, None, NAB, 1), dmap),
        pl.BlockSpec((None, NAB, H), lambda ib, t: (ib, 0, 0)),
    ] + [rep(w.shape) for w in weights]

    out_specs = [
        pl.BlockSpec((None, None, NAB, H), dmap),
        pl.BlockSpec((None, None, NAB, QP), dmap),
        pl.BlockSpec((None, None, NAB, GP), dmap),
    ]
    out_shape = [
        jax.ShapeDtypeStruct((NB, ts, NAB, H), f32),
        jax.ShapeDtypeStruct((NB, ts, NAB, QP), f32),
        jax.ShapeDtypeStruct((NB, ts, NAB, GP), f32),
    ]

    kern = partial(fused_kernel, NAB, nh, hd)
    hs_blk, q_blk, gl_blk = pl.pallas_call(
        kern,
        grid=(NB, ts),
        in_specs=in_specs,
        out_specs=out_specs,
        out_shape=out_shape,
        scratch_shapes=[pltpu.VMEM((NAB, H), f32)],
        compiler_params=pltpu.CompilerParams(
            dimension_semantics=("parallel", "arbitrary")),
    )(ents_blk, pre_big, full_big, am_blk, h0_blk, *weights)

    def from_rows(x):
        # (NB, ts, na*BB, C) with row = a*BB + b -> (bs, ts, na, C)
        C = x.shape[-1]
        x = x.reshape(NB, ts, na, BB, C).transpose(0, 3, 1, 2, 4)
        return x.reshape(bs, ts, na, C)

    hs = from_rows(hs_blk)                                      # (bs, ts, na, H)
    q = from_rows(q_blk)[..., :A]                               # (bs, ts, na, A)
    gl = from_rows(gl_blk)[..., :2].reshape(bs * ts, na, 2)     # (bs*ts, na, 2)
    return q, hs, gl


# ---------------- pure-JAX reference (same math, for a sanity check) ----------------
def _attention(x, w_in, w_out, b_out, pre_mask, post_mask_col, n_queries, n_heads):
    D = x.shape[-1]
    hd = D // n_heads
    scale = 1.0 / math.sqrt(hd)
    qkv = jnp.dot(x, w_in, preferred_element_type=jnp.float32)
    q = qkv[:n_queries, 0:D]
    k = qkv[:, D:2 * D]
    v = qkv[:, 2 * D:3 * D]
    masked = pre_mask > 0.0
    heads = []
    for h in range(n_heads):
        qh = q[:, h * hd:(h + 1) * hd]
        kh = k[:, h * hd:(h + 1) * hd]
        vh = v[:, h * hd:(h + 1) * hd]
        logits = jax.lax.dot_general(qh, kh, (((1,), (1,)), ((), ())),
                                     preferred_element_type=jnp.float32) * scale
        logits = jnp.where(masked, -1e30, logits)
        rowmax = jnp.max(logits, axis=-1, keepdims=True)
        e = jnp.where(masked, 0.0, jnp.exp(logits - rowmax))
        denom = jnp.sum(e, axis=-1, keepdims=True)
        attn_w = e / jnp.where(denom > 0.0, denom, 1.0)
        heads.append(jnp.dot(attn_w, vh, preferred_element_type=jnp.float32))
    out = heads[0] if n_heads == 1 else jnp.concatenate(heads, axis=-1)
    out = jnp.dot(out, w_out, preferred_element_type=jnp.float32) + b_out
    out = jnp.where(post_mask_col > 0.0, 0.0, out)
    return out


def ref_forward(params, entities, obs_mask, entity_mask, hidden_state, args):
    bs, ts, ne, ed = entities.shape
    na, H = args.n_agents, args.rnn_hidden_dim
    BT = bs * ts
    ents = entities.reshape(BT, ne, ed)
    obs_m = obs_mask.reshape(BT, ne, ne)
    ent_m = entity_mask.reshape(BT, ne)
    agent_mask = ent_m[:, :na]
    pre_mask = obs_m[:, :na, :]
    amask_col = agent_mask[:, :, None]
    full_mask = 1.0 - (1.0 - agent_mask[:, None, :]) * (1.0 - agent_mask[:, :, None])

    def per_elem(e, pm, ac, fm):
        x1 = jax.nn.relu(e @ params['fc1_w'] + params['fc1_b'])
        x2 = _attention(x1, params['attn_in_w'], params['attn_out_w'], params['attn_out_b'],
                        pm, ac, na, args.attn_n_heads)
        x1m = jax.nn.relu(e @ params['msg1_w'] + params['msg1_b'])
        x2m = _attention(x1m, params['lmsg_in_w'], params['lmsg_out_w'], params['lmsg_out_b'],
                         pm, ac, na, args.attn_n_heads)
        x1g = jax.nn.relu(e @ params['gate1_w'] + params['gate1_b'])
        x2g = _attention(x1g, params['gattn_in_w'], params['gattn_out_w'], params['gattn_out_b'],
                         pm, ac, na, args.attn_n_heads)
        gl = x2g @ params['gate2_w'] + params['gate2_b']
        gate = (gl[:, 1:2] > gl[:, 0:1]).astype(jnp.float32)
        gmsg = _attention(x2m * gate, params['gmsg_in_w'], params['gmsg_out_w'],
                          params['gmsg_out_b'], fm, ac, na, args.attn_n_heads)
        x3 = jax.nn.relu(jnp.concatenate([x2, gmsg], -1) @ params['fc2_w'] + params['fc2_b'])
        return x3, gl

    x3, gl = jax.vmap(per_elem)(ents, pre_mask, amask_col, full_mask)
    x3 = x3.reshape(bs, ts, na, H)
    h = hidden_state.reshape(bs * na, H)
    hs = []
    for t in range(ts):
        x = x3[:, t].reshape(bs * na, H)
        gi = x @ params['gru_wih'] + params['gru_bih']
        gh = h @ params['gru_whh'] + params['gru_bhh']
        r = jax.nn.sigmoid(gi[:, :H] + gh[:, :H])
        z = jax.nn.sigmoid(gi[:, H:2 * H] + gh[:, H:2 * H])
        n = jnp.tanh(gi[:, 2 * H:] + r * gh[:, 2 * H:])
        h = (1.0 - z) * n + z * h
        hs.append(h.reshape(bs, na, H))
    hs = jnp.stack(hs, axis=1)
    q = hs @ params['fc3_w'] + params['fc3_b']
    q = jnp.where(agent_mask.reshape(bs, ts, na, 1) > 0.0, 0.0, q)
    return q, hs, gl


# ---------------- deterministic parameter init ----------------
def init_params(key, ed, args):
    D, H, A = args.attn_embed_dim, args.rnn_hidden_dim, args.n_actions
    keys = iter(jax.random.split(key, 40))

    def lin(din, dout):
        return jax.random.normal(next(keys), (din, dout), jnp.float32) / jnp.sqrt(din)

    def bias(dout):
        return jax.random.normal(next(keys), (1, dout), jnp.float32) * 0.1

    p = {}
    p['fc1_w'] = lin(ed, D); p['fc1_b'] = bias(D)
    p['attn_in_w'] = lin(D, 3 * D)
    p['attn_out_w'] = lin(D, D); p['attn_out_b'] = bias(D)
    p['msg1_w'] = lin(ed, D); p['msg1_b'] = bias(D)
    p['lmsg_in_w'] = lin(D, 3 * D)
    p['lmsg_out_w'] = lin(D, D); p['lmsg_out_b'] = bias(D)
    p['gate1_w'] = lin(ed, D); p['gate1_b'] = bias(D)
    p['gattn_in_w'] = lin(D, 3 * D)
    p['gattn_out_w'] = lin(D, D); p['gattn_out_b'] = bias(D)
    p['gate2_w'] = lin(D, 2); p['gate2_b'] = bias(2)
    p['gmsg_in_w'] = lin(D, 3 * D)
    p['gmsg_out_w'] = lin(D, D); p['gmsg_out_b'] = bias(D)
    p['fc2_w'] = lin(2 * D, H); p['fc2_b'] = bias(H)
    p['gru_wih'] = lin(H, 3 * H); p['gru_bih'] = bias(3 * H)
    p['gru_whh'] = lin(H, 3 * H); p['gru_bhh'] = bias(3 * H)
    p['fc3_w'] = lin(H, A); p['fc3_b'] = bias(A)
    return p


if __name__ == "__main__":
    key = jax.random.PRNGKey(0)
    kp, ke, km1, km2 = jax.random.split(key, 4)
    params = init_params(kp, ED, ARGS)

    entities = jax.random.normal(ke, (BS, TS, NE, ED), jnp.float32)
    obs_mask = (jax.random.uniform(km1, (BS, TS, NE, NE)) > 0.7).astype(jnp.float32)
    entity_mask = (jax.random.uniform(km2, (BS, TS, NE)) > 0.8).astype(jnp.float32)
    hidden_state = jnp.zeros((BS, ARGS.n_agents, ARGS.rnn_hidden_dim), jnp.float32)

    fwd = jax.jit(lambda p, e, om, em, h: forward(p, e, om, em, h, ARGS))
    q, hs, x2_gate = fwd(params, entities, obs_mask, entity_mask, hidden_state)
    jax.block_until_ready((q, hs, x2_gate))

    assert q.shape == (BS, TS, ARGS.n_agents, ARGS.n_actions)
    assert hs.shape == (BS, TS, ARGS.n_agents, ARGS.rnn_hidden_dim)
    assert x2_gate.shape == (BS * TS, ARGS.n_agents, 2)
    assert bool(jnp.all(jnp.isfinite(q))) and bool(jnp.all(jnp.isfinite(hs)))

    # compare against a pure-JAX reference of the same math
    q_r, hs_r, gl_r = ref_forward(params, entities, obs_mask, entity_mask,
                                  hidden_state, ARGS)
    assert bool(jnp.allclose(x2_gate, gl_r, atol=5e-2, rtol=5e-2))
    gate_k = x2_gate[..., 1] > x2_gate[..., 0]
    gate_r = gl_r[..., 1] > gl_r[..., 0]
    if bool(jnp.all(gate_k == gate_r)):   # compare downstream only if discrete gates agree
        assert bool(jnp.allclose(hs, hs_r, atol=5e-2, rtol=5e-2))
        assert bool(jnp.allclose(q, q_r, atol=5e-2, rtol=5e-2))

    # also exercise the NB>1 (parallel batch-block, v7x megacore) path
    fwd2 = jax.jit(lambda p, e, om, em, h: forward(p, e, om, em, h, ARGS,
                                                   batch_block=1))
    q2, hs2, gl2 = fwd2(params, entities, obs_mask, entity_mask, hidden_state)
    jax.block_until_ready((q2, hs2, gl2))
    assert bool(jnp.allclose(gl2, x2_gate, atol=1e-3, rtol=1e-3))
    gate_k2 = gl2[..., 1] > gl2[..., 0]
    if bool(jnp.all(gate_k2 == gate_k)):
        assert bool(jnp.allclose(hs2, hs, atol=1e-3, rtol=1e-3))
        assert bool(jnp.allclose(q2, q, atol=1e-3, rtol=1e-3))

    print("KERNEL_OK")
</pallas_src>

<mosaic_0001>
module attributes {stable_mosaic.version = 11 : i64} {
  func.func @fused_kernel(%arg0: i32, %arg1: i32, %arg2: memref<1x1x12x11xf32, #tpu.memory_space<vmem>>, %arg3: memref<1x1x6x12xf32, #tpu.memory_space<vmem>>, %arg4: memref<1x1x6x6xf32, #tpu.memory_space<vmem>>, %arg5: memref<1x1x6x1xf32, #tpu.memory_space<vmem>>, %arg6: memref<1x6x64xf32, #tpu.memory_space<vmem>>, %arg7: memref<11x64xf32, #tpu.memory_space<vmem>>, %arg8: memref<1x64xf32, #tpu.memory_space<vmem>>, %arg9: memref<11x64xf32, #tpu.memory_space<vmem>>, %arg10: memref<1x64xf32, #tpu.memory_space<vmem>>, %arg11: memref<11x64xf32, #tpu.memory_space<vmem>>, %arg12: memref<1x64xf32, #tpu.memory_space<vmem>>, %arg13: memref<2x64x32xf32, #tpu.memory_space<vmem>>, %arg14: memref<2x64x32xf32, #tpu.memory_space<vmem>>, %arg15: memref<2x64x32xf32, #tpu.memory_space<vmem>>, %arg16: memref<2x32x64xf32, #tpu.memory_space<vmem>>, %arg17: memref<1x64xf32, #tpu.memory_space<vmem>>, %arg18: memref<2x64x32xf32, #tpu.memory_space<vmem>>, %arg19: memref<2x64x32xf32, #tpu.memory_space<vmem>>, %arg20: memref<2x64x32xf32, #tpu.memory_space<vmem>>, %arg21: memref<2x32x64xf32, #tpu.memory_space<vmem>>, %arg22: memref<1x64xf32, #tpu.memory_space<vmem>>, %arg23: memref<2x64x32xf32, #tpu.memory_space<vmem>>, %arg24: memref<2x64x32xf32, #tpu.memory_space<vmem>>, %arg25: memref<2x64x32xf32, #tpu.memory_space<vmem>>, %arg26: memref<2x32x64xf32, #tpu.memory_space<vmem>>, %arg27: memref<1x64xf32, #tpu.memory_space<vmem>>, %arg28: memref<2x64x32xf32, #tpu.memory_space<vmem>>, %arg29: memref<2x64x32xf32, #tpu.memory_space<vmem>>, %arg30: memref<2x64x32xf32, #tpu.memory_space<vmem>>, %arg31: memref<2x32x64xf32, #tpu.memory_space<vmem>>, %arg32: memref<1x64xf32, #tpu.memory_space<vmem>>, %arg33: memref<64x128xf32, #tpu.memory_space<vmem>>, %arg34: memref<1x128xf32, #tpu.memory_space<vmem>>, %arg35: memref<64x64xf32, #tpu.memory_space<vmem>>, %arg36: memref<64x64xf32, #tpu.memory_space<vmem>>, %arg37: memref<1x64xf32, #tpu.memory_space<vmem>>, %arg38: memref<3x64x64xf32, #tpu.memory_space<vmem>>, %arg39: memref<3x1x64xf32, #tpu.memory_space<vmem>>, %arg40: memref<3x64x64xf32, #tpu.memory_space<vmem>>, %arg41: memref<3x1x64xf32, #tpu.memory_space<vmem>>, %arg42: memref<64x128xf32, #tpu.memory_space<vmem>>, %arg43: memref<1x128xf32, #tpu.memory_space<vmem>>, %arg44: memref<1x1x6x64xf32, #tpu.memory_space<vmem>>, %arg45: memref<1x1x6x128xf32, #tpu.memory_space<vmem>>, %arg46: memref<1x1x6x128xf32, #tpu.memory_space<vmem>>, %arg47: memref<6x64xf32, #tpu.memory_space<vmem>>) attributes {dimension_semantics = [#tpu.dimension_semantics<parallel>, #tpu.dimension_semantics<arbitrary>], iteration_bounds = array<i64: 1, 3>, scalar_prefetch = 0 : i64, scratch_operands = 1 : i64, tpu.core_type = #tpu.core_type<tc>, window_params = [{transform_indices = @transform_0, window_bounds = array<i64: 1, 1, 12, 11>}, {transform_indices = @transform_1, window_bounds = array<i64: 1, 1, 6, 12>}, {transform_indices = @transform_2, window_bounds = array<i64: 1, 1, 6, 6>}, {transform_indices = @transform_3, window_bounds = array<i64: 1, 1, 6, 1>}, {transform_indices = @transform_4, window_bounds = array<i64: 1, 6, 64>}, {pipeline_mode = #tpu.pipeline_mode<synchronous>, transform_indices = @transform_5, window_bounds = array<i64: 11, 64>}, {pipeline_mode = #tpu.pipeline_mode<synchronous>, transform_indices = @transform_6, window_bounds = array<i64: 1, 64>}, {pipeline_mode = #tpu.pipeline_mode<synchronous>, transform_indices = @transform_7, window_bounds = array<i64: 11, 64>}, {pipeline_mode = #tpu.pipeline_mode<synchronous>, transform_indices = @transform_8, window_bounds = array<i64: 1, 64>}, {pipeline_mode = #tpu.pipeline_mode<synchronous>, transform_indices = @transform_9, window_bounds = array<i64: 11, 64>}, {pipeline_mode = #tpu.pipeline_mode<synchronous>, transform_indices = @transform_10, window_bounds = array<i64: 1, 64>}, {pipeline_mode = #tpu.pipeline_mode<synchronous>, transform_indices = @transform_11, window_bounds = array<i64: 2, 64, 32>}, {pipeline_mode = #tpu.pipeline_mode<synchronous>, transform_indices = @transform_12, window_bounds = array<i64: 2, 64, 32>}, {pipeline_mode = #tpu.pipeline_mode<synchronous>, transform_indices = @transform_13, window_bounds = array<i64: 2, 64, 32>}, {pipeline_mode = #tpu.pipeline_mode<synchronous>, transform_indices = @transform_14, window_bounds = array<i64: 2, 32, 64>}, {pipeline_mode = #tpu.pipeline_mode<synchronous>, transform_indices = @transform_15, window_bounds = array<i64: 1, 64>}, {pipeline_mode = #tpu.pipeline_mode<synchronous>, transform_indices = @transform_16, window_bounds = array<i64: 2, 64, 32>}, {pipeline_mode = #tpu.pipeline_mode<synchronous>, transform_indices = @transform_17, window_bounds = array<i64: 2, 64, 32>}, {pipeline_mode = #tpu.pipeline_mode<synchronous>, transform_indices = @transform_18, window_bounds = array<i64: 2, 64, 32>}, {pipeline_mode = #tpu.pipeline_mode<synchronous>, transform_indices = @transform_19, window_bounds = array<i64: 2, 32, 64>}, {pipeline_mode = #tpu.pipeline_mode<synchronous>, transform_indices = @transform_20, window_bounds = array<i64: 1, 64>}, {pipeline_mode = #tpu.pipeline_mode<synchronous>, transform_indices = @transform_21, window_bounds = array<i64: 2, 64, 32>}, {pipeline_mode = #tpu.pipeline_mode<synchronous>, transform_indices = @transform_22, window_bounds = array<i64: 2, 64, 32>}, {pipeline_mode = #tpu.pipeline_mode<synchronous>, transform_indices = @transform_23, window_bounds = array<i64: 2, 64, 32>}, {pipeline_mode = #tpu.pipeline_mode<synchronous>, transform_indices = @transform_24, window_bounds = array<i64: 2, 32, 64>}, {pipeline_mode = #tpu.pipeline_mode<synchronous>, transform_indices = @transform_25, window_bounds = array<i64: 1, 64>}, {pipeline_mode = #tpu.pipeline_mode<synchronous>, transform_indices = @transform_26, window_bounds = array<i64: 2, 64, 32>}, {pipeline_mode = #tpu.pipeline_mode<synchronous>, transform_indices = @transform_27, window_bounds = array<i64: 2, 64, 32>}, {pipeline_mode = #tpu.pipeline_mode<synchronous>, transform_indices = @transform_28, window_bounds = array<i64: 2, 64, 32>}, {pipeline_mode = #tpu.pipeline_mode<synchronous>, transform_indices = @transform_29, window_bounds = array<i64: 2, 32, 64>}, {pipeline_mode = #tpu.pipeline_mode<synchronous>, transform_indices = @transform_30, window_bounds = array<i64: 1, 64>}, {pipeline_mode = #tpu.pipeline_mode<synchronous>, transform_indices = @transform_31, window_bounds = array<i64: 64, 128>}, {pipeline_mode = #tpu.pipeline_mode<synchronous>, transform_indices = @transform_32, window_bounds = array<i64: 1, 128>}, {pipeline_mode = #tpu.pipeline_mode<synchronous>, transform_indices = @transform_33, window_bounds = array<i64: 64, 64>}, {pipeline_mode = #tpu.pipeline_mode<synchronous>, transform_indices = @transform_34, window_bounds = array<i64: 64, 64>}, {pipeline_mode = #tpu.pipeline_mode<synchronous>, transform_indices = @transform_35, window_bounds = array<i64: 1, 64>}, {pipeline_mode = #tpu.pipeline_mode<synchronous>, transform_indices = @transform_36, window_bounds = array<i64: 3, 64, 64>}, {pipeline_mode = #tpu.pipeline_mode<synchronous>, transform_indices = @transform_37, window_bounds = array<i64: 3, 1, 64>}, {pipeline_mode = #tpu.pipeline_mode<synchronous>, transform_indices = @transform_38, window_bounds = array<i64: 3, 64, 64>}, {pipeline_mode = #tpu.pipeline_mode<synchronous>, transform_indices = @transform_39, window_bounds = array<i64: 3, 1, 64>}, {pipeline_mode = #tpu.pipeline_mode<synchronous>, transform_indices = @transform_40, window_bounds = array<i64: 64, 128>}, {pipeline_mode = #tpu.pipeline_mode<synchronous>, transform_indices = @transform_41, window_bounds = array<i64: 1, 128>}, {transform_indices = @transform_42, window_bounds = array<i64: 1, 1, 6, 64>}, {transform_indices = @transform_43, window_bounds = array<i64: 1, 1, 6, 128>}, {transform_indices = @transform_44, window_bounds = array<i64: 1, 1, 6, 128>}]} {
    %c0 = arith.constant 0 : index
    %c0_0 = arith.constant 0 : index
    %c0_1 = arith.constant 0 : index
    %c0_2 = arith.constant 0 : index
    %0 = vector.load %arg2[%c0, %c0_0, %c0_1, %c0_2] : memref<1x1x12x11xf32, #tpu.memory_space<vmem>>, vector<1x1x12x11xf32>
    %1 = vector.shape_cast %0 : vector<1x1x12x11xf32> to vector<12x11xf32>
    %c0_3 = arith.constant 0 : index
    %c0_4 = arith.constant 0 : index
    %c0_5 = arith.constant 0 : index
    %c0_6 = arith.constant 0 : index
    %2 = vector.load %arg3[%c0_3, %c0_4, %c0_5, %c0_6] : memref<1x1x6x12xf32, #tpu.memory_space<vmem>>, vector<1x1x6x12xf32>
    %3 = vector.shape_cast %2 : vector<1x1x6x12xf32> to vector<6x12xf32>
    %cst = arith.constant 0.000000e+00 : f32
    %4 = vector.broadcast %cst : f32 to vector<6x12xf32>
    %5 = arith.cmpf ogt, %3, %4 : vector<6x12xf32>
    %c0_7 = arith.constant 0 : index
    %c0_8 = arith.constant 0 : index
    %c0_9 = arith.constant 0 : index
    %c0_10 = arith.constant 0 : index
    %6 = vector.load %arg4[%c0_7, %c0_8, %c0_9, %c0_10] : memref<1x1x6x6xf32, #tpu.memory_space<vmem>>, vector<1x1x6x6xf32>
    %7 = vector.shape_cast %6 : vector<1x1x6x6xf32> to vector<6x6xf32>
    %cst_11 = arith.constant 0.000000e+00 : f32
    %8 = vector.broadcast %cst_11 : f32 to vector<6x6xf32>
    %9 = arith.cmpf ogt, %7, %8 : vector<6x6xf32>
    %c0_12 = arith.constant 0 : index
    %c0_13 = arith.constant 0 : index
    %c0_14 = arith.constant 0 : index
    %c0_15 = arith.constant 0 : index
    %10 = vector.load %arg5[%c0_12, %c0_13, %c0_14, %c0_15] : memref<1x1x6x1xf32, #tpu.memory_space<vmem>>, vector<1x1x6x1xf32>
    %11 = vector.shape_cast %10 : vector<1x1x6x1xf32> to vector<6x1xf32>
    %c0_16 = arith.constant 0 : index
    %c0_17 = arith.constant 0 : index
    %12 = vector.load %arg7[%c0_16, %c0_17] : memref<11x64xf32, #tpu.memory_space<vmem>>, vector<11x64xf32>
    %cst_18 = arith.constant dense<0.000000e+00> : vector<12x64xf32>
    %13 = tpu.matmul %1, %12, %cst_18 {dimension_numbers = #tpu.dot_dimension_numbers<[1], [0], [0], [1], [0, 0, 1, 1], [], []>} : vector<12x11xf32>, vector<11x64xf32>, vector<12x64xf32> -> vector<12x64xf32>
    %c0_19 = arith.constant 0 : index
    %c0_20 = arith.constant 0 : index
    %14 = vector.load %arg8[%c0_19, %c0_20] : memref<1x64xf32, #tpu.memory_space<vmem>>, vector<1x64xf32>
    %15 = vector.broadcast %14 : vector<1x64xf32> to vector<12x64xf32>
    %16 = arith.addf %13, %15 : vector<12x64xf32>
    %cst_21 = arith.constant 0.000000e+00 : f32
    %17 = vector.broadcast %cst_21 : f32 to vector<12x64xf32>
    %18 = arith.maximumf %16, %17 : vector<12x64xf32>
    %c0_22 = arith.constant 0 : index
    %c0_23 = arith.constant 0 : index
    %19 = vector.load %arg9[%c0_22, %c0_23] : memref<11x64xf32, #tpu.memory_space<vmem>>, vector<11x64xf32>
    %cst_24 = arith.constant dense<0.000000e+00> : vector<12x64xf32>
    %20 = tpu.matmul %1, %19, %cst_24 {dimension_numbers = #tpu.dot_dimension_numbers<[1], [0], [0], [1], [0, 0, 1, 1], [], []>} : vector<12x11xf32>, vector<11x64xf32>, vector<12x64xf32> -> vector<12x64xf32>
    %c0_25 = arith.constant 0 : index
    %c0_26 = arith.constant 0 : index
    %21 = vector.load %arg10[%c0_25, %c0_26] : memref<1x64xf32, #tpu.memory_space<vmem>>, vector<1x64xf32>
    %22 = vector.broadcast %21 : vector<1x64xf32> to vector<12x64xf32>
    %23 = arith.addf %20, %22 : vector<12x64xf32>
    %cst_27 = arith.constant 0.000000e+00 : f32
    %24 = vector.broadcast %cst_27 : f32 to vector<12x64xf32>
    %25 = arith.maximumf %23, %24 : vector<12x64xf32>
    %c0_28 = arith.constant 0 : index
    %c0_29 = arith.constant 0 : index
    %26 = vector.load %arg11[%c0_28, %c0_29] : memref<11x64xf32, #tpu.memory_space<vmem>>, vector<11x64xf32>
    %cst_30 = arith.constant dense<0.000000e+00> : vector<12x64xf32>
    %27 = tpu.matmul %1, %26, %cst_30 {dimension_numbers = #tpu.dot_dimension_numbers<[1], [0], [0], [1], [0, 0, 1, 1], [], []>} : vector<12x11xf32>, vector<11x64xf32>, vector<12x64xf32> -> vector<12x64xf32>
    %c0_31 = arith.constant 0 : index
    %c0_32 = arith.constant 0 : index
    %28 = vector.load %arg12[%c0_31, %c0_32] : memref<1x64xf32, #tpu.memory_space<vmem>>, vector<1x64xf32>
    %29 = vector.broadcast %28 : vector<1x64xf32> to vector<12x64xf32>
    %30 = arith.addf %27, %29 : vector<12x64xf32>
    %cst_33 = arith.constant 0.000000e+00 : f32
    %31 = vector.broadcast %cst_33 : f32 to vector<12x64xf32>
    %32 = arith.maximumf %30, %31 : vector<12x64xf32>
    %33 = vector.extract_strided_slice %18 {offsets = [0, 0], sizes = [6, 64], strides = [1, 1]} : vector<12x64xf32> to vector<6x64xf32>
    %c0_34 = arith.constant 0 : index
    %c0_35 = arith.constant 0 : index
    %c0_36 = arith.constant 0 : index
    %34 = vector.load %arg13[%c0_34, %c0_35, %c0_36] : memref<2x64x32xf32, #tpu.memory_space<vmem>>, vector<1x64x32xf32>
    %35 = vector.shape_cast %34 : vector<1x64x32xf32> to vector<64x32xf32>
    %cst_37 = arith.constant dense<0.000000e+00> : vector<6x32xf32>
    %36 = tpu.matmul %33, %35, %cst_37 {dimension_numbers = #tpu.dot_dimension_numbers<[1], [0], [0], [1], [0, 0, 1, 1], [], []>} : vector<6x64xf32>, vector<64x32xf32>, vector<6x32xf32> -> vector<6x32xf32>
    %c0_38 = arith.constant 0 : index
    %c0_39 = arith.constant 0 : index
    %c0_40 = arith.constant 0 : index
    %37 = vector.load %arg14[%c0_38, %c0_39, %c0_40] : memref<2x64x32xf32, #tpu.memory_space<vmem>>, vector<1x64x32xf32>
    %38 = vector.shape_cast %37 : vector<1x64x32xf32> to vector<64x32xf32>
    %cst_41 = arith.constant dense<0.000000e+00> : vector<12x32xf32>
    %39 = tpu.matmul %18, %38, %cst_41 {dimension_numbers = #tpu.dot_dimension_numbers<[1], [0], [0], [1], [0, 0, 1, 1], [], []>} : vector<12x64xf32>, vector<64x32xf32>, vector<12x32xf32> -> vector<12x32xf32>
    %c0_42 = arith.constant 0 : index
    %c0_43 = arith.constant 0 : index
    %c0_44 = arith.constant 0 : index
    %40 = vector.load %arg15[%c0_42, %c0_43, %c0_44] : memref<2x64x32xf32, #tpu.memory_space<vmem>>, vector<1x64x32xf32>
    %41 = vector.shape_cast %40 : vector<1x64x32xf32> to vector<64x32xf32>
    %cst_45 = arith.constant dense<0.000000e+00> : vector<12x32xf32>
    %42 = tpu.matmul %18, %41, %cst_45 {dimension_numbers = #tpu.dot_dimension_numbers<[1], [0], [0], [1], [0, 0, 1, 1], [], []>} : vector<12x64xf32>, vector<64x32xf32>, vector<12x32xf32> -> vector<12x32xf32>
    %cst_46 = arith.constant dense<0.000000e+00> : vector<6x12xf32>
    %43 = tpu.matmul %36, %39, %cst_46 {dimension_numbers = #tpu.dot_dimension_numbers<[1], [1], [0], [0], [0, 0, 1, 0], [], []>} : vector<6x32xf32>, vector<12x32xf32>, vector<6x12xf32> -> vector<6x12xf32>
    %cst_47 = arith.constant 0.176776692 : f32
    %44 = vector.broadcast %cst_47 : f32 to vector<6x12xf32>
    %45 = arith.mulf %43, %44 : vector<6x12xf32>
    %cst_48 = arith.constant -1.000000e+30 : f32
    %46 = vector.broadcast %cst_48 : f32 to vector<6x12xf32>
    %47 = arith.select %5, %46, %45 : vector<6x12xi1>, vector<6x12xf32>
    %cst_49 = arith.constant dense<0xFF800000> : vector<6xf32>
    %48 = vector.multi_reduction <maximumf>, %47, %cst_49 [1] : vector<6x12xf32> to vector<6xf32>
    %49 = vector.shape_cast %48 : vector<6xf32> to vector<6x1xf32>
    %50 = vector.broadcast %49 : vector<6x1xf32> to vector<6x12xf32>
    %51 = arith.subf %47, %50 : vector<6x12xf32>
    %52 = math.exp %51 : vector<6x12xf32>
    %cst_50 = arith.constant 0.000000e+00 : f32
    %53 = vector.broadcast %cst_50 : f32 to vector<6x12xf32>
    %54 = arith.select %5, %53, %52 : vector<6x12xi1>, vector<6x12xf32>
    %cst_51 = arith.constant dense<0.000000e+00> : vector<6xf32>
    %55 = vector.multi_reduction <add>, %54, %cst_51 [1] : vector<6x12xf32> to vector<6xf32>
    %56 = vector.shape_cast %55 : vector<6xf32> to vector<6x1xf32>
    %cst_52 = arith.constant 0.000000e+00 : f32
    %57 = vector.broadcast %cst_52 : f32 to vector<6x1xf32>
    %58 = arith.cmpf ogt, %56, %57 : vector<6x1xf32>
    %cst_53 = arith.constant 1.000000e+00 : f32
    %59 = vector.broadcast %cst_53 : f32 to vector<6x1xf32>
    %60 = arith.select %58, %56, %59 : vector<6x1xi1>, vector<6x1xf32>
    %61 = vector.broadcast %60 : vector<6x1xf32> to vector<6x12xf32>
    %62 = arith.divf %54, %61 : vector<6x12xf32>
    %cst_54 = arith.constant dense<0.000000e+00> : vector<6x32xf32>
    %63 = tpu.matmul %62, %42, %cst_54 {dimension_numbers = #tpu.dot_dimension_numbers<[1], [0], [0], [1], [0, 0, 1, 1], [], []>} : vector<6x12xf32>, vector<12x32xf32>, vector<6x32xf32> -> vector<6x32xf32>
    %c0_55 = arith.constant 0 : index
    %c0_56 = arith.constant 0 : index
    %c0_57 = arith.constant 0 : index
    %64 = vector.load %arg16[%c0_55, %c0_56, %c0_57] : memref<2x32x64xf32, #tpu.memory_space<vmem>>, vector<1x32x64xf32>
    %65 = vector.shape_cast %64 : vector<1x32x64xf32> to vector<32x64xf32>
    %cst_58 = arith.constant dense<0.000000e+00> : vector<6x64xf32>
    %66 = tpu.matmul %63, %65, %cst_58 {dimension_numbers = #tpu.dot_dimension_numbers<[1], [0], [0], [1], [0, 0, 1, 1], [], []>} : vector<6x32xf32>, vector<32x64xf32>, vector<6x64xf32> -> vector<6x64xf32>
    %c1 = arith.constant 1 : index
    %c0_59 = arith.constant 0 : index
    %c0_60 = arith.constant 0 : index
    %67 = vector.load %arg13[%c1, %c0_59, %c0_60] : memref<2x64x32xf32, #tpu.memory_space<vmem>>, vector<1x64x32xf32>
    %68 = vector.shape_cast %67 : vector<1x64x32xf32> to vector<64x32xf32>
    %cst_61 = arith.constant dense<0.000000e+00> : vector<6x32xf32>
    %69 = tpu.matmul %33, %68, %cst_61 {dimension_numbers = #tpu.dot_dimension_numbers<[1], [0], [0], [1], [0, 0, 1, 1], [], []>} : vector<6x64xf32>, vector<64x32xf32>, vector<6x32xf32> -> vector<6x32xf32>
    %c1_62 = arith.constant 1 : index
    %c0_63 = arith.constant 0 : index
    %c0_64 = arith.constant 0 : index
    %70 = vector.load %arg14[%c1_62, %c0_63, %c0_64] : memref<2x64x32xf32, #tpu.memory_space<vmem>>, vector<1x64x32xf32>
    %71 = vector.shape_cast %70 : vector<1x64x32xf32> to vector<64x32xf32>
    %cst_65 = arith.constant dense<0.000000e+00> : vector<12x32xf32>
    %72 = tpu.matmul %18, %71, %cst_65 {dimension_numbers = #tpu.dot_dimension_numbers<[1], [0], [0], [1], [0, 0, 1, 1], [], []>} : vector<12x64xf32>, vector<64x32xf32>, vector<12x32xf32> -> vector<12x32xf32>
    %c1_66 = arith.constant 1 : index
    %c0_67 = arith.constant 0 : index
    %c0_68 = arith.constant 0 : index
    %73 = vector.load %arg15[%c1_66, %c0_67, %c0_68] : memref<2x64x32xf32, #tpu.memory_space<vmem>>, vector<1x64x32xf32>
    %74 = vector.shape_cast %73 : vector<1x64x32xf32> to vector<64x32xf32>
    %cst_69 = arith.constant dense<0.000000e+00> : vector<12x32xf32>
    %75 = tpu.matmul %18, %74, %cst_69 {dimension_numbers = #tpu.dot_dimension_numbers<[1], [0], [0], [1], [0, 0, 1, 1], [], []>} : vector<12x64xf32>, vector<64x32xf32>, vector<12x32xf32> -> vector<12x32xf32>
    %cst_70 = arith.constant dense<0.000000e+00> : vector<6x12xf32>
    %76 = tpu.matmul %69, %72, %cst_70 {dimension_numbers = #tpu.dot_dimension_numbers<[1], [1], [0], [0], [0, 0, 1, 0], [], []>} : vector<6x32xf32>, vector<12x32xf32>, vector<6x12xf32> -> vector<6x12xf32>
    %cst_71 = arith.constant 0.176776692 : f32
    %77 = vector.broadcast %cst_71 : f32 to vector<6x12xf32>
    %78 = arith.mulf %76, %77 : vector<6x12xf32>
    %cst_72 = arith.constant -1.000000e+30 : f32
    %79 = vector.broadcast %cst_72 : f32 to vector<6x12xf32>
    %80 = arith.select %5, %79, %78 : vector<6x12xi1>, vector<6x12xf32>
    %cst_73 = arith.constant dense<0xFF800000> : vector<6xf32>
    %81 = vector.multi_reduction <maximumf>, %80, %cst_73 [1] : vector<6x12xf32> to vector<6xf32>
    %82 = vector.shape_cast %81 : vector<6xf32> to vector<6x1xf32>
    %83 = vector.broadcast %82 : vector<6x1xf32> to vector<6x12xf32>
    %84 = arith.subf %80, %83 : vector<6x12xf32>
    %85 = math.exp %84 : vector<6x12xf32>
    %cst_74 = arith.constant 0.000000e+00 : f32
    %86 = vector.broadcast %cst_74 : f32 to vector<6x12xf32>
    %87 = arith.select %5, %86, %85 : vector<6x12xi1>, vector<6x12xf32>
    %cst_75 = arith.constant dense<0.000000e+00> : vector<6xf32>
    %88 = vector.multi_reduction <add>, %87, %cst_75 [1] : vector<6x12xf32> to vector<6xf32>
    %89 = vector.shape_cast %88 : vector<6xf32> to vector<6x1xf32>
    %cst_76 = arith.constant 0.000000e+00 : f32
    %90 = vector.broadcast %cst_76 : f32 to vector<6x1xf32>
    %91 = arith.cmpf ogt, %89, %90 : vector<6x1xf32>
    %cst_77 = arith.constant 1.000000e+00 : f32
    %92 = vector.broadcast %cst_77 : f32 to vector<6x1xf32>
    %93 = arith.select %91, %89, %92 : vector<6x1xi1>, vector<6x1xf32>
    %94 = vector.broadcast %93 : vector<6x1xf32> to vector<6x12xf32>
    %95 = arith.divf %87, %94 : vector<6x12xf32>
    %cst_78 = arith.constant dense<0.000000e+00> : vector<6x32xf32>
    %96 = tpu.matmul %95, %75, %cst_78 {dimension_numbers = #tpu.dot_dimension_numbers<[1], [0], [0], [1], [0, 0, 1, 1], [], []>} : vector<6x12xf32>, vector<12x32xf32>, vector<6x32xf32> -> vector<6x32xf32>
    %c1_79 = arith.constant 1 : index
    %c0_80 = arith.constant 0 : index
    %c0_81 = arith.constant 0 : index
    %97 = vector.load %arg16[%c1_79, %c0_80, %c0_81] : memref<2x32x64xf32, #tpu.memory_space<vmem>>, vector<1x32x64xf32>
    %98 = vector.shape_cast %97 : vector<1x32x64xf32> to vector<32x64xf32>
    %cst_82 = arith.constant dense<0.000000e+00> : vector<6x64xf32>
    %99 = tpu.matmul %96, %98, %cst_82 {dimension_numbers = #tpu.dot_dimension_numbers<[1], [0], [0], [1], [0, 0, 1, 1], [], []>} : vector<6x32xf32>, vector<32x64xf32>, vector<6x64xf32> -> vector<6x64xf32>
    %100 = arith.addf %66, %99 : vector<6x64xf32>
    %c0_83 = arith.constant 0 : index
    %c0_84 = arith.constant 0 : index
    %101 = vector.load %arg17[%c0_83, %c0_84] : memref<1x64xf32, #tpu.memory_space<vmem>>, vector<1x64xf32>
    %102 = vector.broadcast %101 : vector<1x64xf32> to vector<6x64xf32>
    %103 = arith.addf %100, %102 : vector<6x64xf32>
    %cst_85 = arith.constant 0.000000e+00 : f32
    %104 = vector.broadcast %cst_85 : f32 to vector<6x1xf32>
    %105 = arith.cmpf ogt, %11, %104 : vector<6x1xf32>
    %cst_86 = arith.constant 0.000000e+00 : f32
    %106 = vector.shape_cast %105 : vector<6x1xi1> to vector<6x1xi1>
    %107 = vector.broadcast %106 : vector<6x1xi1> to vector<6x64xi1>
    %108 = vector.broadcast %cst_86 : f32 to vector<6x64xf32>
    %109 = arith.select %107, %108, %103 : vector<6x64xi1>, vector<6x64xf32>
    %110 = vector.extract_strided_slice %25 {offsets = [0, 0], sizes = [6, 64], strides = [1, 1]} : vector<12x64xf32> to vector<6x64xf32>
    %c0_87 = arith.constant 0 : index
    %c0_88 = arith.constant 0 : index
    %c0_89 = arith.constant 0 : index
    %111 = vector.load %arg18[%c0_87, %c0_88, %c0_89] : memref<2x64x32xf32, #tpu.memory_space<vmem>>, vector<1x64x32xf32>
    %112 = vector.shape_cast %111 : vector<1x64x32xf32> to vector<64x32xf32>
    %cst_90 = arith.constant dense<0.000000e+00> : vector<6x32xf32>
    %113 = tpu.matmul %110, %112, %cst_90 {dimension_numbers = #tpu.dot_dimension_numbers<[1], [0], [0], [1], [0, 0, 1, 1], [], []>} : vector<6x64xf32>, vector<64x32xf32>, vector<6x32xf32> -> vector<6x32xf32>
    %c0_91 = arith.constant 0 : index
    %c0_92 = arith.constant 0 : index
    %c0_93 = arith.constant 0 : index
    %114 = vector.load %arg19[%c0_91, %c0_92, %c0_93] : memref<2x64x32xf32, #tpu.memory_space<vmem>>, vector<1x64x32xf32>
    %115 = vector.shape_cast %114 : vector<1x64x32xf32> to vector<64x32xf32>
    %cst_94 = arith.constant dense<0.000000e+00> : vector<12x32xf32>
    %116 = tpu.matmul %25, %115, %cst_94 {dimension_numbers = #tpu.dot_dimension_numbers<[1], [0], [0], [1], [0, 0, 1, 1], [], []>} : vector<12x64xf32>, vector<64x32xf32>, vector<12x32xf32> -> vector<12x32xf32>
    %c0_95 = arith.constant 0 : index
    %c0_96 = arith.constant 0 : index
    %c0_97 = arith.constant 0 : index
    %117 = vector.load %arg20[%c0_95, %c0_96, %c0_97] : memref<2x64x32xf32, #tpu.memory_space<vmem>>, vector<1x64x32xf32>
    %118 = vector.shape_cast %117 : vector<1x64x32xf32> to vector<64x32xf32>
    %cst_98 = arith.constant dense<0.000000e+00> : vector<12x32xf32>
    %119 = tpu.matmul %25, %118, %cst_98 {dimension_numbers = #tpu.dot_dimension_numbers<[1], [0], [0], [1], [0, 0, 1, 1], [], []>} : vector<12x64xf32>, vector<64x32xf32>, vector<12x32xf32> -> vector<12x32xf32>
    %cst_99 = arith.constant dense<0.000000e+00> : vector<6x12xf32>
    %120 = tpu.matmul %113, %116, %cst_99 {dimension_numbers = #tpu.dot_dimension_numbers<[1], [1], [0], [0], [0, 0, 1, 0], [], []>} : vector<6x32xf32>, vector<12x32xf32>, vector<6x12xf32> -> vector<6x12xf32>
    %cst_100 = arith.constant 0.176776692 : f32
    %121 = vector.broadcast %cst_100 : f32 to vector<6x12xf32>
    %122 = arith.mulf %120, %121 : vector<6x12xf32>
    %cst_101 = arith.constant -1.000000e+30 : f32
    %123 = vector.broadcast %cst_101 : f32 to vector<6x12xf32>
    %124 = arith.select %5, %123, %122 : vector<6x12xi1>, vector<6x12xf32>
    %cst_102 = arith.constant dense<0xFF800000> : vector<6xf32>
    %125 = vector.multi_reduction <maximumf>, %124, %cst_102 [1] : vector<6x12xf32> to vector<6xf32>
    %126 = vector.shape_cast %125 : vector<6xf32> to vector<6x1xf32>
    %127 = vector.broadcast %126 : vector<6x1xf32> to vector<6x12xf32>
    %128 = arith.subf %124, %127 : vector<6x12xf32>
    %129 = math.exp %128 : vector<6x12xf32>
    %cst_103 = arith.constant 0.000000e+00 : f32
    %130 = vector.broadcast %cst_103 : f32 to vector<6x12xf32>
    %131 = arith.select %5, %130, %129 : vector<6x12xi1>, vector<6x12xf32>
    %cst_104 = arith.constant dense<0.000000e+00> : vector<6xf32>
    %132 = vector.multi_reduction <add>, %131, %cst_104 [1] : vector<6x12xf32> to vector<6xf32>
    %133 = vector.shape_cast %132 : vector<6xf32> to vector<6x1xf32>
    %cst_105 = arith.constant 0.000000e+00 : f32
    %134 = vector.broadcast %cst_105 : f32 to vector<6x1xf32>
    %135 = arith.cmpf ogt, %133, %134 : vector<6x1xf32>
    %cst_106 = arith.constant 1.000000e+00 : f32
    %136 = vector.broadcast %cst_106 : f32 to vector<6x1xf32>
    %137 = arith.select %135, %133, %136 : vector<6x1xi1>, vector<6x1xf32>
    %138 = vector.broadcast %137 : vector<6x1xf32> to vector<6x12xf32>
    %139 = arith.divf %131, %138 : vector<6x12xf32>
    %cst_107 = arith.constant dense<0.000000e+00> : vector<6x32xf32>
    %140 = tpu.matmul %139, %119, %cst_107 {dimension_numbers = #tpu.dot_dimension_numbers<[1], [0], [0], [1], [0, 0, 1, 1], [], []>} : vector<6x12xf32>, vector<12x32xf32>, vector<6x32xf32> -> vector<6x32xf32>
    %c0_108 = arith.constant 0 : index
    %c0_109 = arith.constant 0 : index
    %c0_110 = arith.constant 0 : index
    %141 = vector.load %arg21[%c0_108, %c0_109, %c0_110] : memref<2x32x64xf32, #tpu.memory_space<vmem>>, vector<1x32x64xf32>
    %142 = vector.shape_cast %141 : vector<1x32x64xf32> to vector<32x64xf32>
    %cst_111 = arith.constant dense<0.000000e+00> : vector<6x64xf32>
    %143 = tpu.matmul %140, %142, %cst_111 {dimension_numbers = #tpu.dot_dimension_numbers<[1], [0], [0], [1], [0, 0, 1, 1], [], []>} : vector<6x32xf32>, vector<32x64xf32>, vector<6x64xf32> -> vector<6x64xf32>
    %c1_112 = arith.constant 1 : index
    %c0_113 = arith.constant 0 : index
    %c0_114 = arith.constant 0 : index
    %144 = vector.load %arg18[%c1_112, %c0_113, %c0_114] : memref<2x64x32xf32, #tpu.memory_space<vmem>>, vector<1x64x32xf32>
    %145 = vector.shape_cast %144 : vector<1x64x32xf32> to vector<64x32xf32>
    %cst_115 = arith.constant dense<0.000000e+00> : vector<6x32xf32>
    %146 = tpu.matmul %110, %145, %cst_115 {dimension_numbers = #tpu.dot_dimension_numbers<[1], [0], [0], [1], [0, 0, 1, 1], [], []>} : vector<6x64xf32>, vector<64x32xf32>, vector<6x32xf32> -> vector<6x32xf32>
    %c1_116 = arith.constant 1 : index
    %c0_117 = arith.constant 0 : index
    %c0_118 = arith.constant 0 : index
    %147 = vector.load %arg19[%c1_116, %c0_117, %c0_118] : memref<2x64x32xf32, #tpu.memory_space<vmem>>, vector<1x64x32xf32>
    %148 = vector.shape_cast %147 : vector<1x64x32xf32> to vector<64x32xf32>
    %cst_119 = arith.constant dense<0.000000e+00> : vector<12x32xf32>
    %149 = tpu.matmul %25, %148, %cst_119 {dimension_numbers = #tpu.dot_dimension_numbers<[1], [0], [0], [1], [0, 0, 1, 1], [], []>} : vector<12x64xf32>, vector<64x32xf32>, vector<12x32xf32> -> vector<12x32xf32>
    %c1_120 = arith.constant 1 : index
    %c0_121 = arith.constant 0 : index
    %c0_122 = arith.constant 0 : index
    %150 = vector.load %arg20[%c1_120, %c0_121, %c0_122] : memref<2x64x32xf32, #tpu.memory_space<vmem>>, vector<1x64x32xf32>
    %151 = vector.shape_cast %150 : vector<1x64x32xf32> to vector<64x32xf32>
    %cst_123 = arith.constant dense<0.000000e+00> : vector<12x32xf32>
    %152 = tpu.matmul %25, %151, %cst_123 {dimension_numbers = #tpu.dot_dimension_numbers<[1], [0], [0], [1], [0, 0, 1, 1], [], []>} : vector<12x64xf32>, vector<64x32xf32>, vector<12x32xf32> -> vector<12x32xf32>
    %cst_124 = arith.constant dense<0.000000e+00> : vector<6x12xf32>
    %153 = tpu.matmul %146, %149, %cst_124 {dimension_numbers = #tpu.dot_dimension_numbers<[1], [1], [0], [0], [0, 0, 1, 0], [], []>} : vector<6x32xf32>, vector<12x32xf32>, vector<6x12xf32> -> vector<6x12xf32>
    %cst_125 = arith.constant 0.176776692 : f32
    %154 = vector.broadcast %cst_125 : f32 to vector<6x12xf32>
    %155 = arith.mulf %153, %154 : vector<6x12xf32>
    %cst_126 = arith.constant -1.000000e+30 : f32
    %156 = vector.broadcast %cst_126 : f32 to vector<6x12xf32>
    %157 = arith.select %5, %156, %155 : vector<6x12xi1>, vector<6x12xf32>
    %cst_127 = arith.constant dense<0xFF800000> : vector<6xf32>
    %158 = vector.multi_reduction <maximumf>, %157, %cst_127 [1] : vector<6x12xf32> to vector<6xf32>
    %159 = vector.shape_cast %158 : vector<6xf32> to vector<6x1xf32>
    %160 = vector.broadcast %159 : vector<6x1xf32> to vector<6x12xf32>
    %161 = arith.subf %157, %160 : vector<6x12xf32>
    %162 = math.exp %161 : vector<6x12xf32>
    %cst_128 = arith.constant 0.000000e+00 : f32
    %163 = vector.broadcast %cst_128 : f32 to vector<6x12xf32>
    %164 = arith.select %5, %163, %162 : vector<6x12xi1>, vector<6x12xf32>
    %cst_129 = arith.constant dense<0.000000e+00> : vector<6xf32>
    %165 = vector.multi_reduction <add>, %164, %cst_129 [1] : vector<6x12xf32> to vector<6xf32>
    %166 = vector.shape_cast %165 : vector<6xf32> to vector<6x1xf32>
    %cst_130 = arith.constant 0.000000e+00 : f32
    %167 = vector.broadcast %cst_130 : f32 to vector<6x1xf32>
    %168 = arith.cmpf ogt, %166, %167 : vector<6x1xf32>
    %cst_131 = arith.constant 1.000000e+00 : f32
    %169 = vector.broadcast %cst_131 : f32 to vector<6x1xf32>
    %170 = arith.select %168, %166, %169 : vector<6x1xi1>, vector<6x1xf32>
    %171 = vector.broadcast %170 : vector<6x1xf32> to vector<6x12xf32>
    %172 = arith.divf %164, %171 : vector<6x12xf32>
    %cst_132 = arith.constant dense<0.000000e+00> : vector<6x32xf32>
    %173 = tpu.matmul %172, %152, %cst_132 {dimension_numbers = #tpu.dot_dimension_numbers<[1], [0], [0], [1], [0, 0, 1, 1], [], []>} : vector<6x12xf32>, vector<12x32xf32>, vector<6x32xf32> -> vector<6x32xf32>
    %c1_133 = arith.constant 1 : index
    %c0_134 = arith.constant 0 : index
    %c0_135 = arith.constant 0 : index
    %174 = vector.load %arg21[%c1_133, %c0_134, %c0_135] : memref<2x32x64xf32, #tpu.memory_space<vmem>>, vector<1x32x64xf32>
    %175 = vector.shape_cast %174 : vector<1x32x64xf32> to vector<32x64xf32>
    %cst_136 = arith.constant dense<0.000000e+00> : vector<6x64xf32>
    %176 = tpu.matmul %173, %175, %cst_136 {dimension_numbers = #tpu.dot_dimension_numbers<[1], [0], [0], [1], [0, 0, 1, 1], [], []>} : vector<6x32xf32>, vector<32x64xf32>, vector<6x64xf32> -> vector<6x64xf32>
    %177 = arith.addf %143, %176 : vector<6x64xf32>
    %c0_137 = arith.constant 0 : index
    %c0_138 = arith.constant 0 : index
    %178 = vector.load %arg22[%c0_137, %c0_138] : memref<1x64xf32, #tpu.memory_space<vmem>>, vector<1x64xf32>
    %179 = vector.broadcast %178 : vector<1x64xf32> to vector<6x64xf32>
    %180 = arith.addf %177, %179 : vector<6x64xf32>
    %cst_139 = arith.constant 0.000000e+00 : f32
    %181 = vector.broadcast %cst_139 : f32 to vector<6x1xf32>
    %182 = arith.cmpf ogt, %11, %181 : vector<6x1xf32>
    %cst_140 = arith.constant 0.000000e+00 : f32
    %183 = vector.shape_cast %182 : vector<6x1xi1> to vector<6x1xi1>
    %184 = vector.broadcast %183 : vector<6x1xi1> to vector<6x64xi1>
    %185 = vector.broadcast %cst_140 : f32 to vector<6x64xf32>
    %186 = arith.select %184, %185, %180 : vector<6x64xi1>, vector<6x64xf32>
    %187 = vector.extract_strided_slice %32 {offsets = [0, 0], sizes = [6, 64], strides = [1, 1]} : vector<12x64xf32> to vector<6x64xf32>
    %c0_141 = arith.constant 0 : index
    %c0_142 = arith.constant 0 : index
    %c0_143 = arith.constant 0 : index
    %188 = vector.load %arg23[%c0_141, %c0_142, %c0_143] : memref<2x64x32xf32, #tpu.memory_space<vmem>>, vector<1x64x32xf32>
    %189 = vector.shape_cast %188 : vector<1x64x32xf32> to vector<64x32xf32>
    %cst_144 = arith.constant dense<0.000000e+00> : vector<6x32xf32>
    %190 = tpu.matmul %187, %189, %cst_144 {dimension_numbers = #tpu.dot_dimension_numbers<[1], [0], [0], [1], [0, 0, 1, 1], [], []>} : vector<6x64xf32>, vector<64x32xf32>, vector<6x32xf32> -> vector<6x32xf32>
    %c0_145 = arith.constant 0 : index
    %c0_146 = arith.constant 0 : index
    %c0_147 = arith.constant 0 : index
    %191 = vector.load %arg24[%c0_145, %c0_146, %c0_147] : memref<2x64x32xf32, #tpu.memory_space<vmem>>, vector<1x64x32xf32>
    %192 = vector.shape_cast %191 : vector<1x64x32xf32> to vector<64x32xf32>
    %cst_148 = arith.constant dense<0.000000e+00> : vector<12x32xf32>
    %193 = tpu.matmul %32, %192, %cst_148 {dimension_numbers = #tpu.dot_dimension_numbers<[1], [0], [0], [1], [0, 0, 1, 1], [], []>} : vector<12x64xf32>, vector<64x32xf32>, vector<12x32xf32> -> vector<12x32xf32>
    %c0_149 = arith.constant 0 : index
    %c0_150 = arith.constant 0 : index
    %c0_151 = arith.constant 0 : index
    %194 = vector.load %arg25[%c0_149, %c0_150, %c0_151] : memref<2x64x32xf32, #tpu.memory_space<vmem>>, vector<1x64x32xf32>
    %195 = vector.shape_cast %194 : vector<1x64x32xf32> to vector<64x32xf32>
    %cst_152 = arith.constant dense<0.000000e+00> : vector<12x32xf32>
    %196 = tpu.matmul %32, %195, %cst_152 {dimension_numbers = #tpu.dot_dimension_numbers<[1], [0], [0], [1], [0, 0, 1, 1], [], []>} : vector<12x64xf32>, vector<64x32xf32>, vector<12x32xf32> -> vector<12x32xf32>
    %cst_153 = arith.constant dense<0.000000e+00> : vector<6x12xf32>
    %197 = tpu.matmul %190, %193, %cst_153 {dimension_numbers = #tpu.dot_dimension_numbers<[1], [1], [0], [0], [0, 0, 1, 0], [], []>} : vector<6x32xf32>, vector<12x32xf32>, vector<6x12xf32> -> vector<6x12xf32>
    %cst_154 = arith.constant 0.176776692 : f32
    %198 = vector.broadcast %cst_154 : f32 to vector<6x12xf32>
    %199 = arith.mulf %197, %198 : vector<6x12xf32>
    %cst_155 = arith.constant -1.000000e+30 : f32
    %200 = vector.broadcast %cst_155 : f32 to vector<6x12xf32>
    %201 = arith.select %5, %200, %199 : vector<6x12xi1>, vector<6x12xf32>
    %cst_156 = arith.constant dense<0xFF800000> : vector<6xf32>
    %202 = vector.multi_reduction <maximumf>, %201, %cst_156 [1] : vector<6x12xf32> to vector<6xf32>
    %203 = vector.shape_cast %202 : vector<6xf32> to vector<6x1xf32>
    %204 = vector.broadcast %203 : vector<6x1xf32> to vector<6x12xf32>
    %205 = arith.subf %201, %204 : vector<6x12xf32>
    %206 = math.exp %205 : vector<6x12xf32>
    %cst_157 = arith.constant 0.000000e+00 : f32
    %207 = vector.broadcast %cst_157 : f32 to vector<6x12xf32>
    %208 = arith.select %5, %207, %206 : vector<6x12xi1>, vector<6x12xf32>
    %cst_158 = arith.constant dense<0.000000e+00> : vector<6xf32>
    %209 = vector.multi_reduction <add>, %208, %cst_158 [1] : vector<6x12xf32> to vector<6xf32>
    %210 = vector.shape_cast %209 : vector<6xf32> to vector<6x1xf32>
    %cst_159 = arith.constant 0.000000e+00 : f32
    %211 = vector.broadcast %cst_159 : f32 to vector<6x1xf32>
    %212 = arith.cmpf ogt, %210, %211 : vector<6x1xf32>
    %cst_160 = arith.constant 1.000000e+00 : f32
    %213 = vector.broadcast %cst_160 : f32 to vector<6x1xf32>
    %214 = arith.select %212, %210, %213 : vector<6x1xi1>, vector<6x1xf32>
    %215 = vector.broadcast %214 : vector<6x1xf32> to vector<6x12xf32>
    %216 = arith.divf %208, %215 : vector<6x12xf32>
    %cst_161 = arith.constant dense<0.000000e+00> : vector<6x32xf32>
    %217 = tpu.matmul %216, %196, %cst_161 {dimension_numbers = #tpu.dot_dimension_numbers<[1], [0], [0], [1], [0, 0, 1, 1], [], []>} : vector<6x12xf32>, vector<12x32xf32>, vector<6x32xf32> -> vector<6x32xf32>
    %c0_162 = arith.constant 0 : index
    %c0_163 = arith.constant 0 : index
    %c0_164 = arith.constant 0 : index
    %218 = vector.load %arg26[%c0_162, %c0_163, %c0_164] : memref<2x32x64xf32, #tpu.memory_space<vmem>>, vector<1x32x64xf32>
    %219 = vector.shape_cast %218 : vector<1x32x64xf32> to vector<32x64xf32>
    %cst_165 = arith.constant dense<0.000000e+00> : vector<6x64xf32>
    %220 = tpu.matmul %217, %219, %cst_165 {dimension_numbers = #tpu.dot_dimension_numbers<[1], [0], [0], [1], [0, 0, 1, 1], [], []>} : vector<6x32xf32>, vector<32x64xf32>, vector<6x64xf32> -> vector<6x64xf32>
    %c1_166 = arith.constant 1 : index
    %c0_167 = arith.constant 0 : index
    %c0_168 = arith.constant 0 : index
    %221 = vector.load %arg23[%c1_166, %c0_167, %c0_168] : memref<2x64x32xf32, #tpu.memory_space<vmem>>, vector<1x64x32xf32>
    %222 = vector.shape_cast %221 : vector<1x64x32xf32> to vector<64x32xf32>
    %cst_169 = arith.constant dense<0.000000e+00> : vector<6x32xf32>
    %223 = tpu.matmul %187, %222, %cst_169 {dimension_numbers = #tpu.dot_dimension_numbers<[1], [0], [0], [1], [0, 0, 1, 1], [], []>} : vector<6x64xf32>, vector<64x32xf32>, vector<6x32xf32> -> vector<6x32xf32>
    %c1_170 = arith.constant 1 : index
    %c0_171 = arith.constant 0 : index
    %c0_172 = arith.constant 0 : index
    %224 = vector.load %arg24[%c1_170, %c0_171, %c0_172] : memref<2x64x32xf32, #tpu.memory_space<vmem>>, vector<1x64x32xf32>
    %225 = vector.shape_cast %224 : vector<1x64x32xf32> to vector<64x32xf32>
    %cst_173 = arith.constant dense<0.000000e+00> : vector<12x32xf32>
    %226 = tpu.matmul %32, %225, %cst_173 {dimension_numbers = #tpu.dot_dimension_numbers<[1], [0], [0], [1], [0, 0, 1, 1], [], []>} : vector<12x64xf32>, vector<64x32xf32>, vector<12x32xf32> -> vector<12x32xf32>
    %c1_174 = arith.constant 1 : index
    %c0_175 = arith.constant 0 : index
    %c0_176 = arith.constant 0 : index
    %227 = vector.load %arg25[%c1_174, %c0_175, %c0_176] : memref<2x64x32xf32, #tpu.memory_space<vmem>>, vector<1x64x32xf32>
    %228 = vector.shape_cast %227 : vector<1x64x32xf32> to vector<64x32xf32>
    %cst_177 = arith.constant dense<0.000000e+00> : vector<12x32xf32>
    %229 = tpu.matmul %32, %228, %cst_177 {dimension_numbers = #tpu.dot_dimension_numbers<[1], [0], [0], [1], [0, 0, 1, 1], [], []>} : vector<12x64xf32>, vector<64x32xf32>, vector<12x32xf32> -> vector<12x32xf32>
    %cst_178 = arith.constant dense<0.000000e+00> : vector<6x12xf32>
    %230 = tpu.matmul %223, %226, %cst_178 {dimension_numbers = #tpu.dot_dimension_numbers<[1], [1], [0], [0], [0, 0, 1, 0], [], []>} : vector<6x32xf32>, vector<12x32xf32>, vector<6x12xf32> -> vector<6x12xf32>
    %cst_179 = arith.constant 0.176776692 : f32
    %231 = vector.broadcast %cst_179 : f32 to vector<6x12xf32>
    %232 = arith.mulf %230, %231 : vector<6x12xf32>
    %cst_180 = arith.constant -1.000000e+30 : f32
    %233 = vector.broadcast %cst_180 : f32 to vector<6x12xf32>
    %234 = arith.select %5, %233, %232 : vector<6x12xi1>, vector<6x12xf32>
    %cst_181 = arith.constant dense<0xFF800000> : vector<6xf32>
    %235 = vector.multi_reduction <maximumf>, %234, %cst_181 [1] : vector<6x12xf32> to vector<6xf32>
    %236 = vector.shape_cast %235 : vector<6xf32> to vector<6x1xf32>
    %237 = vector.broadcast %236 : vector<6x1xf32> to vector<6x12xf32>
    %238 = arith.subf %234, %237 : vector<6x12xf32>
    %239 = math.exp %238 : vector<6x12xf32>
    %cst_182 = arith.constant 0.000000e+00 : f32
    %240 = vector.broadcast %cst_182 : f32 to vector<6x12xf32>
    %241 = arith.select %5, %240, %239 : vector<6x12xi1>, vector<6x12xf32>
    %cst_183 = arith.constant dense<0.000000e+00> : vector<6xf32>
    %242 = vector.multi_reduction <add>, %241, %cst_183 [1] : vector<6x12xf32> to vector<6xf32>
    %243 = vector.shape_cast %242 : vector<6xf32> to vector<6x1xf32>
    %cst_184 = arith.constant 0.000000e+00 : f32
    %244 = vector.broadcast %cst_184 : f32 to vector<6x1xf32>
    %245 = arith.cmpf ogt, %243, %244 : vector<6x1xf32>
    %cst_185 = arith.constant 1.000000e+00 : f32
    %246 = vector.broadcast %cst_185 : f32 to vector<6x1xf32>
    %247 = arith.select %245, %243, %246 : vector<6x1xi1>, vector<6x1xf32>
    %248 = vector.broadcast %247 : vector<6x1xf32> to vector<6x12xf32>
    %249 = arith.divf %241, %248 : vector<6x12xf32>
    %cst_186 = arith.constant dense<0.000000e+00> : vector<6x32xf32>
    %250 = tpu.matmul %249, %229, %cst_186 {dimension_numbers = #tpu.dot_dimension_numbers<[1], [0], [0], [1], [0, 0, 1, 1], [], []>} : vector<6x12xf32>, vector<12x32xf32>, vector<6x32xf32> -> vector<6x32xf32>
    %c1_187 = arith.constant 1 : index
    %c0_188 = arith.constant 0 : index
    %c0_189 = arith.constant 0 : index
    %251 = vector.load %arg26[%c1_187, %c0_188, %c0_189] : memref<2x32x64xf32, #tpu.memory_space<vmem>>, vector<1x32x64xf32>
    %252 = vector.shape_cast %251 : vector<1x32x64xf32> to vector<32x64xf32>
    %cst_190 = arith.constant dense<0.000000e+00> : vector<6x64xf32>
    %253 = tpu.matmul %250, %252, %cst_190 {dimension_numbers = #tpu.dot_dimension_numbers<[1], [0], [0], [1], [0, 0, 1, 1], [], []>} : vector<6x32xf32>, vector<32x64xf32>, vector<6x64xf32> -> vector<6x64xf32>
    %254 = arith.addf %220, %253 : vector<6x64xf32>
    %c0_191 = arith.constant 0 : index
    %c0_192 = arith.constant 0 : index
    %255 = vector.load %arg27[%c0_191, %c0_192] : memref<1x64xf32, #tpu.memory_space<vmem>>, vector<1x64xf32>
    %256 = vector.broadcast %255 : vector<1x64xf32> to vector<6x64xf32>
    %257 = arith.addf %254, %256 : vector<6x64xf32>
    %cst_193 = arith.constant 0.000000e+00 : f32
    %258 = vector.broadcast %cst_193 : f32 to vector<6x1xf32>
    %259 = arith.cmpf ogt, %11, %258 : vector<6x1xf32>
    %cst_194 = arith.constant 0.000000e+00 : f32
    %260 = vector.shape_cast %259 : vector<6x1xi1> to vector<6x1xi1>
    %261 = vector.broadcast %260 : vector<6x1xi1> to vector<6x64xi1>
    %262 = vector.broadcast %cst_194 : f32 to vector<6x64xf32>
    %263 = arith.select %261, %262, %257 : vector<6x64xi1>, vector<6x64xf32>
    %c0_195 = arith.constant 0 : index
    %c0_196 = arith.constant 0 : index
    %264 = vector.load %arg33[%c0_195, %c0_196] : memref<64x128xf32, #tpu.memory_space<vmem>>, vector<64x128xf32>
    %cst_197 = arith.constant dense<0.000000e+00> : vector<6x128xf32>
    %265 = tpu.matmul %263, %264, %cst_197 {dimension_numbers = #tpu.dot_dimension_numbers<[1], [0], [0], [1], [0, 0, 1, 1], [], []>} : vector<6x64xf32>, vector<64x128xf32>, vector<6x128xf32> -> vector<6x128xf32>
    %c0_198 = arith.constant 0 : index
    %c0_199 = arith.constant 0 : index
    %266 = vector.load %arg34[%c0_198, %c0_199] : memref<1x128xf32, #tpu.memory_space<vmem>>, vector<1x128xf32>
    %267 = vector.broadcast %266 : vector<1x128xf32> to vector<6x128xf32>
    %268 = arith.addf %265, %267 : vector<6x128xf32>
    %269 = vector.extract_strided_slice %268 {offsets = [0, 1], sizes = [6, 1], strides = [1, 1]} : vector<6x128xf32> to vector<6x1xf32>
    %270 = vector.extract_strided_slice %268 {offsets = [0, 0], sizes = [6, 1], strides = [1, 1]} : vector<6x128xf32> to vector<6x1xf32>
    %271 = arith.cmpf ogt, %269, %270 : vector<6x1xf32>
    %272 = arith.extui %271 : vector<6x1xi1> to vector<6x1xi32>
    %273 = arith.sitofp %272 : vector<6x1xi32> to vector<6x1xf32>
    %274 = vector.broadcast %273 : vector<6x1xf32> to vector<6x64xf32>
    %275 = arith.mulf %186, %274 : vector<6x64xf32>
    %c0_200 = arith.constant 0 : index
    %c0_201 = arith.constant 0 : index
    %c0_202 = arith.constant 0 : index
    %276 = vector.load %arg28[%c0_200, %c0_201, %c0_202] : memref<2x64x32xf32, #tpu.memory_space<vmem>>, vector<1x64x32xf32>
    %277 = vector.shape_cast %276 : vector<1x64x32xf32> to vector<64x32xf32>
    %cst_203 = arith.constant dense<0.000000e+00> : vector<6x32xf32>
    %278 = tpu.matmul %275, %277, %cst_203 {dimension_numbers = #tpu.dot_dimension_numbers<[1], [0], [0], [1], [0, 0, 1, 1], [], []>} : vector<6x64xf32>, vector<64x32xf32>, vector<6x32xf32> -> vector<6x32xf32>
    %c0_204 = arith.constant 0 : index
    %c0_205 = arith.constant 0 : index
    %c0_206 = arith.constant 0 : index
    %279 = vector.load %arg29[%c0_204, %c0_205, %c0_206] : memref<2x64x32xf32, #tpu.memory_space<vmem>>, vector<1x64x32xf32>
    %280 = vector.shape_cast %279 : vector<1x64x32xf32> to vector<64x32xf32>
    %cst_207 = arith.constant dense<0.000000e+00> : vector<6x32xf32>
    %281 = tpu.matmul %275, %280, %cst_207 {dimension_numbers = #tpu.dot_dimension_numbers<[1], [0], [0], [1], [0, 0, 1, 1], [], []>} : vector<6x64xf32>, vector<64x32xf32>, vector<6x32xf32> -> vector<6x32xf32>
    %c0_208 = arith.constant 0 : index
    %c0_209 = arith.constant 0 : index
    %c0_210 = arith.constant 0 : index
    %282 = vector.load %arg30[%c0_208, %c0_209, %c0_210] : memref<2x64x32xf32, #tpu.memory_space<vmem>>, vector<1x64x32xf32>
    %283 = vector.shape_cast %282 : vector<1x64x32xf32> to vector<64x32xf32>
    %cst_211 = arith.constant dense<0.000000e+00> : vector<6x32xf32>
    %284 = tpu.matmul %275, %283, %cst_211 {dimension_numbers = #tpu.dot_dimension_numbers<[1], [0], [0], [1], [0, 0, 1, 1], [], []>} : vector<6x64xf32>, vector<64x32xf32>, vector<6x32xf32> -> vector<6x32xf32>
    %cst_212 = arith.constant dense<0.000000e+00> : vector<6x6xf32>
    %285 = tpu.matmul %278, %281, %cst_212 {dimension_numbers = #tpu.dot_dimension_numbers<[1], [1], [0], [0], [0, 0, 1, 0], [], []>} : vector<6x32xf32>, vector<6x32xf32>, vector<6x6xf32> -> vector<6x6xf32>
    %cst_213 = arith.constant 0.176776692 : f32
    %286 = vector.broadcast %cst_213 : f32 to vector<6x6xf32>
    %287 = arith.mulf %285, %286 : vector<6x6xf32>
    %cst_214 = arith.constant -1.000000e+30 : f32
    %288 = vector.broadcast %cst_214 : f32 to vector<6x6xf32>
    %289 = arith.select %9, %288, %287 : vector<6x6xi1>, vector<6x6xf32>
    %cst_215 = arith.constant dense<0xFF800000> : vector<6xf32>
    %290 = vector.multi_reduction <maximumf>, %289, %cst_215 [1] : vector<6x6xf32> to vector<6xf32>
    %291 = vector.shape_cast %290 : vector<6xf32> to vector<6x1xf32>
    %292 = vector.broadcast %291 : vector<6x1xf32> to vector<6x6xf32>
    %293 = arith.subf %289, %292 : vector<6x6xf32>
    %294 = math.exp %293 : vector<6x6xf32>
    %cst_216 = arith.constant 0.000000e+00 : f32
    %295 = vector.broadcast %cst_216 : f32 to vector<6x6xf32>
    %296 = arith.select %9, %295, %294 : vector<6x6xi1>, vector<6x6xf32>
    %cst_217 = arith.constant dense<0.000000e+00> : vector<6xf32>
    %297 = vector.multi_reduction <add>, %296, %cst_217 [1] : vector<6x6xf32> to vector<6xf32>
    %298 = vector.shape_cast %297 : vector<6xf32> to vector<6x1xf32>
    %cst_218 = arith.constant 0.000000e+00 : f32
    %299 = vector.broadcast %cst_218 : f32 to vector<6x1xf32>
    %300 = arith.cmpf ogt, %298, %299 : vector<6x1xf32>
    %cst_219 = arith.constant 1.000000e+00 : f32
    %301 = vector.broadcast %cst_219 : f32 to vector<6x1xf32>
    %302 = arith.select %300, %298, %301 : vector<6x1xi1>, vector<6x1xf32>
    %303 = vector.broadcast %302 : vector<6x1xf32> to vector<6x6xf32>
    %304 = arith.divf %296, %303 : vector<6x6xf32>
    %cst_220 = arith.constant dense<0.000000e+00> : vector<6x32xf32>
    %305 = tpu.matmul %304, %284, %cst_220 {dimension_numbers = #tpu.dot_dimension_numbers<[1], [0], [0], [1], [0, 0, 1, 1], [], []>} : vector<6x6xf32>, vector<6x32xf32>, vector<6x32xf32> -> vector<6x32xf32>
    %c0_221 = arith.constant 0 : index
    %c0_222 = arith.constant 0 : index
    %c0_223 = arith.constant 0 : index
    %306 = vector.load %arg31[%c0_221, %c0_222, %c0_223] : memref<2x32x64xf32, #tpu.memory_space<vmem>>, vector<1x32x64xf32>
    %307 = vector.shape_cast %306 : vector<1x32x64xf32> to vector<32x64xf32>
    %cst_224 = arith.constant dense<0.000000e+00> : vector<6x64xf32>
    %308 = tpu.matmul %305, %307, %cst_224 {dimension_numbers = #tpu.dot_dimension_numbers<[1], [0], [0], [1], [0, 0, 1, 1], [], []>} : vector<6x32xf32>, vector<32x64xf32>, vector<6x64xf32> -> vector<6x64xf32>
    %c1_225 = arith.constant 1 : index
    %c0_226 = arith.constant 0 : index
    %c0_227 = arith.constant 0 : index
    %309 = vector.load %arg28[%c1_225, %c0_226, %c0_227] : memref<2x64x32xf32, #tpu.memory_space<vmem>>, vector<1x64x32xf32>
    %310 = vector.shape_cast %309 : vector<1x64x32xf32> to vector<64x32xf32>
    %cst_228 = arith.constant dense<0.000000e+00> : vector<6x32xf32>
    %311 = tpu.matmul %275, %310, %cst_228 {dimension_numbers = #tpu.dot_dimension_numbers<[1], [0], [0], [1], [0, 0, 1, 1], [], []>} : vector<6x64xf32>, vector<64x32xf32>, vector<6x32xf32> -> vector<6x32xf32>
    %c1_229 = arith.constant 1 : index
    %c0_230 = arith.constant 0 : index
    %c0_231 = arith.constant 0 : index
    %312 = vector.load %arg29[%c1_229, %c0_230, %c0_231] : memref<2x64x32xf32, #tpu.memory_space<vmem>>, vector<1x64x32xf32>
    %313 = vector.shape_cast %312 : vector<1x64x32xf32> to vector<64x32xf32>
    %cst_232 = arith.constant dense<0.000000e+00> : vector<6x32xf32>
    %314 = tpu.matmul %275, %313, %cst_232 {dimension_numbers = #tpu.dot_dimension_numbers<[1], [0], [0], [1], [0, 0, 1, 1], [], []>} : vector<6x64xf32>, vector<64x32xf32>, vector<6x32xf32> -> vector<6x32xf32>
    %c1_233 = arith.constant 1 : index
    %c0_234 = arith.constant 0 : index
    %c0_235 = arith.constant 0 : index
    %315 = vector.load %arg30[%c1_233, %c0_234, %c0_235] : memref<2x64x32xf32, #tpu.memory_space<vmem>>, vector<1x64x32xf32>
    %316 = vector.shape_cast %315 : vector<1x64x32xf32> to vector<64x32xf32>
    %cst_236 = arith.constant dense<0.000000e+00> : vector<6x32xf32>
    %317 = tpu.matmul %275, %316, %cst_236 {dimension_numbers = #tpu.dot_dimension_numbers<[1], [0], [0], [1], [0, 0, 1, 1], [], []>} : vector<6x64xf32>, vector<64x32xf32>, vector<6x32xf32> -> vector<6x32xf32>
    %cst_237 = arith.constant dense<0.000000e+00> : vector<6x6xf32>
    %318 = tpu.matmul %311, %314, %cst_237 {dimension_numbers = #tpu.dot_dimension_numbers<[1], [1], [0], [0], [0, 0, 1, 0], [], []>} : vector<6x32xf32>, vector<6x32xf32>, vector<6x6xf32> -> vector<6x6xf32>
    %cst_238 = arith.constant 0.176776692 : f32
    %319 = vector.broadcast %cst_238 : f32 to vector<6x6xf32>
    %320 = arith.mulf %318, %319 : vector<6x6xf32>
    %cst_239 = arith.constant -1.000000e+30 : f32
    %321 = vector.broadcast %cst_239 : f32 to vector<6x6xf32>
    %322 = arith.select %9, %321, %320 : vector<6x6xi1>, vector<6x6xf32>
    %cst_240 = arith.constant dense<0xFF800000> : vector<6xf32>
    %323 = vector.multi_reduction <maximumf>, %322, %cst_240 [1] : vector<6x6xf32> to vector<6xf32>
    %324 = vector.shape_cast %323 : vector<6xf32> to vector<6x1xf32>
    %325 = vector.broadcast %324 : vector<6x1xf32> to vector<6x6xf32>
    %326 = arith.subf %322, %325 : vector<6x6xf32>
    %327 = math.exp %326 : vector<6x6xf32>
    %cst_241 = arith.constant 0.000000e+00 : f32
    %328 = vector.broadcast %cst_241 : f32 to vector<6x6xf32>
    %329 = arith.select %9, %328, %327 : vector<6x6xi1>, vector<6x6xf32>
    %cst_242 = arith.constant dense<0.000000e+00> : vector<6xf32>
    %330 = vector.multi_reduction <add>, %329, %cst_242 [1] : vector<6x6xf32> to vector<6xf32>
    %331 = vector.shape_cast %330 : vector<6xf32> to vector<6x1xf32>
    %cst_243 = arith.constant 0.000000e+00 : f32
    %332 = vector.broadcast %cst_243 : f32 to vector<6x1xf32>
    %333 = arith.cmpf ogt, %331, %332 : vector<6x1xf32>
    %cst_244 = arith.constant 1.000000e+00 : f32
    %334 = vector.broadcast %cst_244 : f32 to vector<6x1xf32>
    %335 = arith.select %333, %331, %334 : vector<6x1xi1>, vector<6x1xf32>
    %336 = vector.broadcast %335 : vector<6x1xf32> to vector<6x6xf32>
    %337 = arith.divf %329, %336 : vector<6x6xf32>
    %cst_245 = arith.constant dense<0.000000e+00> : vector<6x32xf32>
    %338 = tpu.matmul %337, %317, %cst_245 {dimension_numbers = #tpu.dot_dimension_numbers<[1], [0], [0], [1], [0, 0, 1, 1], [], []>} : vector<6x6xf32>, vector<6x32xf32>, vector<6x32xf32> -> vector<6x32xf32>
    %c1_246 = arith.constant 1 : index
    %c0_247 = arith.constant 0 : index
    %c0_248 = arith.constant 0 : index
    %339 = vector.load %arg31[%c1_246, %c0_247, %c0_248] : memref<2x32x64xf32, #tpu.memory_space<vmem>>, vector<1x32x64xf32>
    %340 = vector.shape_cast %339 : vector<1x32x64xf32> to vector<32x64xf32>
    %cst_249 = arith.constant dense<0.000000e+00> : vector<6x64xf32>
    %341 = tpu.matmul %338, %340, %cst_249 {dimension_numbers = #tpu.dot_dimension_numbers<[1], [0], [0], [1], [0, 0, 1, 1], [], []>} : vector<6x32xf32>, vector<32x64xf32>, vector<6x64xf32> -> vector<6x64xf32>
    %342 = arith.addf %308, %341 : vector<6x64xf32>
    %c0_250 = arith.constant 0 : index
    %c0_251 = arith.constant 0 : index
    %343 = vector.load %arg32[%c0_250, %c0_251] : memref<1x64xf32, #tpu.memory_space<vmem>>, vector<1x64xf32>
    %344 = vector.broadcast %343 : vector<1x64xf32> to vector<6x64xf32>
    %345 = arith.addf %342, %344 : vector<6x64xf32>
    %cst_252 = arith.constant 0.000000e+00 : f32
    %346 = vector.broadcast %cst_252 : f32 to vector<6x1xf32>
    %347 = arith.cmpf ogt, %11, %346 : vector<6x1xf32>
    %cst_253 = arith.constant 0.000000e+00 : f32
    %348 = vector.shape_cast %347 : vector<6x1xi1> to vector<6x1xi1>
    %349 = vector.broadcast %348 : vector<6x1xi1> to vector<6x64xi1>
    %350 = vector.broadcast %cst_253 : f32 to vector<6x64xf32>
    %351 = arith.select %349, %350, %345 : vector<6x64xi1>, vector<6x64xf32>
    %c0_254 = arith.constant 0 : index
    %c0_255 = arith.constant 0 : index
    %352 = vector.load %arg35[%c0_254, %c0_255] : memref<64x64xf32, #tpu.memory_space<vmem>>, vector<64x64xf32>
    %cst_256 = arith.constant dense<0.000000e+00> : vector<6x64xf32>
    %353 = tpu.matmul %109, %352, %cst_256 {dimension_numbers = #tpu.dot_dimension_numbers<[1], [0], [0], [1], [0, 0, 1, 1], [], []>} : vector<6x64xf32>, vector<64x64xf32>, vector<6x64xf32> -> vector<6x64xf32>
    %c0_257 = arith.constant 0 : index
    %c0_258 = arith.constant 0 : index
    %354 = vector.load %arg36[%c0_257, %c0_258] : memref<64x64xf32, #tpu.memory_space<vmem>>, vector<64x64xf32>
    %cst_259 = arith.constant dense<0.000000e+00> : vector<6x64xf32>
    %355 = tpu.matmul %351, %354, %cst_259 {dimension_numbers = #tpu.dot_dimension_numbers<[1], [0], [0], [1], [0, 0, 1, 1], [], []>} : vector<6x64xf32>, vector<64x64xf32>, vector<6x64xf32> -> vector<6x64xf32>
    %356 = arith.addf %353, %355 : vector<6x64xf32>
    %c0_260 = arith.constant 0 : index
    %c0_261 = arith.constant 0 : index
    %357 = vector.load %arg37[%c0_260, %c0_261] : memref<1x64xf32, #tpu.memory_space<vmem>>, vector<1x64xf32>
    %358 = vector.broadcast %357 : vector<1x64xf32> to vector<6x64xf32>
    %359 = arith.addf %356, %358 : vector<6x64xf32>
    %cst_262 = arith.constant 0.000000e+00 : f32
    %360 = vector.broadcast %cst_262 : f32 to vector<6x64xf32>
    %361 = arith.maximumf %359, %360 : vector<6x64xf32>
    %c0_i32 = arith.constant 0 : i32
    %362 = arith.cmpi eq, %arg1, %c0_i32 : i32
    %363 = arith.extui %362 : i1 to i32
    %c0_i32_263 = arith.constant 0 : i32
    %364 = arith.cmpi ne, %363, %c0_i32_263 : i32
    scf.if %364 {
      %c0_331 = arith.constant 0 : index
      %c0_332 = arith.constant 0 : index
      %c0_333 = arith.constant 0 : index
      %449 = vector.load %arg6[%c0_331, %c0_332, %c0_333] : memref<1x6x64xf32, #tpu.memory_space<vmem>>, vector<1x6x64xf32>
      %450 = vector.shape_cast %449 : vector<1x6x64xf32> to vector<6x64xf32>
      %c0_334 = arith.constant 0 : index
      %c0_335 = arith.constant 0 : index
      %451 = vector.load %arg47[%c0_334, %c0_335] : memref<6x64xf32, #tpu.memory_space<vmem>>, vector<6x64xf32>
      tpu.vector_store %arg47[%c0_334, %c0_335], %450 {strides = array<i32>} : memref<6x64xf32, #tpu.memory_space<vmem>>, vector<6x64xf32>,
    } else {
    }
    %c0_264 = arith.constant 0 : index
    %c0_265 = arith.constant 0 : index
    %365 = vector.load %arg47[%c0_264, %c0_265] : memref<6x64xf32, #tpu.memory_space<vmem>>, vector<6x64xf32>
    %c0_266 = arith.constant 0 : index
    %c0_267 = arith.constant 0 : index
    %c0_268 = arith.constant 0 : index
    %366 = vector.load %arg38[%c0_266, %c0_267, %c0_268] : memref<3x64x64xf32, #tpu.memory_space<vmem>>, vector<1x64x64xf32>
    %367 = vector.shape_cast %366 : vector<1x64x64xf32> to vector<64x64xf32>
    %cst_269 = arith.constant dense<0.000000e+00> : vector<6x64xf32>
    %368 = tpu.matmul %361, %367, %cst_269 {dimension_numbers = #tpu.dot_dimension_numbers<[1], [0], [0], [1], [0, 0, 1, 1], [], []>} : vector<6x64xf32>, vector<64x64xf32>, vector<6x64xf32> -> vector<6x64xf32>
    %c0_270 = arith.constant 0 : index
    %c0_271 = arith.constant 0 : index
    %c0_272 = arith.constant 0 : index
    %369 = vector.load %arg39[%c0_270, %c0_271, %c0_272] : memref<3x1x64xf32, #tpu.memory_space<vmem>>, vector<1x1x64xf32>
    %370 = vector.shape_cast %369 : vector<1x1x64xf32> to vector<1x64xf32>
    %371 = vector.broadcast %370 : vector<1x64xf32> to vector<6x64xf32>
    %372 = arith.addf %368, %371 : vector<6x64xf32>
    %c0_273 = arith.constant 0 : index
    %c0_274 = arith.constant 0 : index
    %c0_275 = arith.constant 0 : index
    %373 = vector.load %arg40[%c0_273, %c0_274, %c0_275] : memref<3x64x64xf32, #tpu.memory_space<vmem>>, vector<1x64x64xf32>
    %374 = vector.shape_cast %373 : vector<1x64x64xf32> to vector<64x64xf32>
    %cst_276 = arith.constant dense<0.000000e+00> : vector<6x64xf32>
    %375 = tpu.matmul %365, %374, %cst_276 {dimension_numbers = #tpu.dot_dimension_numbers<[1], [0], [0], [1], [0, 0, 1, 1], [], []>} : vector<6x64xf32>, vector<64x64xf32>, vector<6x64xf32> -> vector<6x64xf32>
    %376 = arith.addf %372, %375 : vector<6x64xf32>
    %c0_277 = arith.constant 0 : index
    %c0_278 = arith.constant 0 : index
    %c0_279 = arith.constant 0 : index
    %377 = vector.load %arg41[%c0_277, %c0_278, %c0_279] : memref<3x1x64xf32, #tpu.memory_space<vmem>>, vector<1x1x64xf32>
    %378 = vector.shape_cast %377 : vector<1x1x64xf32> to vector<1x64xf32>
    %379 = vector.broadcast %378 : vector<1x64xf32> to vector<6x64xf32>
    %380 = arith.addf %376, %379 : vector<6x64xf32>
    %381 = arith.negf %380 : vector<6x64xf32>
    %382 = math.exp %381 : vector<6x64xf32>
    %cst_280 = arith.constant 1.000000e+00 : f32
    %383 = vector.broadcast %cst_280 : f32 to vector<6x64xf32>
    %384 = arith.addf %383, %382 : vector<6x64xf32>
    %385 = arith.divf %383, %384 : vector<6x64xf32>
    %c1_281 = arith.constant 1 : index
    %c0_282 = arith.constant 0 : index
    %c0_283 = arith.constant 0 : index
    %386 = vector.load %arg38[%c1_281, %c0_282, %c0_283] : memref<3x64x64xf32, #tpu.memory_space<vmem>>, vector<1x64x64xf32>
    %387 = vector.shape_cast %386 : vector<1x64x64xf32> to vector<64x64xf32>
    %cst_284 = arith.constant dense<0.000000e+00> : vector<6x64xf32>
    %388 = tpu.matmul %361, %387, %cst_284 {dimension_numbers = #tpu.dot_dimension_numbers<[1], [0], [0], [1], [0, 0, 1, 1], [], []>} : vector<6x64xf32>, vector<64x64xf32>, vector<6x64xf32> -> vector<6x64xf32>
    %c1_285 = arith.constant 1 : index
    %c0_286 = arith.constant 0 : index
    %c0_287 = arith.constant 0 : index
    %389 = vector.load %arg39[%c1_285, %c0_286, %c0_287] : memref<3x1x64xf32, #tpu.memory_space<vmem>>, vector<1x1x64xf32>
    %390 = vector.shape_cast %389 : vector<1x1x64xf32> to vector<1x64xf32>
    %391 = vector.broadcast %390 : vector<1x64xf32> to vector<6x64xf32>
    %392 = arith.addf %388, %391 : vector<6x64xf32>
    %c1_288 = arith.constant 1 : index
    %c0_289 = arith.constant 0 : index
    %c0_290 = arith.constant 0 : index
    %393 = vector.load %arg40[%c1_288, %c0_289, %c0_290] : memref<3x64x64xf32, #tpu.memory_space<vmem>>, vector<1x64x64xf32>
    %394 = vector.shape_cast %393 : vector<1x64x64xf32> to vector<64x64xf32>
    %cst_291 = arith.constant dense<0.000000e+00> : vector<6x64xf32>
    %395 = tpu.matmul %365, %394, %cst_291 {dimension_numbers = #tpu.dot_dimension_numbers<[1], [0], [0], [1], [0, 0, 1, 1], [], []>} : vector<6x64xf32>, vector<64x64xf32>, vector<6x64xf32> -> vector<6x64xf32>
    %396 = arith.addf %392, %395 : vector<6x64xf32>
    %c1_292 = arith.constant 1 : index
    %c0_293 = arith.constant 0 : index
    %c0_294 = arith.constant 0 : index
    %397 = vector.load %arg41[%c1_292, %c0_293, %c0_294] : memref<3x1x64xf32, #tpu.memory_space<vmem>>, vector<1x1x64xf32>
    %398 = vector.shape_cast %397 : vector<1x1x64xf32> to vector<1x64xf32>
    %399 = vector.broadcast %398 : vector<1x64xf32> to vector<6x64xf32>
    %400 = arith.addf %396, %399 : vector<6x64xf32>
    %401 = arith.negf %400 : vector<6x64xf32>
    %402 = math.exp %401 : vector<6x64xf32>
    %cst_295 = arith.constant 1.000000e+00 : f32
    %403 = vector.broadcast %cst_295 : f32 to vector<6x64xf32>
    %404 = arith.addf %403, %402 : vector<6x64xf32>
    %405 = arith.divf %403, %404 : vector<6x64xf32>
    %c2 = arith.constant 2 : index
    %c0_296 = arith.constant 0 : index
    %c0_297 = arith.constant 0 : index
    %406 = vector.load %arg38[%c2, %c0_296, %c0_297] : memref<3x64x64xf32, #tpu.memory_space<vmem>>, vector<1x64x64xf32>
    %407 = vector.shape_cast %406 : vector<1x64x64xf32> to vector<64x64xf32>
    %cst_298 = arith.constant dense<0.000000e+00> : vector<6x64xf32>
    %408 = tpu.matmul %361, %407, %cst_298 {dimension_numbers = #tpu.dot_dimension_numbers<[1], [0], [0], [1], [0, 0, 1, 1], [], []>} : vector<6x64xf32>, vector<64x64xf32>, vector<6x64xf32> -> vector<6x64xf32>
    %c2_299 = arith.constant 2 : index
    %c0_300 = arith.constant 0 : index
    %c0_301 = arith.constant 0 : index
    %409 = vector.load %arg39[%c2_299, %c0_300, %c0_301] : memref<3x1x64xf32, #tpu.memory_space<vmem>>, vector<1x1x64xf32>
    %410 = vector.shape_cast %409 : vector<1x1x64xf32> to vector<1x64xf32>
    %411 = vector.broadcast %410 : vector<1x64xf32> to vector<6x64xf32>
    %412 = arith.addf %408, %411 : vector<6x64xf32>
    %c2_302 = arith.constant 2 : index
    %c0_303 = arith.constant 0 : index
    %c0_304 = arith.constant 0 : index
    %413 = vector.load %arg40[%c2_302, %c0_303, %c0_304] : memref<3x64x64xf32, #tpu.memory_space<vmem>>, vector<1x64x64xf32>
    %414 = vector.shape_cast %413 : vector<1x64x64xf32> to vector<64x64xf32>
    %cst_305 = arith.constant dense<0.000000e+00> : vector<6x64xf32>
    %415 = tpu.matmul %365, %414, %cst_305 {dimension_numbers = #tpu.dot_dimension_numbers<[1], [0], [0], [1], [0, 0, 1, 1], [], []>} : vector<6x64xf32>, vector<64x64xf32>, vector<6x64xf32> -> vector<6x64xf32>
    %c2_306 = arith.constant 2 : index
    %c0_307 = arith.constant 0 : index
    %c0_308 = arith.constant 0 : index
    %416 = vector.load %arg41[%c2_306, %c0_307, %c0_308] : memref<3x1x64xf32, #tpu.memory_space<vmem>>, vector<1x1x64xf32>
    %417 = vector.shape_cast %416 : vector<1x1x64xf32> to vector<1x64xf32>
    %418 = vector.broadcast %417 : vector<1x64xf32> to vector<6x64xf32>
    %419 = arith.addf %415, %418 : vector<6x64xf32>
    %420 = arith.mulf %385, %419 : vector<6x64xf32>
    %421 = arith.addf %412, %420 : vector<6x64xf32>
    %422 = math.tanh %421 : vector<6x64xf32>
    %cst_309 = arith.constant 1.000000e+00 : f32
    %423 = vector.broadcast %cst_309 : f32 to vector<6x64xf32>
    %424 = arith.subf %423, %405 : vector<6x64xf32>
    %425 = arith.mulf %424, %422 : vector<6x64xf32>
    %426 = arith.mulf %405, %365 : vector<6x64xf32>
    %427 = arith.addf %425, %426 : vector<6x64xf32>
    %c0_310 = arith.constant 0 : index
    %c0_311 = arith.constant 0 : index
    %428 = vector.load %arg47[%c0_310, %c0_311] : memref<6x64xf32, #tpu.memory_space<vmem>>, vector<6x64xf32>
    tpu.vector_store %arg47[%c0_310, %c0_311], %427 {strides = array<i32>} : memref<6x64xf32, #tpu.memory_space<vmem>>, vector<6x64xf32>,
    %c0_312 = arith.constant 0 : index
    %c0_313 = arith.constant 0 : index
    %429 = vector.load %arg42[%c0_312, %c0_313] : memref<64x128xf32, #tpu.memory_space<vmem>>, vector<64x128xf32>
    %cst_314 = arith.constant dense<0.000000e+00> : vector<6x128xf32>
    %430 = tpu.matmul %427, %429, %cst_314 {dimension_numbers = #tpu.dot_dimension_numbers<[1], [0], [0], [1], [0, 0, 1, 1], [], []>} : vector<6x64xf32>, vector<64x128xf32>, vector<6x128xf32> -> vector<6x128xf32>
    %c0_315 = arith.constant 0 : index
    %c0_316 = arith.constant 0 : index
    %431 = vector.load %arg43[%c0_315, %c0_316] : memref<1x128xf32, #tpu.memory_space<vmem>>, vector<1x128xf32>
    %432 = vector.broadcast %431 : vector<1x128xf32> to vector<6x128xf32>
    %433 = arith.addf %430, %432 : vector<6x128xf32>
    %cst_317 = arith.constant 0.000000e+00 : f32
    %434 = vector.broadcast %cst_317 : f32 to vector<6x1xf32>
    %435 = arith.cmpf ogt, %11, %434 : vector<6x1xf32>
    %cst_318 = arith.constant 0.000000e+00 : f32
    %436 = vector.shape_cast %435 : vector<6x1xi1> to vector<6x1xi1>
    %437 = vector.broadcast %436 : vector<6x1xi1> to vector<6x128xi1>
    %438 = vector.broadcast %cst_318 : f32 to vector<6x128xf32>
    %439 = arith.select %437, %438, %433 : vector<6x128xi1>, vector<6x128xf32>
    %c0_319 = arith.constant 0 : index
    %c0_320 = arith.constant 0 : index
    %c0_321 = arith.constant 0 : index
    %c0_322 = arith.constant 0 : index
    %440 = vector.load %arg44[%c0_319, %c0_320, %c0_321, %c0_322] : memref<1x1x6x64xf32, #tpu.memory_space<vmem>>, vector<1x1x6x64xf32>
    %441 = vector.shape_cast %440 : vector<1x1x6x64xf32> to vector<6x64xf32>
    %442 = vector.shape_cast %427 : vector<6x64xf32> to vector<1x1x6x64xf32>
    tpu.vector_store %arg44[%c0_319, %c0_320, %c0_321, %c0_322], %442 {strides = array<i32>} : memref<1x1x6x64xf32, #tpu.memory_space<vmem>>, vector<1x1x6x64xf32>,
    %c0_323 = arith.constant 0 : index
    %c0_324 = arith.constant 0 : index
    %c0_325 = arith.constant 0 : index
    %c0_326 = arith.constant 0 : index
    %443 = vector.load %arg45[%c0_323, %c0_324, %c0_325, %c0_326] : memref<1x1x6x128xf32, #tpu.memory_space<vmem>>, vector<1x1x6x128xf32>
    %444 = vector.shape_cast %443 : vector<1x1x6x128xf32> to vector<6x128xf32>
    %445 = vector.shape_cast %439 : vector<6x128xf32> to vector<1x1x6x128xf32>
    tpu.vector_store %arg45[%c0_323, %c0_324, %c0_325, %c0_326], %445 {strides = array<i32>} : memref<1x1x6x128xf32, #tpu.memory_space<vmem>>, vector<1x1x6x128xf32>,
    %c0_327 = arith.constant 0 : index
    %c0_328 = arith.constant 0 : index
    %c0_329 = arith.constant 0 : index
    %c0_330 = arith.constant 0 : index
    %446 = vector.load %arg46[%c0_327, %c0_328, %c0_329, %c0_330] : memref<1x1x6x128xf32, #tpu.memory_space<vmem>>, vector<1x1x6x128xf32>
    %447 = vector.shape_cast %446 : vector<1x1x6x128xf32> to vector<6x128xf32>
    %448 = vector.shape_cast %268 : vector<6x128xf32> to vector<1x1x6x128xf32>
    tpu.vector_store %arg46[%c0_327, %c0_328, %c0_329, %c0_330], %448 {strides = array<i32>} : memref<1x1x6x128xf32, #tpu.memory_space<vmem>>, vector<1x1x6x128xf32>,
    return
  }
  func.func @transform_0(%arg0: i32, %arg1: i32) -> (i32, i32, i32, i32) {
    %c0_i32 = arith.constant 0 : i32
    %c0_i32_0 = arith.constant 0 : i32
    %c0_i32_1 = arith.constant 0 : i32
    return %arg0, %arg1, %c0_i32, %c0_i32_0 : i32, i32, i32, i32
  }
  func.func @transform_1(%arg0: i32, %arg1: i32) -> (i32, i32, i32, i32) {
    %c0_i32 = arith.constant 0 : i32
    %c0_i32_0 = arith.constant 0 : i32
    %c0_i32_1 = arith.constant 0 : i32
    return %arg0, %arg1, %c0_i32, %c0_i32_0 : i32, i32, i32, i32
  }
  func.func @transform_2(%arg0: i32, %arg1: i32) -> (i32, i32, i32, i32) {
    %c0_i32 = arith.constant 0 : i32
    %c0_i32_0 = arith.constant 0 : i32
    %c0_i32_1 = arith.constant 0 : i32
    return %arg0, %arg1, %c0_i32, %c0_i32_0 : i32, i32, i32, i32
  }
  func.func @transform_3(%arg0: i32, %arg1: i32) -> (i32, i32, i32, i32) {
    %c0_i32 = arith.constant 0 : i32
    %c0_i32_0 = arith.constant 0 : i32
    %c0_i32_1 = arith.constant 0 : i32
    return %arg0, %arg1, %c0_i32, %c0_i32_0 : i32, i32, i32, i32
  }
  func.func @transform_4(%arg0: i32, %arg1: i32) -> (i32, i32, i32) {
    %c0_i32 = arith.constant 0 : i32
    %c0_i32_0 = arith.constant 0 : i32
    %c0_i32_1 = arith.constant 0 : i32
    return %arg0, %c0_i32, %c0_i32_0 : i32, i32, i32
  }
  func.func @transform_5(%arg0: i32, %arg1: i32) -> (i32, i32) {
    %c0_i32 = arith.constant 0 : i32
    %c0_i32_0 = arith.constant 0 : i32
    %c0_i32_1 = arith.constant 0 : i32
    return %c0_i32, %c0_i32_0 : i32, i32
  }
  func.func @transform_6(%arg0: i32, %arg1: i32) -> (i32, i32) {
    %c0_i32 = arith.constant 0 : i32
    %c0_i32_0 = arith.constant 0 : i32
    %c0_i32_1 = arith.constant 0 : i32
    return %c0_i32, %c0_i32_0 : i32, i32
  }
  func.func @transform_7(%arg0: i32, %arg1: i32) -> (i32, i32) {
    %c0_i32 = arith.constant 0 : i32
    %c0_i32_0 = arith.constant 0 : i32
    %c0_i32_1 = arith.constant 0 : i32
    return %c0_i32, %c0_i32_0 : i32, i32
  }
  func.func @transform_8(%arg0: i32, %arg1: i32) -> (i32, i32) {
    %c0_i32 = arith.constant 0 : i32
    %c0_i32_0 = arith.constant 0 : i32
    %c0_i32_1 = arith.constant 0 : i32
    return %c0_i32, %c0_i32_0 : i32, i32
  }
  func.func @transform_9(%arg0: i32, %arg1: i32) -> (i32, i32) {
    %c0_i32 = arith.constant 0 : i32
    %c0_i32_0 = arith.constant 0 : i32
    %c0_i32_1 = arith.constant 0 : i32
    return %c0_i32, %c0_i32_0 : i32, i32
  }
  func.func @transform_10(%arg0: i32, %arg1: i32) -> (i32, i32) {
    %c0_i32 = arith.constant 0 : i32
    %c0_i32_0 = arith.constant 0 : i32
    %c0_i32_1 = arith.constant 0 : i32
    return %c0_i32, %c0_i32_0 : i32, i32
  }
  func.func @transform_11(%arg0: i32, %arg1: i32) -> (i32, i32, i32) {
    %c0_i32 = arith.constant 0 : i32
    %c0_i32_0 = arith.constant 0 : i32
    %c0_i32_1 = arith.constant 0 : i32
    %c0_i32_2 = arith.constant 0 : i32
    return %c0_i32, %c0_i32_0, %c0_i32_1 : i32, i32, i32
  }
  func.func @transform_12(%arg0: i32, %arg1: i32) -> (i32, i32, i32) {
    %c0_i32 = arith.constant 0 : i32
    %c0_i32_0 = arith.constant 0 : i32
    %c0_i32_1 = arith.constant 0 : i32
    %c0_i32_2 = arith.constant 0 : i32
    return %c0_i32, %c0_i32_0, %c0_i32_1 : i32, i32, i32
  }
  func.func @transform_13(%arg0: i32, %arg1: i32) -> (i32, i32, i32) {
    %c0_i32 = arith.constant 0 : i32
    %c0_i32_0 = arith.constant 0 : i32
    %c0_i32_1 = arith.constant 0 : i32
    %c0_i32_2 = arith.constant 0 : i32
    return %c0_i32, %c0_i32_0, %c0_i32_1 : i32, i32, i32
  }
  func.func @transform_14(%arg0: i32, %arg1: i32) -> (i32, i32, i32) {
    %c0_i32 = arith.constant 0 : i32
    %c0_i32_0 = arith.constant 0 : i32
    %c0_i32_1 = arith.constant 0 : i32
    %c0_i32_2 = arith.constant 0 : i32
    return %c0_i32, %c0_i32_0, %c0_i32_1 : i32, i32, i32
  }
  func.func @transform_15(%arg0: i32, %arg1: i32) -> (i32, i32) {
    %c0_i32 = arith.constant 0 : i32
    %c0_i32_0 = arith.constant 0 : i32
    %c0_i32_1 = arith.constant 0 : i32
    return %c0_i32, %c0_i32_0 : i32, i32
  }
  func.func @transform_16(%arg0: i32, %arg1: i32) -> (i32, i32, i32) {
    %c0_i32 = arith.constant 0 : i32
    %c0_i32_0 = arith.constant 0 : i32
    %c0_i32_1 = arith.constant 0 : i32
    %c0_i32_2 = arith.constant 0 : i32
    return %c0_i32, %c0_i32_0, %c0_i32_1 : i32, i32, i32
  }
  func.func @transform_17(%arg0: i32, %arg1: i32) -> (i32, i32, i32) {
    %c0_i32 = arith.constant 0 : i32
    %c0_i32_0 = arith.constant 0 : i32
    %c0_i32_1 = arith.constant 0 : i32
    %c0_i32_2 = arith.constant 0 : i32
    return %c0_i32, %c0_i32_0, %c0_i32_1 : i32, i32, i32
  }
  func.func @transform_18(%arg0: i32, %arg1: i32) -> (i32, i32, i32) {
    %c0_i32 = arith.constant 0 : i32
    %c0_i32_0 = arith.constant 0 : i32
    %c0_i32_1 = arith.constant 0 : i32
    %c0_i32_2 = arith.constant 0 : i32
    return %c0_i32, %c0_i32_0, %c0_i32_1 : i32, i32, i32
  }
  func.func @transform_19(%arg0: i32, %arg1: i32) -> (i32, i32, i32) {
    %c0_i32 = arith.constant 0 : i32
    %c0_i32_0 = arith.constant 0 : i32
    %c0_i32_1 = arith.constant 0 : i32
    %c0_i32_2 = arith.constant 0 : i32
    return %c0_i32, %c0_i32_0, %c0_i32_1 : i32, i32, i32
  }
  func.func @transform_20(%arg0: i32, %arg1: i32) -> (i32, i32) {
    %c0_i32 = arith.constant 0 : i32
    %c0_i32_0 = arith.constant 0 : i32
    %c0_i32_1 = arith.constant 0 : i32
    return %c0_i32, %c0_i32_0 : i32, i32
  }
  func.func @transform_21(%arg0: i32, %arg1: i32) -> (i32, i32, i32) {
    %c0_i32 = arith.constant 0 : i32
    %c0_i32_0 = arith.constant 0 : i32
    %c0_i32_1 = arith.constant 0 : i32
    %c0_i32_2 = arith.constant 0 : i32
    return %c0_i32, %c0_i32_0, %c0_i32_1 : i32, i32, i32
  }
  func.func @transform_22(%arg0: i32, %arg1: i32) -> (i32, i32, i32) {
    %c0_i32 = arith.constant 0 : i32
    %c0_i32_0 = arith.constant 0 : i32
    %c0_i32_1 = arith.constant 0 : i32
    %c0_i32_2 = arith.constant 0 : i32
    return %c0_i32, %c0_i32_0, %c0_i32_1 : i32, i32, i32
  }
  func.func @transform_23(%arg0: i32, %arg1: i32) -> (i32, i32, i32) {
    %c0_i32 = arith.constant 0 : i32
    %c0_i32_0 = arith.constant 0 : i32
    %c0_i32_1 = arith.constant 0 : i32
    %c0_i32_2 = arith.constant 0 : i32
    return %c0_i32, %c0_i32_0, %c0_i32_1 : i32, i32, i32
  }
  func.func @transform_24(%arg0: i32, %arg1: i32) -> (i32, i32, i32) {
    %c0_i32 = arith.constant 0 : i32
    %c0_i32_0 = arith.constant 0 : i32
    %c0_i32_1 = arith.constant 0 : i32
    %c0_i32_2 = arith.constant 0 : i32
    return %c0_i32, %c0_i32_0, %c0_i32_1 : i32, i32, i32
  }
  func.func @transform_25(%arg0: i32, %arg1: i32) -> (i32, i32) {
    %c0_i32 = arith.constant 0 : i32
    %c0_i32_0 = arith.constant 0 : i32
    %c0_i32_1 = arith.constant 0 : i32
    return %c0_i32, %c0_i32_0 : i32, i32
  }
  func.func @transform_26(%arg0: i32, %arg1: i32) -> (i32, i32, i32) {
    %c0_i32 = arith.constant 0 : i32
    %c0_i32_0 = arith.constant 0 : i32
    %c0_i32_1 = arith.constant 0 : i32
    %c0_i32_2 = arith.constant 0 : i32
    return %c0_i32, %c0_i32_0, %c0_i32_1 : i32, i32, i32
  }
  func.func @transform_27(%arg0: i32, %arg1: i32) -> (i32, i32, i32) {
    %c0_i32 = arith.constant 0 : i32
    %c0_i32_0 = arith.constant 0 : i32
    %c0_i32_1 = arith.constant 0 : i32
    %c0_i32_2 = arith.constant 0 : i32
    return %c0_i32, %c0_i32_0, %c0_i32_1 : i32, i32, i32
  }
  func.func @transform_28(%arg0: i32, %arg1: i32) -> (i32, i32, i32) {
    %c0_i32 = arith.constant 0 : i32
    %c0_i32_0 = arith.constant 0 : i32
    %c0_i32_1 = arith.constant 0 : i32
    %c0_i32_2 = arith.constant 0 : i32
    return %c0_i32, %c0_i32_0, %c0_i32_1 : i32, i32, i32
  }
  func.func @transform_29(%arg0: i32, %arg1: i32) -> (i32, i32, i32) {
    %c0_i32 = arith.constant 0 : i32
    %c0_i32_0 = arith.constant 0 : i32
    %c0_i32_1 = arith.constant 0 : i32
    %c0_i32_2 = arith.constant 0 : i32
    return %c0_i32, %c0_i32_0, %c0_i32_1 : i32, i32, i32
  }
  func.func @transform_30(%arg0: i32, %arg1: i32) -> (i32, i32) {
    %c0_i32 = arith.constant 0 : i32
    %c0_i32_0 = arith.constant 0 : i32
    %c0_i32_1 = arith.constant 0 : i32
    return %c0_i32, %c0_i32_0 : i32, i32
  }
  func.func @transform_31(%arg0: i32, %arg1: i32) -> (i32, i32) {
    %c0_i32 = arith.constant 0 : i32
    %c0_i32_0 = arith.constant 0 : i32
    %c0_i32_1 = arith.constant 0 : i32
    return %c0_i32, %c0_i32_0 : i32, i32
  }
  func.func @transform_32(%arg0: i32, %arg1: i32) -> (i32, i32) {
    %c0_i32 = arith.constant 0 : i32
    %c0_i32_0 = arith.constant 0 : i32
    %c0_i32_1 = arith.constant 0 : i32
    return %c0_i32, %c0_i32_0 : i32, i32
  }
  func.func @transform_33(%arg0: i32, %arg1: i32) -> (i32, i32) {
    %c0_i32 = arith.constant 0 : i32
    %c0_i32_0 = arith.constant 0 : i32
    %c0_i32_1 = arith.constant 0 : i32
    return %c0_i32, %c0_i32_0 : i32, i32
  }
  func.func @transform_34(%arg0: i32, %arg1: i32) -> (i32, i32) {
    %c0_i32 = arith.constant 0 : i32
    %c0_i32_0 = arith.constant 0 : i32
    %c0_i32_1 = arith.constant 0 : i32
    return %c0_i32, %c0_i32_0 : i32, i32
  }
  func.func @transform_35(%arg0: i32, %arg1: i32) -> (i32, i32) {
    %c0_i32 = arith.constant 0 : i32
    %c0_i32_0 = arith.constant 0 : i32
    %c0_i32_1 = arith.constant 0 : i32
    return %c0_i32, %c0_i32_0 : i32, i32
  }
  func.func @transform_36(%arg0: i32, %arg1: i32) -> (i32, i32, i32) {
    %c0_i32 = arith.constant 0 : i32
    %c0_i32_0 = arith.constant 0 : i32
    %c0_i32_1 = arith.constant 0 : i32
    %c0_i32_2 = arith.constant 0 : i32
    return %c0_i32, %c0_i32_0, %c0_i32_1 : i32, i32, i32
  }
  func.func @transform_37(%arg0: i32, %arg1: i32) -> (i32, i32, i32) {
    %c0_i32 = arith.constant 0 : i32
    %c0_i32_0 = arith.constant 0 : i32
    %c0_i32_1 = arith.constant 0 : i32
    %c0_i32_2 = arith.constant 0 : i32
    return %c0_i32, %c0_i32_0, %c0_i32_1 : i32, i32, i32
  }
  func.func @transform_38(%arg0: i32, %arg1: i32) -> (i32, i32, i32) {
    %c0_i32 = arith.constant 0 : i32
    %c0_i32_0 = arith.constant 0 : i32
    %c0_i32_1 = arith.constant 0 : i32
    %c0_i32_2 = arith.constant 0 : i32
    return %c0_i32, %c0_i32_0, %c0_i32_1 : i32, i32, i32
  }
  func.func @transform_39(%arg0: i32, %arg1: i32) -> (i32, i32, i32) {
    %c0_i32 = arith.constant 0 : i32
    %c0_i32_0 = arith.constant 0 : i32
    %c0_i32_1 = arith.constant 0 : i32
    %c0_i32_2 = arith.constant 0 : i32
    return %c0_i32, %c0_i32_0, %c0_i32_1 : i32, i32, i32
  }
  func.func @transform_40(%arg0: i32, %arg1: i32) -> (i32, i32) {
    %c0_i32 = arith.constant 0 : i32
    %c0_i32_0 = arith.constant 0 : i32
    %c0_i32_1 = arith.constant 0 : i32
    return %c0_i32, %c0_i32_0 : i32, i32
  }
  func.func @transform_41(%arg0: i32, %arg1: i32) -> (i32, i32) {
    %c0_i32 = arith.constant 0 : i32
    %c0_i32_0 = arith.constant 0 : i32
    %c0_i32_1 = arith.constant 0 : i32
    return %c0_i32, %c0_i32_0 : i32, i32
  }
  func.func @transform_42(%arg0: i32, %arg1: i32) -> (i32, i32, i32, i32) {
    %c0_i32 = arith.constant 0 : i32
    %c0_i32_0 = arith.constant 0 : i32
    %c0_i32_1 = arith.constant 0 : i32
    return %arg0, %arg1, %c0_i32, %c0_i32_0 : i32, i32, i32, i32
  }
  func.func @transform_43(%arg0: i32, %arg1: i32) -> (i32, i32, i32, i32) {
    %c0_i32 = arith.constant 0 : i32
    %c0_i32_0 = arith.constant 0 : i32
    %c0_i32_1 = arith.constant 0 : i32
    return %arg0, %arg1, %c0_i32, %c0_i32_0 : i32, i32, i32, i32
  }
  func.func @transform_44(%arg0: i32, %arg1: i32) -> (i32, i32, i32, i32) {
    %c0_i32 = arith.constant 0 : i32
    %c0_i32_0 = arith.constant 0 : i32
    %c0_i32_1 = arith.constant 0 : i32
    return %arg0, %arg1, %c0_i32, %c0_i32_0 : i32, i32, i32, i32
  }
}

</mosaic_0001>

<llo_original>
// kernel: _lambda_.1
$region0: #{_lambda_.1}
  #allocation0 [shape = 'u32[]', space=smem, size = 0x4, offset = 0x4, fixed_abs, tag = 'smem constant byte address 0x4 - core index']
  #allocation1 [shape = 'u32[72,128]{1,0:T(1,128)}', space=vmem, size = 0x9000, scoped, tag = 'internal scratch']
  #allocation2 [shape = 'f32[6,64]{1,0:T(8,128)}', space=vmem, size = 0x1000, scoped, tag = 'scratch operand']
  %s0 = inlined_call_operand.smem [shape: u32[45], index: -1, kind: input, shape index: {}]
  %s1 = sld [smem:[%s0]]
  %s2 = scalar_lea.smem %s0, 1
  %s3 = sld [smem:[%s2]]
  %s4 = scalar_lea.smem %s0, 2
  %s5 = sld [smem:[%s4]]
  %s6 = scalar_lea.smem %s0, 3
  %s7 = sld [smem:[%s6]]
  %s8 = scalar_lea.smem %s0, 4
  %s9 = sld [smem:[%s8]]
  %s10 = scalar_lea.smem %s0, 5
  %s11 = sld [smem:[%s10]]
  %s12 = scalar_lea.smem %s0, 6
  %s13 = sld [smem:[%s12]]
  %s14 = scalar_lea.smem %s0, 7
  %s15 = sld [smem:[%s14]]
  %s16 = scalar_lea.smem %s0, 8
  %s17 = sld [smem:[%s16]]
  %s18 = scalar_lea.smem %s0, 9
  %s19 = sld [smem:[%s18]]
  %s20 = scalar_lea.smem %s0, 10
  %s21 = sld [smem:[%s20]]
  %s22 = scalar_lea.smem %s0, 11
  %s23 = sld [smem:[%s22]]
  %s24 = scalar_lea.smem %s0, 12
  %s25 = sld [smem:[%s24]]
  %s26 = scalar_lea.smem %s0, 13
  %s27 = sld [smem:[%s26]]
  %s28 = scalar_lea.smem %s0, 14
  %s29 = sld [smem:[%s28]]
  %s30 = scalar_lea.smem %s0, 15
  %s31 = sld [smem:[%s30]]
  %s32 = scalar_lea.smem %s0, 16
  %s33 = sld [smem:[%s32]]
  %s34 = scalar_lea.smem %s0, 17
  %s35 = sld [smem:[%s34]]
  %s36 = scalar_lea.smem %s0, 18
  %s37 = sld [smem:[%s36]]
  %s38 = scalar_lea.smem %s0, 19
  %s39 = sld [smem:[%s38]]
  %s40 = scalar_lea.smem %s0, 20
  %s41 = sld [smem:[%s40]]
  %s42 = scalar_lea.smem %s0, 21
  %s43 = sld [smem:[%s42]]
  %s44 = scalar_lea.smem %s0, 22
  %s45 = sld [smem:[%s44]]
  %s46 = scalar_lea.smem %s0, 23
  %s47 = sld [smem:[%s46]]
  %s48 = scalar_lea.smem %s0, 24
  %s49 = sld [smem:[%s48]]
  %s50 = scalar_lea.smem %s0, 25
  %s51 = sld [smem:[%s50]]
  %s52 = scalar_lea.smem %s0, 26
  %s53 = sld [smem:[%s52]]
  %s54 = scalar_lea.smem %s0, 27
  %s55 = sld [smem:[%s54]]
  %s56 = scalar_lea.smem %s0, 28
  %s57 = sld [smem:[%s56]]
  %s58 = scalar_lea.smem %s0, 29
  %s59 = sld [smem:[%s58]]
  %s60 = scalar_lea.smem %s0, 30
  %s61 = sld [smem:[%s60]]
  %s62 = scalar_lea.smem %s0, 31
  %s63 = sld [smem:[%s62]]
  %s64 = scalar_lea.smem %s0, 32
  %s65 = sld [smem:[%s64]]
  %s66 = scalar_lea.smem %s0, 33
  %s67 = sld [smem:[%s66]]
  %s68 = scalar_lea.smem %s0, 34
  %s69 = sld [smem:[%s68]]
  %s70 = scalar_lea.smem %s0, 35
  %s71 = sld [smem:[%s70]]
  %s72 = scalar_lea.smem %s0, 36
  %s73 = sld [smem:[%s72]]
  %s74 = scalar_lea.smem %s0, 37
  %s75 = sld [smem:[%s74]]
  %s76 = scalar_lea.smem %s0, 38
  %s77 = sld [smem:[%s76]]
  %s78 = scalar_lea.smem %s0, 39
  %s79 = sld [smem:[%s78]]
  %s80 = scalar_lea.smem %s0, 40
  %s81 = sld [smem:[%s80]]
  %s82 = scalar_lea.smem %s0, 41
  %s83 = sld [smem:[%s82]]
  %s84 = scalar_lea.smem %s0, 42
  %s85 = sld [smem:[%s84]]
  %s86 = scalar_lea.smem %s0, 43
  %s87 = sld [smem:[%s86]]
  %s88 = scalar_lea.smem %s0, 44
  %s89 = sld [smem:[%s88]]
  %90 = xla_tuple %s85, %s87, %s89
  %s91 = sld [smem:[#allocation0]]
  $region221: #{_lambda_.1} parent=0
    _
  %s93 = ssub.s32 1, %s91
  %s94 = scalar_select 0, %s93, %s91
  loop: start=0, step=1, limit=5
  $region2: #{_lambda_.1} parent=0 // loop_pre_header
    _
  $region3: #{_lambda_.1} parent=0 // loop_header
    %s96 = sphi 0, %s100
    %p97 = scmp.ge.s32.totalorder %s96, 5
    %s103 = sphi 0, %s115
    %s104 = sphi 0, %s111
    %s105 = sphi 0, %s103
    %s106 = sphi 0, %s104
    %s107 = sphi 0, %s105
    %s108 = sphi 0, %s106
    %s120 = sphi 0, %s122
    %s123 = sphi 0, %s120
    %s124 = sphi 0, %s123
    %s140 = sphi 0, %s124
    %s148 = sphi 0, %s150
    %s151 = sphi 0, %s148
    %s152 = sphi 0, %s151
    %s168 = sphi 0, %s152
    %s176 = sphi 0, %s178
    %s179 = sphi 0, %s176
    %s180 = sphi 0, %s179
    %s196 = sphi 0, %s180
    %s204 = sphi 0, %s206
    %s207 = sphi 0, %s204
    %s208 = sphi 0, %s207
    %s224 = sphi 0, %s208
    %s230 = sphi 0, %s232
    %s233 = sphi 0, %s230
    %s234 = sphi 0, %s233
    %s250 = sphi 0, %s234
    %s254 = sphi 0, %s254
    %s256 = sphi 0, %s254
    %s257 = sphi 0, %s256
    %s271 = sphi 0, %s257
    %s275 = sphi 0, %s275
    %s277 = sphi 0, %s275
    %s278 = sphi 0, %s277
    %s292 = sphi 0, %s278
    %s296 = sphi 0, %s296
    %s298 = sphi 0, %s296
    %s299 = sphi 0, %s298
    %s313 = sphi 0, %s299
    %s317 = sphi 0, %s317
    %s319 = sphi 0, %s317
    %s320 = sphi 0, %s319
    %s334 = sphi 0, %s320
    %s338 = sphi 0, %s338
    %s340 = sphi 0, %s338
    %s341 = sphi 0, %s340
    %s355 = sphi 0, %s341
    %s359 = sphi 0, %s359
    %s361 = sphi 0, %s359
    %s362 = sphi 0, %s361
    %s376 = sphi 0, %s362
    %s380 = sphi 0, %s380
    %s382 = sphi 0, %s380
    %s383 = sphi 0, %s382
    %s397 = sphi 0, %s383
    %s401 = sphi 0, %s401
    %s403 = sphi 0, %s401
    %s404 = sphi 0, %s403
    %s418 = sphi 0, %s404
    %s422 = sphi 0, %s422
    %s424 = sphi 0, %s422
    %s425 = sphi 0, %s424
    %s439 = sphi 0, %s425
    %s443 = sphi 0, %s443
    %s445 = sphi 0, %s443
    %s446 = sphi 0, %s445
    %s460 = sphi 0, %s446
    %s464 = sphi 0, %s464
    %s466 = sphi 0, %s464
    %s467 = sphi 0, %s466
    %s481 = sphi 0, %s467
    %s485 = sphi 0, %s485
    %s487 = sphi 0, %s485
    %s488 = sphi 0, %s487
    %s502 = sphi 0, %s488
    %s506 = sphi 0, %s506
    %s508 = sphi 0, %s506
    %s509 = sphi 0, %s508
    %s523 = sphi 0, %s509
    %s527 = sphi 0, %s527
    %s529 = sphi 0, %s527
    %s530 = sphi 0, %s529
    %s544 = sphi 0, %s530
    %s548 = sphi 0, %s548
    %s550 = sphi 0, %s548
    %s551 = sphi 0, %s550
    %s565 = sphi 0, %s551
    %s569 = sphi 0, %s569
    %s571 = sphi 0, %s569
    %s572 = sphi 0, %s571
    %s586 = sphi 0, %s572
    %s590 = sphi 0, %s590
    %s592 = sphi 0, %s590
    %s593 = sphi 0, %s592
    %s607 = sphi 0, %s593
    %s611 = sphi 0, %s611
    %s613 = sphi 0, %s611
    %s614 = sphi 0, %s613
    %s628 = sphi 0, %s614
    %s632 = sphi 0, %s632
    %s634 = sphi 0, %s632
    %s635 = sphi 0, %s634
    %s649 = sphi 0, %s635
    %s653 = sphi 0, %s653
    %s655 = sphi 0, %s653
    %s656 = sphi 0, %s655
    %s670 = sphi 0, %s656
    %s674 = sphi 0, %s674
    %s676 = sphi 0, %s674
    %s677 = sphi 0, %s676
    %s691 = sphi 0, %s677
    %s695 = sphi 0, %s695
    %s697 = sphi 0, %s695
    %s698 = sphi 0, %s697
    %s712 = sphi 0, %s698
    %s716 = sphi 0, %s716
    %s718 = sphi 0, %s716
    %s719 = sphi 0, %s718
    %s733 = sphi 0, %s719
    %s737 = sphi 0, %s737
    %s739 = sphi 0, %s737
    %s740 = sphi 0, %s739
    %s754 = sphi 0, %s740
    %s758 = sphi 0, %s758
    %s760 = sphi 0, %s758
    %s761 = sphi 0, %s760
    %s775 = sphi 0, %s761
    %s779 = sphi 0, %s779
    %s781 = sphi 0, %s779
    %s782 = sphi 0, %s781
    %s796 = sphi 0, %s782
    %s800 = sphi 0, %s800
    %s802 = sphi 0, %s800
    %s803 = sphi 0, %s802
    %s817 = sphi 0, %s803
    %s821 = sphi 0, %s821
    %s823 = sphi 0, %s821
    %s824 = sphi 0, %s823
    %s838 = sphi 0, %s824
    %s842 = sphi 0, %s842
    %s844 = sphi 0, %s842
    %s845 = sphi 0, %s844
    %s859 = sphi 0, %s845
    %s863 = sphi 0, %s863
    %s865 = sphi 0, %s863
    %s866 = sphi 0, %s865
    %s880 = sphi 0, %s866
    %s884 = sphi 0, %s884
    %s886 = sphi 0, %s884
    %s887 = sphi 0, %s886
    %s901 = sphi 0, %s887
    %s905 = sphi 0, %s905
    %s907 = sphi 0, %s905
    %s908 = sphi 0, %s907
    %s922 = sphi 0, %s908
    %s926 = sphi 0, %s926
    %s928 = sphi 0, %s926
    %s929 = sphi 0, %s928
    %s943 = sphi 0, %s929
    %s947 = sphi 0, %s947
    %s949 = sphi 0, %s947
    %s950 = sphi 0, %s949
    %s964 = sphi 0, %s950
    %s968 = sphi 0, %s968
    %s970 = sphi 0, %s968
    %s971 = sphi 0, %s970
    %s985 = sphi 0, %s971
    %s989 = sphi 0, %s989
    %s991 = sphi 0, %s989
    %s992 = sphi 0, %s991
    %s1006 = sphi 0, %s992
    %s1010 = sphi 0, %s1010
    %s1012 = sphi 0, %s1010
    %s1013 = sphi 0, %s1012
    %s1027 = sphi 0, %s1013
    %s1035 = sphi 0, %s1037
    %s1038 = sphi 0, %s1035
    %s1039 = sphi 0, %s1038
    %s1055 = sphi 0, %s1039
    %s1063 = sphi 0, %s1065
    %s1066 = sphi 0, %s1063
    %s1067 = sphi 0, %s1066
    %s1083 = sphi 0, %s1067
    %s1091 = sphi 0, %s1093
    %s1094 = sphi 0, %s1091
    %s1095 = sphi 0, %s1094
    %s1111 = sphi 0, %s1095
  $region4: #{_lambda_.1} parent=0 // loop_header_branch
    %99 = sbr.rel (%p97) target = $region8
  $region5: #{_lambda_.1} parent=0 // loop_body
    %s101 = ssub.s32 %s96, 1
    %s102 = ssub.s32 %s96, 2
    %s109 = sadd.s32 1, %s104
    %p110 = scmp.ge.s32.totalorder %s109, 3
    %s111 = scalar_select %p110, 0, %s109
    %s112 = sadd.s32 1, %s103
    %s113 = scalar_select %p110, %s112, %s103
    %p114 = scmp.ge.s32.totalorder %s113, 1
    %s115 = scalar_select %p114, 0, %s113
    %s116 = ssub.s32 %s103, %s115
    %s117 = ssub.s32 %s104, %s111
    %s118 = sor.u32 %s116, %s117
    %p119 = scmp.eq.s32.totalorder %s118, 0
    %s121 = sadd.s32 %s120, 1
    %s122 = scalar_select %p119, %s120, %s121
    %p125 = pneg %p119
    %p126 = scmp.eq.s32.totalorder %s96, 2
    %p127 = por %p125, %p126
    %p128 = scmp.ne.s32.totalorder %s120, %s123
    %p129 = scmp.eq.s32.totalorder %s96, 0
    %p130 = por %p128, %p129
    %p131 = scmp.ne.s32.totalorder %s120, %s123
    %p132 = scmp.eq.s32.totalorder %s101, 2
    %p133 = por %p131, %p132
    %p134 = scmp.ne.s32.totalorder %s123, %s124
    %p135 = scmp.eq.s32.totalorder %s101, 0
    %p136 = por %p134, %p135
    %p137 = scmp.ne.s32.totalorder %s123, %s124
    %p138 = scmp.eq.s32.totalorder %s102, 2
    %p139 = por %p137, %p138
    %p141 = scmp.ne.s32.totalorder %s124, %s140
    %p142 = scmp.eq.s32.totalorder %s102, 0
    %p143 = por %p141, %p142
    %s144 = ssub.s32 %s103, %s115
    %s145 = ssub.s32 %s104, %s111
    %s146 = sor.u32 %s144, %s145
    %p147 = scmp.eq.s32.totalorder %s146, 0
    %s149 = sadd.s32 %s148, 1
    %s150 = scalar_select %p147, %s148, %s149
    %p153 = pneg %p147
    %p154 = scmp.eq.s32.totalorder %s96, 2
    %p155 = por %p153, %p154
    %p156 = scmp.ne.s32.totalorder %s148, %s151
    %p157 = scmp.eq.s32.totalorder %s96, 0
    %p158 = por %p156, %p157
    %p159 = scmp.ne.s32.totalorder %s148, %s151
    %p160 = scmp.eq.s32.totalorder %s101, 2
    %p161 = por %p159, %p160
    %p162 = scmp.ne.s32.totalorder %s151, %s152
    %p163 = scmp.eq.s32.totalorder %s101, 0
    %p164 = por %p162, %p163
    %p165 = scmp.ne.s32.totalorder %s151, %s152
    %p166 = scmp.eq.s32.totalorder %s102, 2
    %p167 = por %p165, %p166
    %p169 = scmp.ne.s32.totalorder %s152, %s168
    %p170 = scmp.eq.s32.totalorder %s102, 0
    %p171 = por %p169, %p170
    %s172 = ssub.s32 %s103, %s115
    %s173 = ssub.s32 %s104, %s111
    %s174 = sor.u32 %s172, %s173
    %p175 = scmp.eq.s32.totalorder %s174, 0
    %s177 = sadd.s32 %s176, 1
    %s178 = scalar_select %p175, %s176, %s177
    %p181 = pneg %p175
    %p182 = scmp.eq.s32.totalorder %s96, 2
    %p183 = por %p181, %p182
    %p184 = scmp.ne.s32.totalorder %s176, %s179
    %p185 = scmp.eq.s32.totalorder %s96, 0
    %p186 = por %p184, %p185
    %p187 = scmp.ne.s32.totalorder %s176, %s179
    %p188 = scmp.eq.s32.totalorder %s101, 2
    %p189 = por %p187, %p188
    %p190 = scmp.ne.s32.totalorder %s179, %s180
    %p191 = scmp.eq.s32.totalorder %s101, 0
    %p192 = por %p190, %p191
    %p193 = scmp.ne.s32.totalorder %s179, %s180
    %p194 = scmp.eq.s32.totalorder %s102, 2
    %p195 = por %p193, %p194
    %p197 = scmp.ne.s32.totalorder %s180, %s196
    %p198 = scmp.eq.s32.totalorder %s102, 0
    %p199 = por %p197, %p198
    %s200 = ssub.s32 %s103, %s115
    %s201 = ssub.s32 %s104, %s111
    %s202 = sor.u32 %s200, %s201
    %p203 = scmp.eq.s32.totalorder %s202, 0
    %s205 = sadd.s32 %s204, 1
    %s206 = scalar_select %p203, %s204, %s205
    %p209 = pneg %p203
    %p210 = scmp.eq.s32.totalorder %s96, 2
    %p211 = por %p209, %p210
    %p212 = scmp.ne.s32.totalorder %s204, %s207
    %p213 = scmp.eq.s32.totalorder %s96, 0
    %p214 = por %p212, %p213
    %p215 = scmp.ne.s32.totalorder %s204, %s207
    %p216 = scmp.eq.s32.totalorder %s101, 2
    %p217 = por %p215, %p216
    %p218 = scmp.ne.s32.totalorder %s207, %s208
    %p219 = scmp.eq.s32.totalorder %s101, 0
    %p220 = por %p218, %p219
    %p221 = scmp.ne.s32.totalorder %s207, %s208
    %p222 = scmp.eq.s32.totalorder %s102, 2
    %p223 = por %p221, %p222
    %p225 = scmp.ne.s32.totalorder %s208, %s224
    %p226 = scmp.eq.s32.totalorder %s102, 0
    %p227 = por %p225, %p226
    %s228 = ssub.s32 %s103, %s115
    %p229 = scmp.eq.s32.totalorder %s228, 0
    %s231 = sadd.s32 %s230, 1
    %s232 = scalar_select %p229, %s230, %s231
    %p235 = pneg %p229
    %p236 = scmp.eq.s32.totalorder %s96, 2
    %p237 = por %p235, %p236
    %p238 = scmp.ne.s32.totalorder %s230, %s233
    %p239 = scmp.eq.s32.totalorder %s96, 0
    %p240 = por %p238, %p239
    %p241 = scmp.ne.s32.totalorder %s230, %s233
    %p242 = scmp.eq.s32.totalorder %s101, 2
    %p243 = por %p241, %p242
    %p244 = scmp.ne.s32.totalorder %s233, %s234
    %p245 = scmp.eq.s32.totalorder %s101, 0
    %p246 = por %p244, %p245
    %p247 = scmp.ne.s32.totalorder %s233, %s234
    %p248 = scmp.eq.s32.totalorder %s102, 2
    %p249 = por %p247, %p248
    %p251 = scmp.ne.s32.totalorder %s234, %s250
    %p252 = scmp.eq.s32.totalorder %s102, 0
    %p253 = por %p251, %p252
    %s255 = sadd.s32 %s254, 1
    %p258 = scmp.eq.s32.totalorder %s96, 2
    %p259 = scmp.ne.s32.totalorder %s254, %s256
    %p260 = scmp.eq.s32.totalorder %s96, 0
    %p261 = por %p259, %p260
    %p262 = scmp.ne.s32.totalorder %s254, %s256
    %p263 = scmp.eq.s32.totalorder %s101, 2
    %p264 = por %p262, %p263
    %p265 = scmp.ne.s32.totalorder %s256, %s257
    %p266 = scmp.eq.s32.totalorder %s101, 0
    %p267 = por %p265, %p266
    %p268 = scmp.ne.s32.totalorder %s256, %s257
    %p269 = scmp.eq.s32.totalorder %s102, 2
    %p270 = por %p268, %p269
    %p272 = scmp.ne.s32.totalorder %s257, %s271
    %p273 = scmp.eq.s32.totalorder %s102, 0
    %p274 = por %p272, %p273
    %s276 = sadd.s32 %s275, 1
    %p279 = scmp.eq.s32.totalorder %s96, 2
    %p280 = scmp.ne.s32.totalorder %s275, %s277
    %p281 = scmp.eq.s32.totalorder %s96, 0
    %p282 = por %p280, %p281
    %p283 = scmp.ne.s32.totalorder %s275, %s277
    %p284 = scmp.eq.s32.totalorder %s101, 2
    %p285 = por %p283, %p284
    %p286 = scmp.ne.s32.totalorder %s277, %s278
    %p287 = scmp.eq.s32.totalorder %s101, 0
    %p288 = por %p286, %p287
    %p289 = scmp.ne.s32.totalorder %s277, %s278
    %p290 = scmp.eq.s32.totalorder %s102, 2
    %p291 = por %p289, %p290
    %p293 = scmp.ne.s32.totalorder %s278, %s292
    %p294 = scmp.eq.s32.totalorder %s102, 0
    %p295 = por %p293, %p294
    %s297 = sadd.s32 %s296, 1
    %p300 = scmp.eq.s32.totalorder %s96, 2
    %p301 = scmp.ne.s32.totalorder %s296, %s298
    %p302 = scmp.eq.s32.totalorder %s96, 0
    %p303 = por %p301, %p302
    %p304 = scmp.ne.s32.totalorder %s296, %s298
    %p305 = scmp.eq.s32.totalorder %s101, 2
    %p306 = por %p304, %p305
    %p307 = scmp.ne.s32.totalorder %s298, %s299
    %p308 = scmp.eq.s32.totalorder %s101, 0
    %p309 = por %p307, %p308
    %p310 = scmp.ne.s32.totalorder %s298, %s299
    %p311 = scmp.eq.s32.totalorder %s102, 2
    %p312 = por %p310, %p311
    %p314 = scmp.ne.s32.totalorder %s299, %s313
    %p315 = scmp.eq.s32.totalorder %s102, 0
    %p316 = por %p314, %p315
    %s318 = sadd.s32 %s317, 1
    %p321 = scmp.eq.s32.totalorder %s96, 2
    %p322 = scmp.ne.s32.totalorder %s317, %s319
    %p323 = scmp.eq.s32.totalorder %s96, 0
    %p324 = por %p322, %p323
    %p325 = scmp.ne.s32.totalorder %s317, %s319
    %p326 = scmp.eq.s32.totalorder %s101, 2
    %p327 = por %p325, %p326
    %p328 = scmp.ne.s32.totalorder %s319, %s320
    %p329 = scmp.eq.s32.totalorder %s101, 0
    %p330 = por %p328, %p329
    %p331 = scmp.ne.s32.totalorder %s319, %s320
    %p332 = scmp.eq.s32.totalorder %s102, 2
    %p333 = por %p331, %p332
    %p335 = scmp.ne.s32.totalorder %s320, %s334
    %p336 = scmp.eq.s32.totalorder %s102, 0
    %p337 = por %p335, %p336
    %s339 = sadd.s32 %s338, 1
    %p342 = scmp.eq.s32.totalorder %s96, 2
    %p343 = scmp.ne.s32.totalorder %s338, %s340
    %p344 = scmp.eq.s32.totalorder %s96, 0
    %p345 = por %p343, %p344
    %p346 = scmp.ne.s32.totalorder %s338, %s340
    %p347 = scmp.eq.s32.totalorder %s101, 2
    %p348 = por %p346, %p347
    %p349 = scmp.ne.s32.totalorder %s340, %s341
    %p350 = scmp.eq.s32.totalorder %s101, 0
    %p351 = por %p349, %p350
    %p352 = scmp.ne.s32.totalorder %s340, %s341
    %p353 = scmp.eq.s32.totalorder %s102, 2
    %p354 = por %p352, %p353
    %p356 = scmp.ne.s32.totalorder %s341, %s355
    %p357 = scmp.eq.s32.totalorder %s102, 0
    %p358 = por %p356, %p357
    %s360 = sadd.s32 %s359, 1
    %p363 = scmp.eq.s32.totalorder %s96, 2
    %p364 = scmp.ne.s32.totalorder %s359, %s361
    %p365 = scmp.eq.s32.totalorder %s96, 0
    %p366 = por %p364, %p365
    %p367 = scmp.ne.s32.totalorder %s359, %s361
    %p368 = scmp.eq.s32.totalorder %s101, 2
    %p369 = por %p367, %p368
    %p370 = scmp.ne.s32.totalorder %s361, %s362
    %p371 = scmp.eq.s32.totalorder %s101, 0
    %p372 = por %p370, %p371
    %p373 = scmp.ne.s32.totalorder %s361, %s362
    %p374 = scmp.eq.s32.totalorder %s102, 2
    %p375 = por %p373, %p374
    %p377 = scmp.ne.s32.totalorder %s362, %s376
    %p378 = scmp.eq.s32.totalorder %s102, 0
    %p379 = por %p377, %p378
    %s381 = sadd.s32 %s380, 1
    %p384 = scmp.eq.s32.totalorder %s96, 2
    %p385 = scmp.ne.s32.totalorder %s380, %s382
    %p386 = scmp.eq.s32.totalorder %s96, 0
    %p387 = por %p385, %p386
    %p388 = scmp.ne.s32.totalorder %s380, %s382
    %p389 = scmp.eq.s32.totalorder %s101, 2
    %p390 = por %p388, %p389
    %p391 = scmp.ne.s32.totalorder %s382, %s383
    %p392 = scmp.eq.s32.totalorder %s101, 0
    %p393 = por %p391, %p392
    %p394 = scmp.ne.s32.totalorder %s382, %s383
    %p395 = scmp.eq.s32.totalorder %s102, 2
    %p396 = por %p394, %p395
    %p398 = scmp.ne.s32.totalorder %s383, %s397
    %p399 = scmp.eq.s32.totalorder %s102, 0
    %p400 = por %p398, %p399
    %s402 = sadd.s32 %s401, 1
    %p405 = scmp.eq.s32.totalorder %s96, 2
    %p406 = scmp.ne.s32.totalorder %s401, %s403
    %p407 = scmp.eq.s32.totalorder %s96, 0
    %p408 = por %p406, %p407
    %p409 = scmp.ne.s32.totalorder %s401, %s403
    %p410 = scmp.eq.s32.totalorder %s101, 2
    %p411 = por %p409, %p410
    %p412 = scmp.ne.s32.totalorder %s403, %s404
    %p413 = scmp.eq.s32.totalorder %s101, 0
    %p414 = por %p412, %p413
    %p415 = scmp.ne.s32.totalorder %s403, %s404
    %p416 = scmp.eq.s32.totalorder %s102, 2
    %p417 = por %p415, %p416
    %p419 = scmp.ne.s32.totalorder %s404, %s418
    %p420 = scmp.eq.s32.totalorder %s102, 0
    %p421 = por %p419, %p420
    %s423 = sadd.s32 %s422, 1
    %p426 = scmp.eq.s32.totalorder %s96, 2
    %p427 = scmp.ne.s32.totalorder %s422, %s424
    %p428 = scmp.eq.s32.totalorder %s96, 0
    %p429 = por %p427, %p428
    %p430 = scmp.ne.s32.totalorder %s422, %s424
    %p431 = scmp.eq.s32.totalorder %s101, 2
    %p432 = por %p430, %p431
    %p433 = scmp.ne.s32.totalorder %s424, %s425
    %p434 = scmp.eq.s32.totalorder %s101, 0
    %p435 = por %p433, %p434
    %p436 = scmp.ne.s32.totalorder %s424, %s425
    %p437 = scmp.eq.s32.totalorder %s102, 2
    %p438 = por %p436, %p437
    %p440 = scmp.ne.s32.totalorder %s425, %s439
    %p441 = scmp.eq.s32.totalorder %s102, 0
    %p442 = por %p440, %p441
    %s444 = sadd.s32 %s443, 1
    %p447 = scmp.eq.s32.totalorder %s96, 2
    %p448 = scmp.ne.s32.totalorder %s443, %s445
    %p449 = scmp.eq.s32.totalorder %s96, 0
    %p450 = por %p448, %p449
    %p451 = scmp.ne.s32.totalorder %s443, %s445
    %p452 = scmp.eq.s32.totalorder %s101, 2
    %p453 = por %p451, %p452
    %p454 = scmp.ne.s32.totalorder %s445, %s446
    %p455 = scmp.eq.s32.totalorder %s101, 0
    %p456 = por %p454, %p455
    %p457 = scmp.ne.s32.totalorder %s445, %s446
    %p458 = scmp.eq.s32.totalorder %s102, 2
    %p459 = por %p457, %p458
    %p461 = scmp.ne.s32.totalorder %s446, %s460
    %p462 = scmp.eq.s32.totalorder %s102, 0
    %p463 = por %p461, %p462
    %s465 = sadd.s32 %s464, 1
    %p468 = scmp.eq.s32.totalorder %s96, 2
    %p469 = scmp.ne.s32.totalorder %s464, %s466
    %p470 = scmp.eq.s32.totalorder %s96, 0
    %p471 = por %p469, %p470
    %p472 = scmp.ne.s32.totalorder %s464, %s466
    %p473 = scmp.eq.s32.totalorder %s101, 2
    %p474 = por %p472, %p473
    %p475 = scmp.ne.s32.totalorder %s466, %s467
    %p476 = scmp.eq.s32.totalorder %s101, 0
    %p477 = por %p475, %p476
    %p478 = scmp.ne.s32.totalorder %s466, %s467
    %p479 = scmp.eq.s32.totalorder %s102, 2
    %p480 = por %p478, %p479
    %p482 = scmp.ne.s32.totalorder %s467, %s481
    %p483 = scmp.eq.s32.totalorder %s102, 0
    %p484 = por %p482, %p483
    %s486 = sadd.s32 %s485, 1
    %p489 = scmp.eq.s32.totalorder %s96, 2
    %p490 = scmp.ne.s32.totalorder %s485, %s487
    %p491 = scmp.eq.s32.totalorder %s96, 0
    %p492 = por %p490, %p491
    %p493 = scmp.ne.s32.totalorder %s485, %s487
    %p494 = scmp.eq.s32.totalorder %s101, 2
    %p495 = por %p493, %p494
    %p496 = scmp.ne.s32.totalorder %s487, %s488
    %p497 = scmp.eq.s32.totalorder %s101, 0
    %p498 = por %p496, %p497
    %p499 = scmp.ne.s32.totalorder %s487, %s488
    %p500 = scmp.eq.s32.totalorder %s102, 2
    %p501 = por %p499, %p500
    %p503 = scmp.ne.s32.totalorder %s488, %s502
    %p504 = scmp.eq.s32.totalorder %s102, 0
    %p505 = por %p503, %p504
    %s507 = sadd.s32 %s506, 1
    %p510 = scmp.eq.s32.totalorder %s96, 2
    %p511 = scmp.ne.s32.totalorder %s506, %s508
    %p512 = scmp.eq.s32.totalorder %s96, 0
    %p513 = por %p511, %p512
    %p514 = scmp.ne.s32.totalorder %s506, %s508
    %p515 = scmp.eq.s32.totalorder %s101, 2
    %p516 = por %p514, %p515
    %p517 = scmp.ne.s32.totalorder %s508, %s509
    %p518 = scmp.eq.s32.totalorder %s101, 0
    %p519 = por %p517, %p518
    %p520 = scmp.ne.s32.totalorder %s508, %s509
    %p521 = scmp.eq.s32.totalorder %s102, 2
    %p522 = por %p520, %p521
    %p524 = scmp.ne.s32.totalorder %s509, %s523
    %p525 = scmp.eq.s32.totalorder %s102, 0
    %p526 = por %p524, %p525
    %s528 = sadd.s32 %s527, 1
    %p531 = scmp.eq.s32.totalorder %s96, 2
    %p532 = scmp.ne.s32.totalorder %s527, %s529
    %p533 = scmp.eq.s32.totalorder %s96, 0
    %p534 = por %p532, %p533
    %p535 = scmp.ne.s32.totalorder %s527, %s529
    %p536 = scmp.eq.s32.totalorder %s101, 2
    %p537 = por %p535, %p536
    %p538 = scmp.ne.s32.totalorder %s529, %s530
    %p539 = scmp.eq.s32.totalorder %s101, 0
    %p540 = por %p538, %p539
    %p541 = scmp.ne.s32.totalorder %s529, %s530
    %p542 = scmp.eq.s32.totalorder %s102, 2
    %p543 = por %p541, %p542
    %p545 = scmp.ne.s32.totalorder %s530, %s544
    %p546 = scmp.eq.s32.totalorder %s102, 0
    %p547 = por %p545, %p546
    %s549 = sadd.s32 %s548, 1
    %p552 = scmp.eq.s32.totalorder %s96, 2
    %p553 = scmp.ne.s32.totalorder %s548, %s550
    %p554 = scmp.eq.s32.totalorder %s96, 0
    %p555 = por %p553, %p554
    %p556 = scmp.ne.s32.totalorder %s548, %s550
    %p557 = scmp.eq.s32.totalorder %s101, 2
    %p558 = por %p556, %p557
    %p559 = scmp.ne.s32.totalorder %s550, %s551
    %p560 = scmp.eq.s32.totalorder %s101, 0
    %p561 = por %p559, %p560
    %p562 = scmp.ne.s32.totalorder %s550, %s551
    %p563 = scmp.eq.s32.totalorder %s102, 2
    %p564 = por %p562, %p563
    %p566 = scmp.ne.s32.totalorder %s551, %s565
    %p567 = scmp.eq.s32.totalorder %s102, 0
    %p568 = por %p566, %p567
    %s570 = sadd.s32 %s569, 1
    %p573 = scmp.eq.s32.totalorder %s96, 2
    %p574 = scmp.ne.s32.totalorder %s569, %s571
    %p575 = scmp.eq.s32.totalorder %s96, 0
    %p576 = por %p574, %p575
    %p577 = scmp.ne.s32.totalorder %s569, %s571
    %p578 = scmp.eq.s32.totalorder %s101, 2
    %p579 = por %p577, %p578
    %p580 = scmp.ne.s32.totalorder %s571, %s572
    %p581 = scmp.eq.s32.totalorder %s101, 0
    %p582 = por %p580, %p581
    %p583 = scmp.ne.s32.totalorder %s571, %s572
    %p584 = scmp.eq.s32.totalorder %s102, 2
    %p585 = por %p583, %p584
    %p587 = scmp.ne.s32.totalorder %s572, %s586
    %p588 = scmp.eq.s32.totalorder %s102, 0
    %p589 = por %p587, %p588
    %s591 = sadd.s32 %s590, 1
    %p594 = scmp.eq.s32.totalorder %s96, 2
    %p595 = scmp.ne.s32.totalorder %s590, %s592
    %p596 = scmp.eq.s32.totalorder %s96, 0
    %p597 = por %p595, %p596
    %p598 = scmp.ne.s32.totalorder %s590, %s592
    %p599 = scmp.eq.s32.totalorder %s101, 2
    %p600 = por %p598, %p599
    %p601 = scmp.ne.s32.totalorder %s592, %s593
    %p602 = scmp.eq.s32.totalorder %s101, 0
    %p603 = por %p601, %p602
    %p604 = scmp.ne.s32.totalorder %s592, %s593
    %p605 = scmp.eq.s32.totalorder %s102, 2
    %p606 = por %p604, %p605
    %p608 = scmp.ne.s32.totalorder %s593, %s607
    %p609 = scmp.eq.s32.totalorder %s102, 0
    %p610 = por %p608, %p609
    %s612 = sadd.s32 %s611, 1
    %p615 = scmp.eq.s32.totalorder %s96, 2
    %p616 = scmp.ne.s32.totalorder %s611, %s613
    %p617 = scmp.eq.s32.totalorder %s96, 0
    %p618 = por %p616, %p617
    %p619 = scmp.ne.s32.totalorder %s611, %s613
    %p620 = scmp.eq.s32.totalorder %s101, 2
    %p621 = por %p619, %p620
    %p622 = scmp.ne.s32.totalorder %s613, %s614
    %p623 = scmp.eq.s32.totalorder %s101, 0
    %p624 = por %p622, %p623
    %p625 = scmp.ne.s32.totalorder %s613, %s614
    %p626 = scmp.eq.s32.totalorder %s102, 2
    %p627 = por %p625, %p626
    %p629 = scmp.ne.s32.totalorder %s614, %s628
    %p630 = scmp.eq.s32.totalorder %s102, 0
    %p631 = por %p629, %p630
    %s633 = sadd.s32 %s632, 1
    %p636 = scmp.eq.s32.totalorder %s96, 2
    %p637 = scmp.ne.s32.totalorder %s632, %s634
    %p638 = scmp.eq.s32.totalorder %s96, 0
    %p639 = por %p637, %p638
    %p640 = scmp.ne.s32.totalorder %s632, %s634
    %p641 = scmp.eq.s32.totalorder %s101, 2
    %p642 = por %p640, %p641
    %p643 = scmp.ne.s32.totalorder %s634, %s635
    %p644 = scmp.eq.s32.totalorder %s101, 0
    %p645 = por %p643, %p644
    %p646 = scmp.ne.s32.totalorder %s634, %s635
    %p647 = scmp.eq.s32.totalorder %s102, 2
    %p648 = por %p646, %p647
    %p650 = scmp.ne.s32.totalorder %s635, %s649
    %p651 = scmp.eq.s32.totalorder %s102, 0
    %p652 = por %p650, %p651
    %s654 = sadd.s32 %s653, 1
    %p657 = scmp.eq.s32.totalorder %s96, 2
    %p658 = scmp.ne.s32.totalorder %s653, %s655
    %p659 = scmp.eq.s32.totalorder %s96, 0
    %p660 = por %p658, %p659
    %p661 = scmp.ne.s32.totalorder %s653, %s655
    %p662 = scmp.eq.s32.totalorder %s101, 2
    %p663 = por %p661, %p662
    %p664 = scmp.ne.s32.totalorder %s655, %s656
    %p665 = scmp.eq.s32.totalorder %s101, 0
    %p666 = por %p664, %p665
    %p667 = scmp.ne.s32.totalorder %s655, %s656
    %p668 = scmp.eq.s32.totalorder %s102, 2
    %p669 = por %p667, %p668
    %p671 = scmp.ne.s32.totalorder %s656, %s670
    %p672 = scmp.eq.s32.totalorder %s102, 0
    %p673 = por %p671, %p672
    %s675 = sadd.s32 %s674, 1
    %p678 = scmp.eq.s32.totalorder %s96, 2
    %p679 = scmp.ne.s32.totalorder %s674, %s676
    %p680 = scmp.eq.s32.totalorder %s96, 0
    %p681 = por %p679, %p680
    %p682 = scmp.ne.s32.totalorder %s674, %s676
    %p683 = scmp.eq.s32.totalorder %s101, 2
    %p684 = por %p682, %p683
    %p685 = scmp.ne.s32.totalorder %s676, %s677
    %p686 = scmp.eq.s32.totalorder %s101, 0
    %p687 = por %p685, %p686
    %p688 = scmp.ne.s32.totalorder %s676, %s677
    %p689 = scmp.eq.s32.totalorder %s102, 2
    %p690 = por %p688, %p689
    %p692 = scmp.ne.s32.totalorder %s677, %s691
    %p693 = scmp.eq.s32.totalorder %s102, 0
    %p694 = por %p692, %p693
    %s696 = sadd.s32 %s695, 1
    %p699 = scmp.eq.s32.totalorder %s96, 2
    %p700 = scmp.ne.s32.totalorder %s695, %s697
    %p701 = scmp.eq.s32.totalorder %s96, 0
    %p702 = por %p700, %p701
    %p703 = scmp.ne.s32.totalorder %s695, %s697
    %p704 = scmp.eq.s32.totalorder %s101, 2
    %p705 = por %p703, %p704
    %p706 = scmp.ne.s32.totalorder %s697, %s698
    %p707 = scmp.eq.s32.totalorder %s101, 0
    %p708 = por %p706, %p707
    %p709 = scmp.ne.s32.totalorder %s697, %s698
    %p710 = scmp.eq.s32.totalorder %s102, 2
    %p711 = por %p709, %p710
    %p713 = scmp.ne.s32.totalorder %s698, %s712
    %p714 = scmp.eq.s32.totalorder %s102, 0
    %p715 = por %p713, %p714
    %s717 = sadd.s32 %s716, 1
    %p720 = scmp.eq.s32.totalorder %s96, 2
    %p721 = scmp.ne.s32.totalorder %s716, %s718
    %p722 = scmp.eq.s32.totalorder %s96, 0
    %p723 = por %p721, %p722
    %p724 = scmp.ne.s32.totalorder %s716, %s718
    %p725 = scmp.eq.s32.totalorder %s101, 2
    %p726 = por %p724, %p725
    %p727 = scmp.ne.s32.totalorder %s718, %s719
    %p728 = scmp.eq.s32.totalorder %s101, 0
    %p729 = por %p727, %p728
    %p730 = scmp.ne.s32.totalorder %s718, %s719
    %p731 = scmp.eq.s32.totalorder %s102, 2
    %p732 = por %p730, %p731
    %p734 = scmp.ne.s32.totalorder %s719, %s733
    %p735 = scmp.eq.s32.totalorder %s102, 0
    %p736 = por %p734, %p735
    %s738 = sadd.s32 %s737, 1
    %p741 = scmp.eq.s32.totalorder %s96, 2
    %p742 = scmp.ne.s32.totalorder %s737, %s739
    %p743 = scmp.eq.s32.totalorder %s96, 0
    %p744 = por %p742, %p743
    %p745 = scmp.ne.s32.totalorder %s737, %s739
    %p746 = scmp.eq.s32.totalorder %s101, 2
    %p747 = por %p745, %p746
    %p748 = scmp.ne.s32.totalorder %s739, %s740
    %p749 = scmp.eq.s32.totalorder %s101, 0
    %p750 = por %p748, %p749
    %p751 = scmp.ne.s32.totalorder %s739, %s740
    %p752 = scmp.eq.s32.totalorder %s102, 2
    %p753 = por %p751, %p752
    %p755 = scmp.ne.s32.totalorder %s740, %s754
    %p756 = scmp.eq.s32.totalorder %s102, 0
    %p757 = por %p755, %p756
    %s759 = sadd.s32 %s758, 1
    %p762 = scmp.eq.s32.totalorder %s96, 2
    %p763 = scmp.ne.s32.totalorder %s758, %s760
    %p764 = scmp.eq.s32.totalorder %s96, 0
    %p765 = por %p763, %p764
    %p766 = scmp.ne.s32.totalorder %s758, %s760
    %p767 = scmp.eq.s32.totalorder %s101, 2
    %p768 = por %p766, %p767
    %p769 = scmp.ne.s32.totalorder %s760, %s761
    %p770 = scmp.eq.s32.totalorder %s101, 0
    %p771 = por %p769, %p770
    %p772 = scmp.ne.s32.totalorder %s760, %s761
    %p773 = scmp.eq.s32.totalorder %s102, 2
    %p774 = por %p772, %p773
    %p776 = scmp.ne.s32.totalorder %s761, %s775
    %p777 = scmp.eq.s32.totalorder %s102, 0
    %p778 = por %p776, %p777
    %s780 = sadd.s32 %s779, 1
    %p783 = scmp.eq.s32.totalorder %s96, 2
    %p784 = scmp.ne.s32.totalorder %s779, %s781
    %p785 = scmp.eq.s32.totalorder %s96, 0
    %p786 = por %p784, %p785
    %p787 = scmp.ne.s32.totalorder %s779, %s781
    %p788 = scmp.eq.s32.totalorder %s101, 2
    %p789 = por %p787, %p788
    %p790 = scmp.ne.s32.totalorder %s781, %s782
    %p791 = scmp.eq.s32.totalorder %s101, 0
    %p792 = por %p790, %p791
    %p793 = scmp.ne.s32.totalorder %s781, %s782
    %p794 = scmp.eq.s32.totalorder %s102, 2
    %p795 = por %p793, %p794
    %p797 = scmp.ne.s32.totalorder %s782, %s796
    %p798 = scmp.eq.s32.totalorder %s102, 0
    %p799 = por %p797, %p798
    %s801 = sadd.s32 %s800, 1
    %p804 = scmp.eq.s32.totalorder %s96, 2
    %p805 = scmp.ne.s32.totalorder %s800, %s802
    %p806 = scmp.eq.s32.totalorder %s96, 0
    %p807 = por %p805, %p806
    %p808 = scmp.ne.s32.totalorder %s800, %s802
    %p809 = scmp.eq.s32.totalorder %s101, 2
    %p810 = por %p808, %p809
    %p811 = scmp.ne.s32.totalorder %s802, %s803
    %p812 = scmp.eq.s32.totalorder %s101, 0
    %p813 = por %p811, %p812
    %p814 = scmp.ne.s32.totalorder %s802, %s803
    %p815 = scmp.eq.s32.totalorder %s102, 2
    %p816 = por %p814, %p815
    %p818 = scmp.ne.s32.totalorder %s803, %s817
    %p819 = scmp.eq.s32.totalorder %s102, 0
    %p820 = por %p818, %p819
    %s822 = sadd.s32 %s821, 1
    %p825 = scmp.eq.s32.totalorder %s96, 2
    %p826 = scmp.ne.s32.totalorder %s821, %s823
    %p827 = scmp.eq.s32.totalorder %s96, 0
    %p828 = por %p826, %p827
    %p829 = scmp.ne.s32.totalorder %s821, %s823
    %p830 = scmp.eq.s32.totalorder %s101, 2
    %p831 = por %p829, %p830
    %p832 = scmp.ne.s32.totalorder %s823, %s824
    %p833 = scmp.eq.s32.totalorder %s101, 0
    %p834 = por %p832, %p833
    %p835 = scmp.ne.s32.totalorder %s823, %s824
    %p836 = scmp.eq.s32.totalorder %s102, 2
    %p837 = por %p835, %p836
    %p839 = scmp.ne.s32.totalorder %s824, %s838
    %p840 = scmp.eq.s32.totalorder %s102, 0
    %p841 = por %p839, %p840
    %s843 = sadd.s32 %s842, 1
    %p846 = scmp.eq.s32.totalorder %s96, 2
    %p847 = scmp.ne.s32.totalorder %s842, %s844
    %p848 = scmp.eq.s32.totalorder %s96, 0
    %p849 = por %p847, %p848
    %p850 = scmp.ne.s32.totalorder %s842, %s844
    %p851 = scmp.eq.s32.totalorder %s101, 2
    %p852 = por %p850, %p851
    %p853 = scmp.ne.s32.totalorder %s844, %s845
    %p854 = scmp.eq.s32.totalorder %s101, 0
    %p855 = por %p853, %p854
    %p856 = scmp.ne.s32.totalorder %s844, %s845
    %p857 = scmp.eq.s32.totalorder %s102, 2
    %p858 = por %p856, %p857
    %p860 = scmp.ne.s32.totalorder %s845, %s859
    %p861 = scmp.eq.s32.totalorder %s102, 0
    %p862 = por %p860, %p861
    %s864 = sadd.s32 %s863, 1
    %p867 = scmp.eq.s32.totalorder %s96, 2
    %p868 = scmp.ne.s32.totalorder %s863, %s865
    %p869 = scmp.eq.s32.totalorder %s96, 0
    %p870 = por %p868, %p869
    %p871 = scmp.ne.s32.totalorder %s863, %s865
    %p872 = scmp.eq.s32.totalorder %s101, 2
    %p873 = por %p871, %p872
    %p874 = scmp.ne.s32.totalorder %s865, %s866
    %p875 = scmp.eq.s32.totalorder %s101, 0
    %p876 = por %p874, %p875
    %p877 = scmp.ne.s32.totalorder %s865, %s866
    %p878 = scmp.eq.s32.totalorder %s102, 2
    %p879 = por %p877, %p878
    %p881 = scmp.ne.s32.totalorder %s866, %s880
    %p882 = scmp.eq.s32.totalorder %s102, 0
    %p883 = por %p881, %p882
    %s885 = sadd.s32 %s884, 1
    %p888 = scmp.eq.s32.totalorder %s96, 2
    %p889 = scmp.ne.s32.totalorder %s884, %s886
    %p890 = scmp.eq.s32.totalorder %s96, 0
    %p891 = por %p889, %p890
    %p892 = scmp.ne.s32.totalorder %s884, %s886
    %p893 = scmp.eq.s32.totalorder %s101, 2
    %p894 = por %p892, %p893
    %p895 = scmp.ne.s32.totalorder %s886, %s887
    %p896 = scmp.eq.s32.totalorder %s101, 0
    %p897 = por %p895, %p896
    %p898 = scmp.ne.s32.totalorder %s886, %s887
    %p899 = scmp.eq.s32.totalorder %s102, 2
    %p900 = por %p898, %p899
    %p902 = scmp.ne.s32.totalorder %s887, %s901
    %p903 = scmp.eq.s32.totalorder %s102, 0
    %p904 = por %p902, %p903
    %s906 = sadd.s32 %s905, 1
    %p909 = scmp.eq.s32.totalorder %s96, 2
    %p910 = scmp.ne.s32.totalorder %s905, %s907
    %p911 = scmp.eq.s32.totalorder %s96, 0
    %p912 = por %p910, %p911
    %p913 = scmp.ne.s32.totalorder %s905, %s907
    %p914 = scmp.eq.s32.totalorder %s101, 2
    %p915 = por %p913, %p914
    %p916 = scmp.ne.s32.totalorder %s907, %s908
    %p917 = scmp.eq.s32.totalorder %s101, 0
    %p918 = por %p916, %p917
    %p919 = scmp.ne.s32.totalorder %s907, %s908
    %p920 = scmp.eq.s32.totalorder %s102, 2
    %p921 = por %p919, %p920
    %p923 = scmp.ne.s32.totalorder %s908, %s922
    %p924 = scmp.eq.s32.totalorder %s102, 0
    %p925 = por %p923, %p924
    %s927 = sadd.s32 %s926, 1
    %p930 = scmp.eq.s32.totalorder %s96, 2
    %p931 = scmp.ne.s32.totalorder %s926, %s928
    %p932 = scmp.eq.s32.totalorder %s96, 0
    %p933 = por %p931, %p932
    %p934 = scmp.ne.s32.totalorder %s926, %s928
    %p935 = scmp.eq.s32.totalorder %s101, 2
    %p936 = por %p934, %p935
    %p937 = scmp.ne.s32.totalorder %s928, %s929
    %p938 = scmp.eq.s32.totalorder %s101, 0
    %p939 = por %p937, %p938
    %p940 = scmp.ne.s32.totalorder %s928, %s929
    %p941 = scmp.eq.s32.totalorder %s102, 2
    %p942 = por %p940, %p941
    %p944 = scmp.ne.s32.totalorder %s929, %s943
    %p945 = scmp.eq.s32.totalorder %s102, 0
    %p946 = por %p944, %p945
    %s948 = sadd.s32 %s947, 1
    %p951 = scmp.eq.s32.totalorder %s96, 2
    %p952 = scmp.ne.s32.totalorder %s947, %s949
    %p953 = scmp.eq.s32.totalorder %s96, 0
    %p954 = por %p952, %p953
    %p955 = scmp.ne.s32.totalorder %s947, %s949
    %p956 = scmp.eq.s32.totalorder %s101, 2
    %p957 = por %p955, %p956
    %p958 = scmp.ne.s32.totalorder %s949, %s950
    %p959 = scmp.eq.s32.totalorder %s101, 0
    %p960 = por %p958, %p959
    %p961 = scmp.ne.s32.totalorder %s949, %s950
    %p962 = scmp.eq.s32.totalorder %s102, 2
    %p963 = por %p961, %p962
    %p965 = scmp.ne.s32.totalorder %s950, %s964
    %p966 = scmp.eq.s32.totalorder %s102, 0
    %p967 = por %p965, %p966
    %s969 = sadd.s32 %s968, 1
    %p972 = scmp.eq.s32.totalorder %s96, 2
    %p973 = scmp.ne.s32.totalorder %s968, %s970
    %p974 = scmp.eq.s32.totalorder %s96, 0
    %p975 = por %p973, %p974
    %p976 = scmp.ne.s32.totalorder %s968, %s970
    %p977 = scmp.eq.s32.totalorder %s101, 2
    %p978 = por %p976, %p977
    %p979 = scmp.ne.s32.totalorder %s970, %s971
    %p980 = scmp.eq.s32.totalorder %s101, 0
    %p981 = por %p979, %p980
    %p982 = scmp.ne.s32.totalorder %s970, %s971
    %p983 = scmp.eq.s32.totalorder %s102, 2
    %p984 = por %p982, %p983
    %p986 = scmp.ne.s32.totalorder %s971, %s985
    %p987 = scmp.eq.s32.totalorder %s102, 0
    %p988 = por %p986, %p987
    %s990 = sadd.s32 %s989, 1
    %p993 = scmp.eq.s32.totalorder %s96, 2
    %p994 = scmp.ne.s32.totalorder %s989, %s991
    %p995 = scmp.eq.s32.totalorder %s96, 0
    %p996 = por %p994, %p995
    %p997 = scmp.ne.s32.totalorder %s989, %s991
    %p998 = scmp.eq.s32.totalorder %s101, 2
    %p999 = por %p997, %p998
    %p1000 = scmp.ne.s32.totalorder %s991, %s992
    %p1001 = scmp.eq.s32.totalorder %s101, 0
    %p1002 = por %p1000, %p1001
    %p1003 = scmp.ne.s32.totalorder %s991, %s992
    %p1004 = scmp.eq.s32.totalorder %s102, 2
    %p1005 = por %p1003, %p1004
    %p1007 = scmp.ne.s32.totalorder %s992, %s1006
    %p1008 = scmp.eq.s32.totalorder %s102, 0
    %p1009 = por %p1007, %p1008
    %s1011 = sadd.s32 %s1010, 1
    %p1014 = scmp.eq.s32.totalorder %s96, 2
    %p1015 = scmp.ne.s32.totalorder %s1010, %s1012
    %p1016 = scmp.eq.s32.totalorder %s96, 0
    %p1017 = por %p1015, %p1016
    %p1018 = scmp.ne.s32.totalorder %s1010, %s1012
    %p1019 = scmp.eq.s32.totalorder %s101, 2
    %p1020 = por %p1018, %p1019
    %p1021 = scmp.ne.s32.totalorder %s1012, %s1013
    %p1022 = scmp.eq.s32.totalorder %s101, 0
    %p1023 = por %p1021, %p1022
    %p1024 = scmp.ne.s32.totalorder %s1012, %s1013
    %p1025 = scmp.eq.s32.totalorder %s102, 2
    %p1026 = por %p1024, %p1025
    %p1028 = scmp.ne.s32.totalorder %s1013, %s1027
    %p1029 = scmp.eq.s32.totalorder %s102, 0
    %p1030 = por %p1028, %p1029
    %s1031 = ssub.s32 %s103, %s115
    %s1032 = ssub.s32 %s104, %s111
    %s1033 = sor.u32 %s1031, %s1032
    %p1034 = scmp.eq.s32.totalorder %s1033, 0
    %s1036 = sadd.s32 %s1035, 1
    %s1037 = scalar_select %p1034, %s1035, %s1036
    %p1040 = pneg %p1034
    %p1041 = scmp.eq.s32.totalorder %s96, 2
    %p1042 = por %p1040, %p1041
    %p1043 = scmp.ne.s32.totalorder %s1035, %s1038
    %p1044 = scmp.eq.s32.totalorder %s96, 0
    %p1045 = por %p1043, %p1044
    %p1046 = scmp.ne.s32.totalorder %s1035, %s1038
    %p1047 = scmp.eq.s32.totalorder %s101, 2
    %p1048 = por %p1046, %p1047
    %p1049 = scmp.ne.s32.totalorder %s1038, %s1039
    %p1050 = scmp.eq.s32.totalorder %s101, 0
    %p1051 = por %p1049, %p1050
    %p1052 = scmp.ne.s32.totalorder %s1038, %s1039
    %p1053 = scmp.eq.s32.totalorder %s102, 2
    %p1054 = por %p1052, %p1053
    %p1056 = scmp.ne.s32.totalorder %s1039, %s1055
    %p1057 = scmp.eq.s32.totalorder %s102, 0
    %p1058 = por %p1056, %p1057
    %s1059 = ssub.s32 %s103, %s115
    %s1060 = ssub.s32 %s104, %s111
    %s1061 = sor.u32 %s1059, %s1060
    %p1062 = scmp.eq.s32.totalorder %s1061, 0
    %s1064 = sadd.s32 %s1063, 1
    %s1065 = scalar_select %p1062, %s1063, %s1064
    %p1068 = pneg %p1062
    %p1069 = scmp.eq.s32.totalorder %s96, 2
    %p1070 = por %p1068, %p1069
    %p1071 = scmp.ne.s32.totalorder %s1063, %s1066
    %p1072 = scmp.eq.s32.totalorder %s96, 0
    %p1073 = por %p1071, %p1072
    %p1074 = scmp.ne.s32.totalorder %s1063, %s1066
    %p1075 = scmp.eq.s32.totalorder %s101, 2
    %p1076 = por %p1074, %p1075
    %p1077 = scmp.ne.s32.totalorder %s1066, %s1067
    %p1078 = scmp.eq.s32.totalorder %s101, 0
    %p1079 = por %p1077, %p1078
    %p1080 = scmp.ne.s32.totalorder %s1066, %s1067
    %p1081 = scmp.eq.s32.totalorder %s102, 2
    %p1082 = por %p1080, %p1081
    %p1084 = scmp.ne.s32.totalorder %s1067, %s1083
    %p1085 = scmp.eq.s32.totalorder %s102, 0
    %p1086 = por %p1084, %p1085
    %s1087 = ssub.s32 %s103, %s115
    %s1088 = ssub.s32 %s104, %s111
    %s1089 = sor.u32 %s1087, %s1088
    %p1090 = scmp.eq.s32.totalorder %s1089, 0
    %s1092 = sadd.s32 %s1091, 1
    %s1093 = scalar_select %p1090, %s1091, %s1092
    %p1096 = pneg %p1090
    %p1097 = scmp.eq.s32.totalorder %s96, 2
    %p1098 = por %p1096, %p1097
    %p1099 = scmp.ne.s32.totalorder %s1091, %s1094
    %p1100 = scmp.eq.s32.totalorder %s96, 0
    %p1101 = por %p1099, %p1100
    %p1102 = scmp.ne.s32.totalorder %s1091, %s1094
    %p1103 = scmp.eq.s32.totalorder %s101, 2
    %p1104 = por %p1102, %p1103
    %p1105 = scmp.ne.s32.totalorder %s1094, %s1095
    %p1106 = scmp.eq.s32.totalorder %s101, 0
    %p1107 = por %p1105, %p1106
    %p1108 = scmp.ne.s32.totalorder %s1094, %s1095
    %p1109 = scmp.eq.s32.totalorder %s102, 2
    %p1110 = por %p1108, %p1109
    %p1112 = scmp.ne.s32.totalorder %s1095, %s1111
    %p1113 = scmp.eq.s32.totalorder %s102, 0
    %p1114 = por %p1112, %p1113
    %p1115 = scmp.le.s32.totalorder 1, %s96
    %p1116 = scmp.lt.s32.totalorder %s96, 4
    %p1117 = pnand %p1115, %p1116
    %p1118 = pneg %p1117
    // Predicated region
    $region9: #{_lambda_.1} parent=5 // pred_check
      _
    $region10: #{_lambda_.1} parent=5 // pred_check_branch
      %1120 = sbr.rel (%p1117) target = $region12
    $region11: #{_lambda_.1} parent=5 // pred_region
      %s1121 = ssub.s32 %s96, 1
      // Predicated region
      $region13: #{_lambda_.1} parent=11 // pred_check
        %p1122 = pneg %p246
      $region14: #{_lambda_.1} parent=11 // pred_check_branch
        %1124 = sbr.rel (%p1122) target = $region16
      $region15: #{_lambda_.1} parent=11 // pred_region
        %p1125 = scmp.lt.s32.totalorder %s105, 0
        %s1126 = scalar_select %p1125, %s105, 0
        %s1127 = smul.addr %s1126, 8
        %s1128 = scalar_lea.vmem %s9, %s1127
      $region16: #{_lambda_.1} parent=11 // pred_fallthru
        _
      // Predicated region
      $region17: #{_lambda_.1} parent=11 // pred_check
        %p1129 = pneg %p267
      $region18: #{_lambda_.1} parent=11 // pred_check_branch
        %1131 = sbr.rel (%p1129) target = $region20
      $region19: #{_lambda_.1} parent=11 // pred_region
        _
      $region20: #{_lambda_.1} parent=11 // pred_fallthru
        _
      // Predicated region
      $region21: #{_lambda_.1} parent=11 // pred_check
        %p1132 = pneg %p288
      $region22: #{_lambda_.1} parent=11 // pred_check_branch
        %1134 = sbr.rel (%p1132) target = $region24
      $region23: #{_lambda_.1} parent=11 // pred_region
        _
      $region24: #{_lambda_.1} parent=11 // pred_fallthru
        _
      // Predicated region
      $region25: #{_lambda_.1} parent=11 // pred_check
        %p1135 = pneg %p309
      $region26: #{_lambda_.1} parent=11 // pred_check_branch
        %1137 = sbr.rel (%p1135) target = $region28
      $region27: #{_lambda_.1} parent=11 // pred_region
        _
      $region28: #{_lambda_.1} parent=11 // pred_fallthru
        _
      // Predicated region
      $region29: #{_lambda_.1} parent=11 // pred_check
        %p1138 = pneg %p330
      $region30: #{_lambda_.1} parent=11 // pred_check_branch
        %1140 = sbr.rel (%p1138) target = $region32
      $region31: #{_lambda_.1} parent=11 // pred_region
        _
      $region32: #{_lambda_.1} parent=11 // pred_fallthru
        _
      // Predicated region
      $region33: #{_lambda_.1} parent=11 // pred_check
        %p1141 = pneg %p351
      $region34: #{_lambda_.1} parent=11 // pred_check_branch
        %1143 = sbr.rel (%p1141) target = $region36
      $region35: #{_lambda_.1} parent=11 // pred_region
        _
      $region36: #{_lambda_.1} parent=11 // pred_fallthru
        _
      // Predicated region
      $region37: #{_lambda_.1} parent=11 // pred_check
        %p1144 = pneg %p372
      $region38: #{_lambda_.1} parent=11 // pred_check_branch
        %1146 = sbr.rel (%p1144) target = $region40
      $region39: #{_lambda_.1} parent=11 // pred_region
        _
      $region40: #{_lambda_.1} parent=11 // pred_fallthru
        _
      // Predicated region
      $region41: #{_lambda_.1} parent=11 // pred_check
        %p1147 = pneg %p393
      $region42: #{_lambda_.1} parent=11 // pred_check_branch
        %1149 = sbr.rel (%p1147) target = $region44
      $region43: #{_lambda_.1} parent=11 // pred_region
        _
      $region44: #{_lambda_.1} parent=11 // pred_fallthru
        _
      // Predicated region
      $region45: #{_lambda_.1} parent=11 // pred_check
        %p1150 = pneg %p414
      $region46: #{_lambda_.1} parent=11 // pred_check_branch
        %1152 = sbr.rel (%p1150) target = $region48
      $region47: #{_lambda_.1} parent=11 // pred_region
        _
      $region48: #{_lambda_.1} parent=11 // pred_fallthru
        _
      // Predicated region
      $region49: #{_lambda_.1} parent=11 // pred_check
        %p1153 = pneg %p435
      $region50: #{_lambda_.1} parent=11 // pred_check_branch
        %1155 = sbr.rel (%p1153) target = $region52
      $region51: #{_lambda_.1} parent=11 // pred_region
        _
      $region52: #{_lambda_.1} parent=11 // pred_fallthru
        _
      // Predicated region
      $region53: #{_lambda_.1} parent=11 // pred_check
        %p1156 = pneg %p456
      $region54: #{_lambda_.1} parent=11 // pred_check_branch
        %1158 = sbr.rel (%p1156) target = $region56
      $region55: #{_lambda_.1} parent=11 // pred_region
        _
      $region56: #{_lambda_.1} parent=11 // pred_fallthru
        _
      // Predicated region
      $region57: #{_lambda_.1} parent=11 // pred_check
        %p1159 = pneg %p477
      $region58: #{_lambda_.1} parent=11 // pred_check_branch
        %1161 = sbr.rel (%p1159) target = $region60
      $region59: #{_lambda_.1} parent=11 // pred_region
        _
      $region60: #{_lambda_.1} parent=11 // pred_fallthru
        _
      // Predicated region
      $region61: #{_lambda_.1} parent=11 // pred_check
        %p1162 = pneg %p498
      $region62: #{_lambda_.1} parent=11 // pred_check_branch
        %1164 = sbr.rel (%p1162) target = $region64
      $region63: #{_lambda_.1} parent=11 // pred_region
        _
      $region64: #{_lambda_.1} parent=11 // pred_fallthru
        _
      // Predicated region
      $region65: #{_lambda_.1} parent=11 // pred_check
        %p1165 = pneg %p519
      $region66: #{_lambda_.1} parent=11 // pred_check_branch
        %1167 = sbr.rel (%p1165) target = $region68
      $region67: #{_lambda_.1} parent=11 // pred_region
        _
      $region68: #{_lambda_.1} parent=11 // pred_fallthru
        _
      // Predicated region
      $region69: #{_lambda_.1} parent=11 // pred_check
        %p1168 = pneg %p540
      $region70: #{_lambda_.1} parent=11 // pred_check_branch
        %1170 = sbr.rel (%p1168) target = $region72
      $region71: #{_lambda_.1} parent=11 // pred_region
        _
      $region72: #{_lambda_.1} parent=11 // pred_fallthru
        _
      // Predicated region
      $region73: #{_lambda_.1} parent=11 // pred_check
        %p1171 = pneg %p561
      $region74: #{_lambda_.1} parent=11 // pred_check_branch
        %1173 = sbr.rel (%p1171) target = $region76
      $region75: #{_lambda_.1} parent=11 // pred_region
        _
      $region76: #{_lambda_.1} parent=11 // pred_fallthru
        _
      // Predicated region
      $region77: #{_lambda_.1} parent=11 // pred_check
        %p1174 = pneg %p582
      $region78: #{_lambda_.1} parent=11 // pred_check_branch
        %1176 = sbr.rel (%p1174) target = $region80
      $region79: #{_lambda_.1} parent=11 // pred_region
        _
      $region80: #{_lambda_.1} parent=11 // pred_fallthru
        _
      // Predicated region
      $region81: #{_lambda_.1} parent=11 // pred_check
        %p1177 = pneg %p603
      $region82: #{_lambda_.1} parent=11 // pred_check_branch
        %1179 = sbr.rel (%p1177) target = $region84
      $region83: #{_lambda_.1} parent=11 // pred_region
        _
      $region84: #{_lambda_.1} parent=11 // pred_fallthru
        _
      // Predicated region
      $region85: #{_lambda_.1} parent=11 // pred_check
        %p1180 = pneg %p624
      $region86: #{_lambda_.1} parent=11 // pred_check_branch
        %1182 = sbr.rel (%p1180) target = $region88
      $region87: #{_lambda_.1} parent=11 // pred_region
        _
      $region88: #{_lambda_.1} parent=11 // pred_fallthru
        _
      // Predicated region
      $region89: #{_lambda_.1} parent=11 // pred_check
        %p1183 = pneg %p645
      $region90: #{_lambda_.1} parent=11 // pred_check_branch
        %1185 = sbr.rel (%p1183) target = $region92
      $region91: #{_lambda_.1} parent=11 // pred_region
        _
      $region92: #{_lambda_.1} parent=11 // pred_fallthru
        _
      // Predicated region
      $region93: #{_lambda_.1} parent=11 // pred_check
        %p1186 = pneg %p666
      $region94: #{_lambda_.1} parent=11 // pred_check_branch
        %1188 = sbr.rel (%p1186) target = $region96
      $region95: #{_lambda_.1} parent=11 // pred_region
        _
      $region96: #{_lambda_.1} parent=11 // pred_fallthru
        _
      // Predicated region
      $region97: #{_lambda_.1} parent=11 // pred_check
        %p1189 = pneg %p687
      $region98: #{_lambda_.1} parent=11 // pred_check_branch
        %1191 = sbr.rel (%p1189) target = $region100
      $region99: #{_lambda_.1} parent=11 // pred_region
        _
      $region100: #{_lambda_.1} parent=11 // pred_fallthru
        _
      // Predicated region
      $region101: #{_lambda_.1} parent=11 // pred_check
        %p1192 = pneg %p708
      $region102: #{_lambda_.1} parent=11 // pred_check_branch
        %1194 = sbr.rel (%p1192) target = $region104
      $region103: #{_lambda_.1} parent=11 // pred_region
        _
      $region104: #{_lambda_.1} parent=11 // pred_fallthru
        _
      // Predicated region
      $region105: #{_lambda_.1} parent=11 // pred_check
        %p1195 = pneg %p729
      $region106: #{_lambda_.1} parent=11 // pred_check_branch
        %1197 = sbr.rel (%p1195) target = $region108
      $region107: #{_lambda_.1} parent=11 // pred_region
        _
      $region108: #{_lambda_.1} parent=11 // pred_fallthru
        _
      // Predicated region
      $region109: #{_lambda_.1} parent=11 // pred_check
        %p1198 = pneg %p750
      $region110: #{_lambda_.1} parent=11 // pred_check_branch
        %1200 = sbr.rel (%p1198) target = $region112
      $region111: #{_lambda_.1} parent=11 // pred_region
        _
      $region112: #{_lambda_.1} parent=11 // pred_fallthru
        _
      // Predicated region
      $region113: #{_lambda_.1} parent=11 // pred_check
        %p1201 = pneg %p771
      $region114: #{_lambda_.1} parent=11 // pred_check_branch
        %1203 = sbr.rel (%p1201) target = $region116
      $region115: #{_lambda_.1} parent=11 // pred_region
        _
      $region116: #{_lambda_.1} parent=11 // pred_fallthru
        _
      // Predicated region
      $region117: #{_lambda_.1} parent=11 // pred_check
        %p1204 = pneg %p792
      $region118: #{_lambda_.1} parent=11 // pred_check_branch
        %1206 = sbr.rel (%p1204) target = $region120
      $region119: #{_lambda_.1} parent=11 // pred_region
        _
      $region120: #{_lambda_.1} parent=11 // pred_fallthru
        _
      // Predicated region
      $region121: #{_lambda_.1} parent=11 // pred_check
        %p1207 = pneg %p813
      $region122: #{_lambda_.1} parent=11 // pred_check_branch
        %1209 = sbr.rel (%p1207) target = $region124
      $region123: #{_lambda_.1} parent=11 // pred_region
        _
      $region124: #{_lambda_.1} parent=11 // pred_fallthru
        _
      // Predicated region
      $region125: #{_lambda_.1} parent=11 // pred_check
        %p1210 = pneg %p834
      $region126: #{_lambda_.1} parent=11 // pred_check_branch
        %1212 = sbr.rel (%p1210) target = $region128
      $region127: #{_lambda_.1} parent=11 // pred_region
        _
      $region128: #{_lambda_.1} parent=11 // pred_fallthru
        _
      // Predicated region
      $region129: #{_lambda_.1} parent=11 // pred_check
        %p1213 = pneg %p855
      $region130: #{_lambda_.1} parent=11 // pred_check_branch
        %1215 = sbr.rel (%p1213) target = $region132
      $region131: #{_lambda_.1} parent=11 // pred_region
        _
      $region132: #{_lambda_.1} parent=11 // pred_fallthru
        _
      // Predicated region
      $region133: #{_lambda_.1} parent=11 // pred_check
        %p1216 = pneg %p876
      $region134: #{_lambda_.1} parent=11 // pred_check_branch
        %1218 = sbr.rel (%p1216) target = $region136
      $region135: #{_lambda_.1} parent=11 // pred_region
        _
      $region136: #{_lambda_.1} parent=11 // pred_fallthru
        _
      // Predicated region
      $region137: #{_lambda_.1} parent=11 // pred_check
        %p1219 = pneg %p897
      $region138: #{_lambda_.1} parent=11 // pred_check_branch
        %1221 = sbr.rel (%p1219) target = $region140
      $region139: #{_lambda_.1} parent=11 // pred_region
        _
      $region140: #{_lambda_.1} parent=11 // pred_fallthru
        _
      // Predicated region
      $region141: #{_lambda_.1} parent=11 // pred_check
        %p1222 = pneg %p918
      $region142: #{_lambda_.1} parent=11 // pred_check_branch
        %1224 = sbr.rel (%p1222) target = $region144
      $region143: #{_lambda_.1} parent=11 // pred_region
        _
      $region144: #{_lambda_.1} parent=11 // pred_fallthru
        _
      // Predicated region
      $region145: #{_lambda_.1} parent=11 // pred_check
        %p1225 = pneg %p939
      $region146: #{_lambda_.1} parent=11 // pred_check_branch
        %1227 = sbr.rel (%p1225) target = $region148
      $region147: #{_lambda_.1} parent=11 // pred_region
        _
      $region148: #{_lambda_.1} parent=11 // pred_fallthru
        _
      // Predicated region
      $region149: #{_lambda_.1} parent=11 // pred_check
        %p1228 = pneg %p960
      $region150: #{_lambda_.1} parent=11 // pred_check_branch
        %1230 = sbr.rel (%p1228) target = $region152
      $region151: #{_lambda_.1} parent=11 // pred_region
        _
      $region152: #{_lambda_.1} parent=11 // pred_fallthru
        _
      // Predicated region
      $region153: #{_lambda_.1} parent=11 // pred_check
        %p1231 = pneg %p981
      $region154: #{_lambda_.1} parent=11 // pred_check_branch
        %1233 = sbr.rel (%p1231) target = $region156
      $region155: #{_lambda_.1} parent=11 // pred_region
        _
      $region156: #{_lambda_.1} parent=11 // pred_fallthru
        _
      // Predicated region
      $region157: #{_lambda_.1} parent=11 // pred_check
        %p1234 = pneg %p1002
      $region158: #{_lambda_.1} parent=11 // pred_check_branch
        %1236 = sbr.rel (%p1234) target = $region160
      $region159: #{_lambda_.1} parent=11 // pred_region
        _
      $region160: #{_lambda_.1} parent=11 // pred_fallthru
        _
      // Predicated region
      $region161: #{_lambda_.1} parent=11 // pred_check
        %p1237 = pneg %p1023
      $region162: #{_lambda_.1} parent=11 // pred_check_branch
        %1239 = sbr.rel (%p1237) target = $region164
      $region163: #{_lambda_.1} parent=11 // pred_region
        _
      $region164: #{_lambda_.1} parent=11 // pred_fallthru
        _
    $region12: #{_lambda_.1} parent=5 // pred_fallthru
      _
    %p1240 = scmp.lt.s32.totalorder %s96, 3
    // Predicated region
    $region165: #{_lambda_.1} parent=5 // pred_check
      %p1241 = pneg %p1240
    $region166: #{_lambda_.1} parent=5 // pred_check_branch
      %1243 = sbr.rel (%p1241) target = $region168
    $region167: #{_lambda_.1} parent=5 // pred_region
      // Predicated region
      $region169: #{_lambda_.1} parent=167 // pred_check
        %p1244 = pneg %p130
      $region170: #{_lambda_.1} parent=167 // pred_check_branch
        %1246 = sbr.rel (%p1244) target = $region172
      $region171: #{_lambda_.1} parent=167 // pred_region
        %p1247 = scmp.lt.s32.totalorder %s103, 0
        %s1248 = scalar_select %p1247, %s103, 0
        %p1249 = scmp.lt.s32.totalorder %s104, 2
        %s1250 = scalar_select %p1249, %s104, 2
        %s1251 = smul.addr %s1250, 2
        %s1252 = smul.addr %s1248, 6
        %s1253 = sadd.s32 %s1251, %s1252
        %s1254 = smul.addr %s1253, 8
        %s1255 = scalar_lea.vmem %s1, %s1254
      $region172: #{_lambda_.1} parent=167 // pred_fallthru
        _
      // Predicated region
      $region173: #{_lambda_.1} parent=167 // pred_check
        %p1256 = pneg %p158
      $region174: #{_lambda_.1} parent=167 // pred_check_branch
        %1258 = sbr.rel (%p1256) target = $region176
      $region175: #{_lambda_.1} parent=167 // pred_region
        %p1259 = scmp.lt.s32.totalorder %s103, 0
        %s1260 = scalar_select %p1259, %s103, 0
        %p1261 = scmp.lt.s32.totalorder %s104, 2
        %s1262 = scalar_select %p1261, %s104, 2
        %s1263 = smul.addr %s1260, 3
        %s1264 = sadd.s32 %s1262, %s1263
        %s1265 = smul.addr %s1264, 8
        %s1266 = scalar_lea.vmem %s3, %s1265
      $region176: #{_lambda_.1} parent=167 // pred_fallthru
        _
      // Predicated region
      $region177: #{_lambda_.1} parent=167 // pred_check
        %p1267 = pneg %p186
      $region178: #{_lambda_.1} parent=167 // pred_check_branch
        %1269 = sbr.rel (%p1267) target = $region180
      $region179: #{_lambda_.1} parent=167 // pred_region
        %p1270 = scmp.lt.s32.totalorder %s103, 0
        %s1271 = scalar_select %p1270, %s103, 0
        %p1272 = scmp.lt.s32.totalorder %s104, 2
        %s1273 = scalar_select %p1272, %s104, 2
        %s1274 = smul.addr %s1271, 3
        %s1275 = sadd.s32 %s1273, %s1274
        %s1276 = smul.addr %s1275, 8
        %s1277 = scalar_lea.vmem %s5, %s1276
      $region180: #{_lambda_.1} parent=167 // pred_fallthru
        _
      // Predicated region
      $region181: #{_lambda_.1} parent=167 // pred_check
        %p1278 = pneg %p214
      $region182: #{_lambda_.1} parent=167 // pred_check_branch
        %1280 = sbr.rel (%p1278) target = $region184
      $region183: #{_lambda_.1} parent=167 // pred_region
        %p1281 = scmp.lt.s32.totalorder %s103, 0
        %s1282 = scalar_select %p1281, %s103, 0
        %p1283 = scmp.lt.s32.totalorder %s104, 2
        %s1284 = scalar_select %p1283, %s104, 2
        %s1285 = smul.addr %s1282, 3
        %s1286 = sadd.s32 %s1284, %s1285
        %s1287 = smul.addr %s1286, 8
        %s1288 = scalar_lea.vmem %s7, %s1287
      $region184: #{_lambda_.1} parent=167 // pred_fallthru
        _
    $region168: #{_lambda_.1} parent=5 // pred_fallthru
      _
    %p1289 = scmp.le.s32.totalorder 1, %s96
    %p1290 = scmp.lt.s32.totalorder %s96, 4
    %p1291 = pnand %p1289, %p1290
    %p1292 = pneg %p1291
    // Predicated region
    $region185: #{_lambda_.1} parent=5 // pred_check
      _
    $region186: #{_lambda_.1} parent=5 // pred_check_branch
      %1294 = sbr.rel (%p1291) target = $region188
    $region187: #{_lambda_.1} parent=5 // pred_region
      %s1295 = ssub.s32 %s96, 1
      %p1296 = scmp.lt.s32.totalorder %s105, 0
      %s1297 = scalar_select %p1296, %s105, 0
      %p1298 = scmp.lt.s32.totalorder %s106, 2
      %s1299 = scalar_select %p1298, %s106, 2
      %s1300 = smul.addr %s1299, 2
      %s1301 = smul.addr %s1297, 6
      %s1302 = sadd.s32 %s1300, %s1301
      %s1303 = smul.addr %s1302, 8
      %s1304 = scalar_lea.vmem %s1, %s1303
      %p1305 = pneg %p136
      %p1306 = pneg %p133
      %p1307 = scmp.lt.s32.totalorder %s105, 0
      %s1308 = scalar_select %p1307, %s105, 0
      %p1309 = scmp.lt.s32.totalorder %s106, 2
      %s1310 = scalar_select %p1309, %s106, 2
      %s1311 = smul.addr %s1308, 3
      %s1312 = sadd.s32 %s1310, %s1311
      %s1313 = smul.addr %s1312, 8
      %s1314 = scalar_lea.vmem %s3, %s1313
      %p1315 = pneg %p164
      %p1316 = pneg %p161
      %p1317 = scmp.lt.s32.totalorder %s105, 0
      %s1318 = scalar_select %p1317, %s105, 0
      %p1319 = scmp.lt.s32.totalorder %s106, 2
      %s1320 = scalar_select %p1319, %s106, 2
      %s1321 = smul.addr %s1318, 3
      %s1322 = sadd.s32 %s1320, %s1321
      %s1323 = smul.addr %s1322, 8
      %s1324 = scalar_lea.vmem %s5, %s1323
      %p1325 = pneg %p192
      %p1326 = pneg %p189
      %p1327 = scmp.lt.s32.totalorder %s105, 0
      %s1328 = scalar_select %p1327, %s105, 0
      %p1329 = scmp.lt.s32.totalorder %s106, 2
      %s1330 = scalar_select %p1329, %s106, 2
      %s1331 = smul.addr %s1328, 3
      %s1332 = sadd.s32 %s1330, %s1331
      %s1333 = smul.addr %s1332, 8
      %s1334 = scalar_lea.vmem %s7, %s1333
      %p1335 = pneg %p220
      %p1336 = pneg %p217
      %p1337 = scmp.lt.s32.totalorder %s105, 0
      %s1338 = scalar_select %p1337, %s105, 0
      %s1339 = smul.addr %s1338, 8
      %s1340 = scalar_lea.vmem %s9, %s1339
      %p1341 = pneg %p246
      %p1342 = pneg %p243
      %p1343 = pneg %p267
      %p1344 = pneg %p264
      %p1345 = pneg %p288
      %p1346 = pneg %p285
      %p1347 = pneg %p309
      %p1348 = pneg %p306
      %p1349 = pneg %p330
      %p1350 = pneg %p327
      %p1351 = pneg %p351
      %p1352 = pneg %p348
      %p1353 = pneg %p372
      %p1354 = pneg %p369
      %p1355 = pneg %p393
      %p1356 = pneg %p390
      %p1357 = pneg %p414
      %p1358 = pneg %p411
      %p1359 = pneg %p435
      %p1360 = pneg %p432
      %p1361 = pneg %p456
      %p1362 = pneg %p453
      %p1363 = pneg %p477
      %p1364 = pneg %p474
      %p1365 = pneg %p498
      %p1366 = pneg %p495
      %p1367 = pneg %p519
      %p1368 = pneg %p516
      %p1369 = pneg %p540
      %p1370 = pneg %p537
      %p1371 = pneg %p561
      %p1372 = pneg %p558
      %p1373 = pneg %p582
      %p1374 = pneg %p579
      %p1375 = pneg %p603
      %p1376 = pneg %p600
      %p1377 = pneg %p624
      %p1378 = pneg %p621
      %p1379 = pneg %p645
      %p1380 = pneg %p642
      %p1381 = pneg %p666
      %p1382 = pneg %p663
      %p1383 = pneg %p687
      %p1384 = pneg %p684
      %p1385 = pneg %p708
      %p1386 = pneg %p705
      %p1387 = pneg %p729
      %p1388 = pneg %p726
      %p1389 = pneg %p750
      %p1390 = pneg %p747
      %p1391 = pneg %p771
      %p1392 = pneg %p768
      %p1393 = pneg %p792
      %p1394 = pneg %p789
      %p1395 = pneg %p813
      %p1396 = pneg %p810
      %p1397 = pneg %p834
      %p1398 = pneg %p831
      %p1399 = pneg %p855
      %p1400 = pneg %p852
      %p1401 = pneg %p876
      %p1402 = pneg %p873
      %p1403 = pneg %p897
      %p1404 = pneg %p894
      %p1405 = pneg %p918
      %p1406 = pneg %p915
      %p1407 = pneg %p939
      %p1408 = pneg %p936
      %p1409 = pneg %p960
      %p1410 = pneg %p957
      %p1411 = pneg %p981
      %p1412 = pneg %p978
      %p1413 = pneg %p1002
      %p1414 = pneg %p999
      %p1415 = pneg %p1023
      %p1416 = pneg %p1020
      %p1417 = pneg %p1051
      %p1418 = pneg %p1048
      %p1419 = scmp.lt.s32.totalorder %s105, 0
      %s1420 = scalar_select %p1419, %s105, 0
      %p1421 = scmp.lt.s32.totalorder %s106, 2
      %s1422 = scalar_select %p1421, %s106, 2
      %s1423 = smul.addr %s1420, 3
      %s1424 = sadd.s32 %s1422, %s1423
      %s1425 = smul.addr %s1424, 8
      %s1426 = scalar_lea.vmem %s85, %s1425
      %p1427 = pneg %p1079
      %p1428 = pneg %p1076
      %p1429 = scmp.lt.s32.totalorder %s105, 0
      %s1430 = scalar_select %p1429, %s105, 0
      %p1431 = scmp.lt.s32.totalorder %s106, 2
      %s1432 = scalar_select %p1431, %s106, 2
      %s1433 = smul.addr %s1430, 3
      %s1434 = sadd.s32 %s1432, %s1433
      %s1435 = smul.addr %s1434, 8
      %s1436 = scalar_lea.vmem %s87, %s1435
      %p1437 = pneg %p1107
      %p1438 = pneg %p1104
      %p1439 = scmp.lt.s32.totalorder %s105, 0
      %s1440 = scalar_select %p1439, %s105, 0
      %p1441 = scmp.lt.s32.totalorder %s106, 2
      %s1442 = scalar_select %p1441, %s106, 2
      %s1443 = smul.addr %s1440, 3
      %s1444 = sadd.s32 %s1442, %s1443
      %s1445 = smul.addr %s1444, 8
      %s1446 = scalar_lea.vmem %s89, %s1445
      %p1447 = scmp.lt.s32.totalorder %s105, 0
      %s1448 = scalar_select %p1447, %s105, 0
      %p1449 = scmp.lt.s32.totalorder %s106, 2
      %s1450 = scalar_select %p1449, %s106, 2
      %s1451 = smul.addr %s1450, 2
      %s1452 = smul.addr %s1448, 6
      %s1453 = sadd.s32 %s1451, %s1452
      %s1454 = smul.addr %s1453, 8
      %s1455 = scalar_lea.vmem %s1, %s1454
      %p1456 = scmp.lt.s32.totalorder %s105, 0
      %s1457 = scalar_select %p1456, %s105, 0
      %p1458 = scmp.lt.s32.totalorder %s106, 2
      %s1459 = scalar_select %p1458, %s106, 2
      %s1460 = smul.addr %s1457, 3
      %s1461 = sadd.s32 %s1459, %s1460
      %s1462 = smul.addr %s1461, 8
      %s1463 = scalar_lea.vmem %s3, %s1462
      %p1464 = scmp.lt.s32.totalorder %s105, 0
      %s1465 = scalar_select %p1464, %s105, 0
      %p1466 = scmp.lt.s32.totalorder %s106, 2
      %s1467 = scalar_select %p1466, %s106, 2
      %s1468 = smul.addr %s1465, 3
      %s1469 = sadd.s32 %s1467, %s1468
      %s1470 = smul.addr %s1469, 8
      %s1471 = scalar_lea.vmem %s5, %s1470
      %p1472 = scmp.lt.s32.totalorder %s105, 0
      %s1473 = scalar_select %p1472, %s105, 0
      %p1474 = scmp.lt.s32.totalorder %s106, 2
      %s1475 = scalar_select %p1474, %s106, 2
      %s1476 = smul.addr %s1473, 3
      %s1477 = sadd.s32 %s1475, %s1476
      %s1478 = smul.addr %s1477, 8
      %s1479 = scalar_lea.vmem %s7, %s1478
      %p1480 = scmp.lt.s32.totalorder %s105, 0
      %s1481 = scalar_select %p1480, %s105, 0
      %s1482 = smul.addr %s1481, 8
      %s1483 = scalar_lea.vmem %s9, %s1482
      %p1484 = scmp.lt.s32.totalorder %s105, 0
      %s1485 = scalar_select %p1484, %s105, 0
      %p1486 = scmp.lt.s32.totalorder %s106, 2
      %s1487 = scalar_select %p1486, %s106, 2
      %s1488 = smul.addr %s1485, 3
      %s1489 = sadd.s32 %s1487, %s1488
      %s1490 = smul.addr %s1489, 8
      %s1491 = scalar_lea.vmem %s85, %s1490
      %p1492 = scmp.lt.s32.totalorder %s105, 0
      %s1493 = scalar_select %p1492, %s105, 0
      %p1494 = scmp.lt.s32.totalorder %s106, 2
      %s1495 = scalar_select %p1494, %s106, 2
      %s1496 = smul.addr %s1493, 3
      %s1497 = sadd.s32 %s1495, %s1496
      %s1498 = smul.addr %s1497, 8
      %s1499 = scalar_lea.vmem %s87, %s1498
      %p1500 = scmp.lt.s32.totalorder %s105, 0
      %s1501 = scalar_select %p1500, %s105, 0
      %p1502 = scmp.lt.s32.totalorder %s106, 2
      %s1503 = scalar_select %p1502, %s106, 2
      %s1504 = smul.addr %s1501, 3
      %s1505 = sadd.s32 %s1503, %s1504
      %s1506 = smul.addr %s1505, 8
      %s1507 = scalar_lea.vmem %s89, %s1506
      %v1508 = vld [vmem:[%s1455] sm:$0xff]
      %v1509 = vld [vmem:[%s1455 + $0x8] sm:$0xf]
      %v1510 = vld [vmem:[%s1463] sm:$0x3f]
      %vm1511 = vcmp.gt.f32.partialorder %v1510, 0.0
      %v1512 = vld [vmem:[%s1471] sm:$0x3f]
      %vm1513 = vcmp.gt.f32.partialorder %v1512, 0.0
      %v1514 = vld [vmem:[%s1479] sm:$0x3f]
      %v1515 = vld [vmem:[%s11] sm:$0xff]
      %v1516 = vld [vmem:[%s11 + $0x8] sm:$0x7]
      %v1517 = vld [vmem:[%s13] sm:$0x1]
      %v1519 = vperm.slane %v1517, 0
      %vm1521 = vcmask 89088
      %v1523 = vsel %vm1521, %v1508, 0
      %v1526 = vsel %vm1521, %v1509, 0
      %vm1528 = vcmask 1042432
      %v1530 = vsel %vm1528, %v1516, 0
      %1532 = vmatpush.msra.mxu0 0.0
      %1533 = vmatpush.msra.mxu0 0.0
      %1534 = vmatpush.msra.mxu0 0.0
      %1535 = vmatpush.msra.mxu0 0.0
      %1536 = vmatpush.msra.mxu0 0.0
      %1537 = vmatpush.msra.mxu0 0.0
      %1538 = vmatpush.msra.mxu0 0.0
      %1539 = vmatpush.msra.mxu0 0.0
      %1540 = vmatpush.msra.mxu0 0.0
      %1541 = vmatpush.msra.mxu0 0.0
      %1542 = vmatpush.msra.mxu0 0.0
      %1543 = vmatpush.msra.mxu0 0.0
      %1544 = vmatpush.msra.mxu0 0.0
      %1545 = vmatpush.msra.mxu0 0.0
      %1546 = vmatpush.msra.mxu0 %v1530
      %1547 = vmatpush.msra.mxu0 %v1515
      %1548 = vmatmul.f32.gmra.mxu0 %v1523
      %v1549 = vpop.f32.mrf.mxu0
      %v1550 = vadd.f32 %v1519, %v1549
      %1551 = vmatmul.f32.gmra.mxu0 %v1526
      %v1552 = vpop.f32.mrf.mxu0
      %v1553 = vadd.f32 %v1519, %v1552
      %1554 = vdwg.mxu0
      %v1555 = vmax.f32 %v1550, 0.0
      %v1556 = vmax.f32 %v1553, 0.0
      %v1557 = vld [vmem:[%s15] sm:$0xff]
      %v1558 = vld [vmem:[%s15 + $0x8] sm:$0x7]
      %v1559 = vld [vmem:[%s17] sm:$0x1]
      %v1561 = vperm.slane %v1559, 0
      %v1564 = vsel %vm1528, %v1558, 0
      %1566 = vmatpush.msra.mxu0 0.0
      %1567 = vmatpush.msra.mxu0 0.0
      %1568 = vmatpush.msra.mxu0 0.0
      %1569 = vmatpush.msra.mxu0 0.0
      %1570 = vmatpush.msra.mxu0 0.0
      %1571 = vmatpush.msra.mxu0 0.0
      %1572 = vmatpush.msra.mxu0 0.0
      %1573 = vmatpush.msra.mxu0 0.0
      %1574 = vmatpush.msra.mxu0 0.0
      %1575 = vmatpush.msra.mxu0 0.0
      %1576 = vmatpush.msra.mxu0 0.0
      %1577 = vmatpush.msra.mxu0 0.0
      %1578 = vmatpush.msra.mxu0 0.0
      %1579 = vmatpush.msra.mxu0 0.0
      %1580 = vmatpush.msra.mxu0 %v1564
      %1581 = vmatpush.msra.mxu0 %v1557
      %1582 = vmatmul.f32.gmra.mxu0 %v1523
      %v1583 = vpop.f32.mrf.mxu0
      %v1584 = vadd.f32 %v1561, %v1583
      %1585 = vmatmul.f32.gmra.mxu0 %v1526
      %v1586 = vpop.f32.mrf.mxu0
      %v1587 = vadd.f32 %v1561, %v1586
      %1588 = vdwg.mxu0
      %v1589 = vmax.f32 %v1584, 0.0
      %v1590 = vmax.f32 %v1587, 0.0
      %v1591 = vld [vmem:[%s19] sm:$0xff]
      %v1592 = vld [vmem:[%s19 + $0x8] sm:$0x7]
      %v1593 = vld [vmem:[%s21] sm:$0x1]
      %v1595 = vperm.slane %v1593, 0
      %v1598 = vsel %vm1528, %v1592, 0
      %1600 = vmatpush.msra.mxu0 0.0
      %1601 = vmatpush.msra.mxu0 0.0
      %1602 = vmatpush.msra.mxu0 0.0
      %1603 = vmatpush.msra.mxu0 0.0
      %1604 = vmatpush.msra.mxu0 0.0
      %1605 = vmatpush.msra.mxu0 0.0
      %1606 = vmatpush.msra.mxu0 0.0
      %1607 = vmatpush.msra.mxu0 0.0
      %1608 = vmatpush.msra.mxu0 0.0
      %1609 = vmatpush.msra.mxu0 0.0
      %1610 = vmatpush.msra.mxu0 0.0
      %1611 = vmatpush.msra.mxu0 0.0
      %1612 = vmatpush.msra.mxu0 0.0
      %1613 = vmatpush.msra.mxu0 0.0
      %1614 = vmatpush.msra.mxu0 %v1598
      %1615 = vmatpush.msra.mxu0 %v1591
      %1616 = vmatmul.f32.gmra.mxu0 %v1523
      %v1617 = vpop.f32.mrf.mxu0
      %v1618 = vadd.f32 %v1595, %v1617
      %1619 = vmatmul.f32.gmra.mxu0 %v1526
      %v1620 = vpop.f32.mrf.mxu0
      %v1621 = vadd.f32 %v1595, %v1620
      %1622 = vdwg.mxu0
      %v1623 = vmax.f32 %v1618, 0.0
      %v1624 = vmax.f32 %v1621, 0.0
      %v1625 = vld [vmem:[%s23] sm:$0xff]
      %v1626 = vld [vmem:[%s23 + $0x8] sm:$0xff]
      %v1627 = vld [vmem:[%s23 + $0x10] sm:$0xff]
      %v1628 = vld [vmem:[%s23 + $0x18] sm:$0xff]
      %v1629 = vld [vmem:[%s23 + $0x20] sm:$0xff]
      %v1630 = vld [vmem:[%s23 + $0x28] sm:$0xff]
      %v1631 = vld [vmem:[%s23 + $0x30] sm:$0xff]
      %v1632 = vld [vmem:[%s23 + $0x38] sm:$0xff]
      %vm1633 = vcmask 523264
      %v1635 = vsel %vm1633, %v1555, 0
      %1637 = vmatpush.msra.mxu0 0.0
      %1638 = vmatpush.msra.mxu0 0.0
      %1639 = vmatpush.msra.mxu0 0.0
      %1640 = vmatpush.msra.mxu0 0.0
      %1641 = vmatpush.msra.mxu0 0.0
      %1642 = vmatpush.msra.mxu0 0.0
      %1643 = vmatpush.msra.mxu0 0.0
      %1644 = vmatpush.msra.mxu0 0.0
      %1645 = vmatpush.msra.mxu0 %v1632
      %1646 = vmatpush.msra.mxu0 %v1631
      %1647 = vmatpush.msra.mxu0 %v1630
      %1648 = vmatpush.msra.mxu0 %v1629
      %1649 = vmatpush.msra.mxu0 %v1628
      %1650 = vmatpush.msra.mxu0 %v1627
      %1651 = vmatpush.msra.mxu0 %v1626
      %1652 = vmatpush.msra.mxu0 %v1625
      %1653 = vmatmul.f32.gmra.mxu0 %v1635
      %v1654 = vpop.f32.mrf.mxu0
      %v1655 = vadd.f32 0.0, %v1654
      %1656 = vdwg.mxu0
      %v1657 = vld [vmem:[%s25] sm:$0xff]
      %v1658 = vld [vmem:[%s25 + $0x8] sm:$0xff]
      %v1659 = vld [vmem:[%s25 + $0x10] sm:$0xff]
      %v1660 = vld [vmem:[%s25 + $0x18] sm:$0xff]
      %v1661 = vld [vmem:[%s25 + $0x20] sm:$0xff]
      %v1662 = vld [vmem:[%s25 + $0x28] sm:$0xff]
      %v1663 = vld [vmem:[%s25 + $0x30] sm:$0xff]
      %v1664 = vld [vmem:[%s25 + $0x38] sm:$0xff]
      %v1666 = vsel %vm1633, %v1556, 0
      %1668 = vmatpush.msra.mxu0 0.0
      %1669 = vmatpush.msra.mxu0 0.0
      %1670 = vmatpush.msra.mxu0 0.0
      %1671 = vmatpush.msra.mxu0 0.0
      %1672 = vmatpush.msra.mxu0 0.0
      %1673 = vmatpush.msra.mxu0 0.0
      %1674 = vmatpush.msra.mxu0 0.0
      %1675 = vmatpush.msra.mxu0 0.0
      %1676 = vmatpush.msra.mxu0 %v1664
      %1677 = vmatpush.msra.mxu0 %v1663
      %1678 = vmatpush.msra.mxu0 %v1662
      %1679 = vmatpush.msra.mxu0 %v1661
      %1680 = vmatpush.msra.mxu0 %v1660
      %1681 = vmatpush.msra.mxu0 %v1659
      %1682 = vmatpush.msra.mxu0 %v1658
      %1683 = vmatpush.msra.mxu0 %v1657
      %1684 = vmatmul.f32.gmra.mxu0 %v1635
      %v1685 = vpop.f32.mrf.mxu0
      %v1686 = vadd.f32 0.0, %v1685
      %1687 = vmatmul.f32.gmra.mxu0 %v1666
      %v1688 = vpop.f32.mrf.mxu0
      %v1689 = vadd.f32 0.0, %v1688
      %1690 = vdwg.mxu0
      %v1691 = vld [vmem:[%s27] sm:$0xff]
      %v1692 = vld [vmem:[%s27 + $0x8] sm:$0xff]
      %v1693 = vld [vmem:[%s27 + $0x10] sm:$0xff]
      %v1694 = vld [vmem:[%s27 + $0x18] sm:$0xff]
      %v1695 = vld [vmem:[%s27 + $0x20] sm:$0xff]
      %v1696 = vld [vmem:[%s27 + $0x28] sm:$0xff]
      %v1697 = vld [vmem:[%s27 + $0x30] sm:$0xff]
      %v1698 = vld [vmem:[%s27 + $0x38] sm:$0xff]
      %1699 = vmatpush.msra.mxu0 0.0
      %1700 = vmatpush.msra.mxu0 0.0
      %1701 = vmatpush.msra.mxu0 0.0
      %1702 = vmatpush.msra.mxu0 0.0
      %1703 = vmatpush.msra.mxu0 0.0
      %1704 = vmatpush.msra.mxu0 0.0
      %1705 = vmatpush.msra.mxu0 0.0
      %1706 = vmatpush.msra.mxu0 0.0
      %1707 = vmatpush.msra.mxu0 %v1698
      %1708 = vmatpush.msra.mxu0 %v1697
      %1709 = vmatpush.msra.mxu0 %v1696
      %1710 = vmatpush.msra.mxu0 %v1695
      %1711 = vmatpush.msra.mxu0 %v1694
      %1712 = vmatpush.msra.mxu0 %v1693
      %1713 = vmatpush.msra.mxu0 %v1692
      %1714 = vmatpush.msra.mxu0 %v1691
      %1715 = vmatmul.f32.gmra.mxu0 %v1635
      %v1716 = vpop.f32.mrf.mxu0
      %v1717 = vadd.f32 0.0, %v1716
      %1718 = vmatmul.f32.gmra.mxu0 %v1666
      %v1719 = vpop.f32.mrf.mxu0
      %v1720 = vadd.f32 0.0, %v1719
      %1721 = vdwg.mxu0
      %vm1722 = vcmask 261120
      %v1724 = vsel %vm1722, %v1655, 0
      %v1727 = vsel %vm1722, %v1686, 0
      %v1730 = vsel %vm1722, %v1689, 0
      %1732 = vmatpush.xpose.msra.mxu0 0.0
      %1733 = vmatpush.xpose.msra.mxu0 0.0
      %1734 = vmatpush.xpose.msra.mxu0 0.0
      %1735 = vmatpush.xpose.msra.mxu0 0.0
      %1736 = vmatpush.xpose.msra.mxu0 0.0
      %1737 = vmatpush.xpose.msra.mxu0 0.0
      %1738 = vmatpush.xpose.msra.mxu0 0.0
      %1739 = vmatpush.xpose.msra.mxu0 0.0
      %1740 = vmatpush.xpose.msra.mxu0 0.0
      %1741 = vmatpush.xpose.msra.mxu0 0.0
      %1742 = vmatpush.xpose.msra.mxu0 0.0
      %1743 = vmatpush.xpose.msra.mxu0 0.0
      %1744 = vmatpush.xpose.msra.mxu0 0.0
      %1745 = vmatpush.xpose.msra.mxu0 0.0
      %1746 = vmatpush.xpose.msra.mxu0 %v1730
      %1747 = vmatpush.xpose.msra.mxu0 %v1727
      %1748 = vmatmul.f32.gmra.mxu0 %v1724
      %v1749 = vpop.f32.mrf.mxu0
      %v1750 = vadd.f32 0.0, %v1749
      %1751 = vdwg.mxu0
      %v1752 = vmul.f32 %v1750, 0.17677669
      %v1753 = vsel %vm1511, -1e+30, %v1752
      %vm1754 = vcmask 95232
      %v1755 = vsel %vm1754, %v1753, -inf
      %1756 = vmax.xlane.f32.xlu0 %v1755
      %v1757 = vpop.xlane.xlu0 %1756
      %v1758 = vsub.f32 %v1753, %v1757
      %v1759 = vmul.f32 %v1758, 1.442695
      %v1760 = vpow.pop %v1759
      %v1761 = vsel %vm1511, 0.0, %v1760
      %v1762 = vsel %vm1754, %v1761, 0.0
      %1763 = vadd.xlane.f32.xlu0 %v1762
      %v1764 = vpop.xlane.xlu0 %1763
      %vm1765 = vcmp.gt.f32.partialorder %v1764, 0.0
      %v1766 = vsel %vm1765, %v1764, 1.0
      %v1767 = vrcp.pop %v1766
      %v1768 = vmul.f32 %v1766, %v1767
      %v1769 = vsub.f32 1.0, %v1768
      %v1770 = vmul.f32 %v1767, %v1769
      %v1771 = vadd.f32 %v1767, %v1770
      %vm1772 = vweird.f32 %v1766
      %vm1773 = vweird.f32 %v1767
      %vm1774 = vmor %vm1772, %vm1773
      %v1775 = vsel %vm1774, %v1767, %v1771
      %v1776 = vand.u32 2147483647, %v1766
      %vm1777 = vcmp.eq.f32.partialorder %v1776, 8.507059e+37
      %v1778 = vand.u32 %v1766, 2147483648
      %v1779 = vor.u32 1.1754944e-38, %v1778
      %v1780 = vsel %vm1777, %v1779, %v1775
      %v1781 = vmul.f32 %v1761, %v1780
      %vm1782 = vcmask 97280
      %v1784 = vsel %vm1782, %v1781, 0
      %vm1786 = vcmask 1043456
      %v1788 = vsel %vm1786, %v1720, 0
      %1790 = vmatpush.msra.mxu0 0.0
      %1791 = vmatpush.msra.mxu0 0.0
      %1792 = vmatpush.msra.mxu0 0.0
      %1793 = vmatpush.msra.mxu0 0.0
      %1794 = vmatpush.msra.mxu0 0.0
      %1795 = vmatpush.msra.mxu0 0.0
      %1796 = vmatpush.msra.mxu0 0.0
      %1797 = vmatpush.msra.mxu0 0.0
      %1798 = vmatpush.msra.mxu0 0.0
      %1799 = vmatpush.msra.mxu0 0.0
      %1800 = vmatpush.msra.mxu0 0.0
      %1801 = vmatpush.msra.mxu0 0.0
      %1802 = vmatpush.msra.mxu0 0.0
      %1803 = vmatpush.msra.mxu0 0.0
      %1804 = vmatpush.msra.mxu0 %v1788
      %1805 = vmatpush.msra.mxu0 %v1717
      %1806 = vmatmul.f32.gmra.mxu0 %v1784
      %v1807 = vpop.f32.mrf.mxu0
      %v1808 = vadd.f32 0.0, %v1807
      %1809 = vdwg.mxu0
      %v1810 = vld [vmem:[%s29] sm:$0xff]
      %v1811 = vld [vmem:[%s29 + $0x8] sm:$0xff]
      %v1812 = vld [vmem:[%s29 + $0x10] sm:$0xff]
      %v1813 = vld [vmem:[%s29 + $0x18] sm:$0xff]
      %s1814 = scalar_lea.vmem %s23, 64
      %v1815 = vld [vmem:[%s1814] sm:$0xff]
      %v1816 = vld [vmem:[%s1814 + $0x8] sm:$0xff]
      %v1817 = vld [vmem:[%s1814 + $0x10] sm:$0xff]
      %v1818 = vld [vmem:[%s1814 + $0x18] sm:$0xff]
      %v1819 = vld [vmem:[%s1814 + $0x20] sm:$0xff]
      %v1820 = vld [vmem:[%s1814 + $0x28] sm:$0xff]
      %v1821 = vld [vmem:[%s1814 + $0x30] sm:$0xff]
      %v1822 = vld [vmem:[%s1814 + $0x38] sm:$0xff]
      %1823 = vmatpush.msra.mxu0 0.0
      %1824 = vmatpush.msra.mxu0 0.0
      %1825 = vmatpush.msra.mxu0 0.0
      %1826 = vmatpush.msra.mxu0 0.0
      %1827 = vmatpush.msra.mxu0 0.0
      %1828 = vmatpush.msra.mxu0 0.0
      %1829 = vmatpush.msra.mxu0 0.0
      %1830 = vmatpush.msra.mxu0 0.0
      %1831 = vmatpush.msra.mxu0 %v1822
      %1832 = vmatpush.msra.mxu0 %v1821
      %1833 = vmatpush.msra.mxu0 %v1820
      %1834 = vmatpush.msra.mxu0 %v1819
      %1835 = vmatpush.msra.mxu0 %v1818
      %1836 = vmatpush.msra.mxu0 %v1817
      %1837 = vmatpush.msra.mxu0 %v1816
      %1838 = vmatpush.msra.mxu0 %v1815
      %1839 = vmatmul.f32.gmra.mxu0 %v1635
      %v1840 = vpop.f32.mrf.mxu0
      %v1841 = vadd.f32 0.0, %v1840
      %1842 = vdwg.mxu0
      %s1843 = scalar_lea.vmem %s25, 64
      %v1844 = vld [vmem:[%s1843] sm:$0xff]
      %v1845 = vld [vmem:[%s1843 + $0x8] sm:$0xff]
      %v1846 = vld [vmem:[%s1843 + $0x10] sm:$0xff]
      %v1847 = vld [vmem:[%s1843 + $0x18] sm:$0xff]
      %v1848 = vld [vmem:[%s1843 + $0x20] sm:$0xff]
      %v1849 = vld [vmem:[%s1843 + $0x28] sm:$0xff]
      %v1850 = vld [vmem:[%s1843 + $0x30] sm:$0xff]
      %v1851 = vld [vmem:[%s1843 + $0x38] sm:$0xff]
      %1852 = vmatpush.msra.mxu0 0.0
      %1853 = vmatpush.msra.mxu0 0.0
      %1854 = vmatpush.msra.mxu0 0.0
      %1855 = vmatpush.msra.mxu0 0.0
      %1856 = vmatpush.msra.mxu0 0.0
      %1857 = vmatpush.msra.mxu0 0.0
      %1858 = vmatpush.msra.mxu0 0.0
      %1859 = vmatpush.msra.mxu0 0.0
      %1860 = vmatpush.msra.mxu0 %v1851
      %1861 = vmatpush.msra.mxu0 %v1850
      %1862 = vmatpush.msra.mxu0 %v1849
      %1863 = vmatpush.msra.mxu0 %v1848
      %1864 = vmatpush.msra.mxu0 %v1847
      %1865 = vmatpush.msra.mxu0 %v1846
      %1866 = vmatpush.msra.mxu0 %v1845
      %1867 = vmatpush.msra.mxu0 %v1844
      %1868 = vmatmul.f32.gmra.mxu0 %v1635
      %v1869 = vpop.f32.mrf.mxu0
      %v1870 = vadd.f32 0.0, %v1869
      %1871 = vmatmul.f32.gmra.mxu0 %v1666
      %v1872 = vpop.f32.mrf.mxu0
      %v1873 = vadd.f32 0.0, %v1872
      %1874 = vdwg.mxu0
      %s1875 = scalar_lea.vmem %s27, 64
      %v1876 = vld [vmem:[%s1875] sm:$0xff]
      %v1877 = vld [vmem:[%s1875 + $0x8] sm:$0xff]
      %v1878 = vld [vmem:[%s1875 + $0x10] sm:$0xff]
      %v1879 = vld [vmem:[%s1875 + $0x18] sm:$0xff]
      %v1880 = vld [vmem:[%s1875 + $0x20] sm:$0xff]
      %v1881 = vld [vmem:[%s1875 + $0x28] sm:$0xff]
      %v1882 = vld [vmem:[%s1875 + $0x30] sm:$0xff]
      %v1883 = vld [vmem:[%s1875 + $0x38] sm:$0xff]
      %1884 = vmatpush.msra.mxu0 0.0
      %1885 = vmatpush.msra.mxu0 0.0
      %1886 = vmatpush.msra.mxu0 0.0
      %1887 = vmatpush.msra.mxu0 0.0
      %1888 = vmatpush.msra.mxu0 0.0
      %1889 = vmatpush.msra.mxu0 0.0
      %1890 = vmatpush.msra.mxu0 0.0
      %1891 = vmatpush.msra.mxu0 0.0
      %1892 = vmatpush.msra.mxu0 %v1883
      %1893 = vmatpush.msra.mxu0 %v1882
      %1894 = vmatpush.msra.mxu0 %v1881
      %1895 = vmatpush.msra.mxu0 %v1880
      %1896 = vmatpush.msra.mxu0 %v1879
      %1897 = vmatpush.msra.mxu0 %v1878
      %1898 = vmatpush.msra.mxu0 %v1877
      %1899 = vmatpush.msra.mxu0 %v1876
      %1900 = vmatmul.f32.gmra.mxu0 %v1635
      %v1901 = vpop.f32.mrf.mxu0
      %v1902 = vadd.f32 0.0, %v1901
      %1903 = vmatmul.f32.gmra.mxu0 %v1666
      %v1904 = vpop.f32.mrf.mxu0
      %v1905 = vadd.f32 0.0, %v1904
      %1906 = vdwg.mxu0
      %v1908 = vsel %vm1722, %v1841, 0
      %v1911 = vsel %vm1722, %v1870, 0
      %v1914 = vsel %vm1722, %v1873, 0
      %1916 = vmatpush.xpose.msra.mxu0 0.0
      %1917 = vmatpush.xpose.msra.mxu0 0.0
      %1918 = vmatpush.xpose.msra.mxu0 0.0
      %1919 = vmatpush.xpose.msra.mxu0 0.0
      %1920 = vmatpush.xpose.msra.mxu0 0.0
      %1921 = vmatpush.xpose.msra.mxu0 0.0
      %1922 = vmatpush.xpose.msra.mxu0 0.0
      %1923 = vmatpush.xpose.msra.mxu0 0.0
      %1924 = vmatpush.xpose.msra.mxu0 0.0
      %1925 = vmatpush.xpose.msra.mxu0 0.0
      %1926 = vmatpush.xpose.msra.mxu0 0.0
      %1927 = vmatpush.xpose.msra.mxu0 0.0
      %1928 = vmatpush.xpose.msra.mxu0 0.0
      %1929 = vmatpush.xpose.msra.mxu0 0.0
      %1930 = vmatpush.xpose.msra.mxu0 %v1914
      %1931 = vmatpush.xpose.msra.mxu0 %v1911
      %1932 = vmatmul.f32.gmra.mxu0 %v1908
      %v1933 = vpop.f32.mrf.mxu0
      %v1934 = vadd.f32 0.0, %v1933
      %1935 = vdwg.mxu0
      %v1936 = vmul.f32 %v1934, 0.17677669
      %v1937 = vsel %vm1511, -1e+30, %v1936
      %v1938 = vsel %vm1754, %v1937, -inf
      %1939 = vmax.xlane.f32.xlu0 %v1938
      %v1940 = vpop.xlane.xlu0 %1939
      %v1941 = vsub.f32 %v1937, %v1940
      %v1942 = vmul.f32 %v1941, 1.442695
      %v1943 = vpow.pop %v1942
      %v1944 = vsel %vm1511, 0.0, %v1943
      %v1945 = vsel %vm1754, %v1944, 0.0
      %1946 = vadd.xlane.f32.xlu0 %v1945
      %v1947 = vpop.xlane.xlu0 %1946
      %vm1948 = vcmp.gt.f32.partialorder %v1947, 0.0
      %v1949 = vsel %vm1948, %v1947, 1.0
      %v1950 = vrcp.pop %v1949
      %v1951 = vmul.f32 %v1949, %v1950
      %v1952 = vsub.f32 1.0, %v1951
      %v1953 = vmul.f32 %v1950, %v1952
      %v1954 = vadd.f32 %v1950, %v1953
      %vm1955 = vweird.f32 %v1949
      %vm1956 = vweird.f32 %v1950
      %vm1957 = vmor %vm1955, %vm1956
      %v1958 = vsel %vm1957, %v1950, %v1954
      %v1959 = vand.u32 2147483647, %v1949
      %vm1960 = vcmp.eq.f32.partialorder %v1959, 8.507059e+37
      %v1961 = vand.u32 %v1949, 2147483648
      %v1962 = vor.u32 1.1754944e-38, %v1961
      %v1963 = vsel %vm1960, %v1962, %v1958
      %v1964 = vmul.f32 %v1944, %v1963
      %v1966 = vsel %vm1782, %v1964, 0
      %v1969 = vsel %vm1786, %v1905, 0
      %1971 = vmatpush.msra.mxu0 0.0
      %1972 = vmatpush.msra.mxu0 0.0
      %1973 = vmatpush.msra.mxu0 0.0
      %1974 = vmatpush.msra.mxu0 0.0
      %1975 = vmatpush.msra.mxu0 0.0
      %1976 = vmatpush.msra.mxu0 0.0
      %1977 = vmatpush.msra.mxu0 0.0
      %1978 = vmatpush.msra.mxu0 0.0
      %1979 = vmatpush.msra.mxu0 0.0
      %1980 = vmatpush.msra.mxu0 0.0
      %1981 = vmatpush.msra.mxu0 0.0
      %1982 = vmatpush.msra.mxu0 0.0
      %1983 = vmatpush.msra.mxu0 0.0
      %1984 = vmatpush.msra.mxu0 0.0
      %1985 = vmatpush.msra.mxu0 %v1969
      %1986 = vmatpush.msra.mxu0 %v1902
      %1987 = vmatmul.f32.gmra.mxu0 %v1966
      %v1988 = vpop.f32.mrf.mxu0
      %v1989 = vadd.f32 0.0, %v1988
      %1990 = vdwg.mxu0
      %s1991 = scalar_lea.vmem %s29, 32
      %v1992 = vld [vmem:[%s1991] sm:$0xff]
      %v1993 = vld [vmem:[%s1991 + $0x8] sm:$0xff]
      %v1994 = vld [vmem:[%s1991 + $0x10] sm:$0xff]
      %v1995 = vld [vmem:[%s1991 + $0x18] sm:$0xff]
      %v1997 = vsel %vm1722, %v1989, 0
      %1999 = vmatpush.msra.mxu0 0.0
      %2000 = vmatpush.msra.mxu0 0.0
      %2001 = vmatpush.msra.mxu0 0.0
      %2002 = vmatpush.msra.mxu0 0.0
      %2003 = vmatpush.msra.mxu0 0.0
      %2004 = vmatpush.msra.mxu0 0.0
      %2005 = vmatpush.msra.mxu0 0.0
      %2006 = vmatpush.msra.mxu0 0.0
      %2007 = vmatpush.msra.mxu0 0.0
      %2008 = vmatpush.msra.mxu0 0.0
      %2009 = vmatpush.msra.mxu0 0.0
      %2010 = vmatpush.msra.mxu0 0.0
      %2011 = vmatpush.msra.mxu0 %v1995
      %2012 = vmatpush.msra.mxu0 %v1994
      %2013 = vmatpush.msra.mxu0 %v1993
      %2014 = vmatpush.msra.mxu0 %v1992
      %2015 = vmatmul.f32.gmra.mxu0 %v1997
      %v2016 = vpop.f32.mrf.mxu0
      %v2017 = vadd.f32 0.0, %v2016
      %2018 = vdwg.mxu0
      %v2020 = vsel %vm1722, %v1808, 0
      %2022 = vmatpush.msra.mxu0 0.0
      %2023 = vmatpush.msra.mxu0 0.0
      %2024 = vmatpush.msra.mxu0 0.0
      %2025 = vmatpush.msra.mxu0 0.0
      %2026 = vmatpush.msra.mxu0 0.0
      %2027 = vmatpush.msra.mxu0 0.0
      %2028 = vmatpush.msra.mxu0 0.0
      %2029 = vmatpush.msra.mxu0 0.0
      %2030 = vmatpush.msra.mxu0 0.0
      %2031 = vmatpush.msra.mxu0 0.0
      %2032 = vmatpush.msra.mxu0 0.0
      %2033 = vmatpush.msra.mxu0 0.0
      %2034 = vmatpush.msra.mxu0 %v1813
      %2035 = vmatpush.msra.mxu0 %v1812
      %2036 = vmatpush.msra.mxu0 %v1811
      %2037 = vmatpush.msra.mxu0 %v1810
      %2038 = vmatmul.f32.gmra.mxu0 %v2020
      %v2039 = vpop.f32.mrf.mxu0
      %v2040 = vadd.f32 %v2017, %v2039
      %2041 = vdwg.mxu0
      %v2042 = vld [vmem:[%s31] sm:$0x1]
      %v2044 = vperm.slane %v2042, 0
      %v2046 = vadd.f32 %v2040, %v2044
      %vm2047 = vcmp.gt.f32.partialorder %v1514, 0.0
      %v2048 = vsel %vm2047, 1, 0
      %2049 = vset.pattern.permute.xlu0 0
      %2050 = vperm.xlu0 %2049, %v2048
      %v2051 = vpop.permute.xlu0 %2050
      %vm2052 = vcmp.eq.s32.totalorder %v2051, 1
      %v2053 = vsel %vm2052, 0.0, %v2046
      %v2054 = vld [vmem:[%s33] sm:$0xff]
      %v2055 = vld [vmem:[%s33 + $0x8] sm:$0xff]
      %v2056 = vld [vmem:[%s33 + $0x10] sm:$0xff]
      %v2057 = vld [vmem:[%s33 + $0x18] sm:$0xff]
      %v2058 = vld [vmem:[%s33 + $0x20] sm:$0xff]
      %v2059 = vld [vmem:[%s33 + $0x28] sm:$0xff]
      %v2060 = vld [vmem:[%s33 + $0x30] sm:$0xff]
      %v2061 = vld [vmem:[%s33 + $0x38] sm:$0xff]
      %v2063 = vsel %vm1633, %v1589, 0
      %2065 = vmatpush.msra.mxu0 0.0
      %2066 = vmatpush.msra.mxu0 0.0
      %2067 = vmatpush.msra.mxu0 0.0
      %2068 = vmatpush.msra.mxu0 0.0
      %2069 = vmatpush.msra.mxu0 0.0
      %2070 = vmatpush.msra.mxu0 0.0
      %2071 = vmatpush.msra.mxu0 0.0
      %2072 = vmatpush.msra.mxu0 0.0
      %2073 = vmatpush.msra.mxu0 %v2061
      %2074 = vmatpush.msra.mxu0 %v2060
      %2075 = vmatpush.msra.mxu0 %v2059
      %2076 = vmatpush.msra.mxu0 %v2058
      %2077 = vmatpush.msra.mxu0 %v2057
      %2078 = vmatpush.msra.mxu0 %v2056
      %2079 = vmatpush.msra.mxu0 %v2055
      %2080 = vmatpush.msra.mxu0 %v2054
      %2081 = vmatmul.f32.gmra.mxu0 %v2063
      %v2082 = vpop.f32.mrf.mxu0
      %v2083 = vadd.f32 0.0, %v2082
      %2084 = vdwg.mxu0
      %v2085 = vld [vmem:[%s35] sm:$0xff]
      %v2086 = vld [vmem:[%s35 + $0x8] sm:$0xff]
      %v2087 = vld [vmem:[%s35 + $0x10] sm:$0xff]
      %v2088 = vld [vmem:[%s35 + $0x18] sm:$0xff]
      %v2089 = vld [vmem:[%s35 + $0x20] sm:$0xff]
      %v2090 = vld [vmem:[%s35 + $0x28] sm:$0xff]
      %v2091 = vld [vmem:[%s35 + $0x30] sm:$0xff]
      %v2092 = vld [vmem:[%s35 + $0x38] sm:$0xff]
      %v2094 = vsel %vm1633, %v1590, 0
      %2096 = vmatpush.msra.mxu0 0.0
      %2097 = vmatpush.msra.mxu0 0.0
      %2098 = vmatpush.msra.mxu0 0.0
      %2099 = vmatpush.msra.mxu0 0.0
      %2100 = vmatpush.msra.mxu0 0.0
      %2101 = vmatpush.msra.mxu0 0.0
      %2102 = vmatpush.msra.mxu0 0.0
      %2103 = vmatpush.msra.mxu0 0.0
      %2104 = vmatpush.msra.mxu0 %v2092
      %2105 = vmatpush.msra.mxu0 %v2091
      %2106 = vmatpush.msra.mxu0 %v2090
      %2107 = vmatpush.msra.mxu0 %v2089
      %2108 = vmatpush.msra.mxu0 %v2088
      %2109 = vmatpush.msra.mxu0 %v2087
      %2110 = vmatpush.msra.mxu0 %v2086
      %2111 = vmatpush.msra.mxu0 %v2085
      %2112 = vmatmul.f32.gmra.mxu0 %v2063
      %v2113 = vpop.f32.mrf.mxu0
      %v2114 = vadd.f32 0.0, %v2113
      %2115 = vmatmul.f32.gmra.mxu0 %v2094
      %v2116 = vpop.f32.mrf.mxu0
      %v2117 = vadd.f32 0.0, %v2116
      %2118 = vdwg.mxu0
      %v2119 = vld [vmem:[%s37] sm:$0xff]
      %v2120 = vld [vmem:[%s37 + $0x8] sm:$0xff]
      %v2121 = vld [vmem:[%s37 + $0x10] sm:$0xff]
      %v2122 = vld [vmem:[%s37 + $0x18] sm:$0xff]
      %v2123 = vld [vmem:[%s37 + $0x20] sm:$0xff]
      %v2124 = vld [vmem:[%s37 + $0x28] sm:$0xff]
      %v2125 = vld [vmem:[%s37 + $0x30] sm:$0xff]
      %v2126 = vld [vmem:[%s37 + $0x38] sm:$0xff]
      %2127 = vmatpush.msra.mxu0 0.0
      %2128 = vmatpush.msra.mxu0 0.0
      %2129 = vmatpush.msra.mxu0 0.0
      %2130 = vmatpush.msra.mxu0 0.0
      %2131 = vmatpush.msra.mxu0 0.0
      %2132 = vmatpush.msra.mxu0 0.0
      %2133 = vmatpush.msra.mxu0 0.0
      %2134 = vmatpush.msra.mxu0 0.0
      %2135 = vmatpush.msra.mxu0 %v2126
      %2136 = vmatpush.msra.mxu0 %v2125
      %2137 = vmatpush.msra.mxu0 %v2124
      %2138 = vmatpush.msra.mxu0 %v2123
      %2139 = vmatpush.msra.mxu0 %v2122
      %2140 = vmatpush.msra.mxu0 %v2121
      %2141 = vmatpush.msra.mxu0 %v2120
      %2142 = vmatpush.msra.mxu0 %v2119
      %2143 = vmatmul.f32.gmra.mxu0 %v2063
      %v2144 = vpop.f32.mrf.mxu0
      %v2145 = vadd.f32 0.0, %v2144
      %2146 = vmatmul.f32.gmra.mxu0 %v2094
      %v2147 = vpop.f32.mrf.mxu0
      %v2148 = vadd.f32 0.0, %v2147
      %2149 = vdwg.mxu0
      %v2151 = vsel %vm1722, %v2083, 0
      %v2154 = vsel %vm1722, %v2114, 0
      %v2157 = vsel %vm1722, %v2117, 0
      %2159 = vmatpush.xpose.msra.mxu0 0.0
      %2160 = vmatpush.xpose.msra.mxu0 0.0
      %2161 = vmatpush.xpose.msra.mxu0 0.0
      %2162 = vmatpush.xpose.msra.mxu0 0.0
      %2163 = vmatpush.xpose.msra.mxu0 0.0
      %2164 = vmatpush.xpose.msra.mxu0 0.0
      %2165 = vmatpush.xpose.msra.mxu0 0.0
      %2166 = vmatpush.xpose.msra.mxu0 0.0
      %2167 = vmatpush.xpose.msra.mxu0 0.0
      %2168 = vmatpush.xpose.msra.mxu0 0.0
      %2169 = vmatpush.xpose.msra.mxu0 0.0
      %2170 = vmatpush.xpose.msra.mxu0 0.0
      %2171 = vmatpush.xpose.msra.mxu0 0.0
      %2172 = vmatpush.xpose.msra.mxu0 0.0
      %2173 = vmatpush.xpose.msra.mxu0 %v2157
      %2174 = vmatpush.xpose.msra.mxu0 %v2154
      %2175 = vmatmul.f32.gmra.mxu0 %v2151
      %v2176 = vpop.f32.mrf.mxu0
      %v2177 = vadd.f32 0.0, %v2176
      %2178 = vdwg.mxu0
      %v2179 = vmul.f32 %v2177, 0.17677669
      %v2180 = vsel %vm1511, -1e+30, %v2179
      %v2181 = vsel %vm1754, %v2180, -inf
      %2182 = vmax.xlane.f32.xlu0 %v2181
      %v2183 = vpop.xlane.xlu0 %2182
      %v2184 = vsub.f32 %v2180, %v2183
      %v2185 = vmul.f32 %v2184, 1.442695
      %v2186 = vpow.pop %v2185
      %v2187 = vsel %vm1511, 0.0, %v2186
      %v2188 = vsel %vm1754, %v2187, 0.0
      %2189 = vadd.xlane.f32.xlu0 %v2188
      %v2190 = vpop.xlane.xlu0 %2189
      %vm2191 = vcmp.gt.f32.partialorder %v2190, 0.0
      %v2192 = vsel %vm2191, %v2190, 1.0
      %v2193 = vrcp.pop %v2192
      %v2194 = vmul.f32 %v2192, %v2193
      %v2195 = vsub.f32 1.0, %v2194
      %v2196 = vmul.f32 %v2193, %v2195
      %v2197 = vadd.f32 %v2193, %v2196
      %vm2198 = vweird.f32 %v2192
      %vm2199 = vweird.f32 %v2193
      %vm2200 = vmor %vm2198, %vm2199
      %v2201 = vsel %vm2200, %v2193, %v2197
      %v2202 = vand.u32 2147483647, %v2192
      %vm2203 = vcmp.eq.f32.partialorder %v2202, 8.507059e+37
      %v2204 = vand.u32 %v2192, 2147483648
      %v2205 = vor.u32 1.1754944e-38, %v2204
      %v2206 = vsel %vm2203, %v2205, %v2201
      %v2207 = vmul.f32 %v2187, %v2206
      %v2209 = vsel %vm1782, %v2207, 0
      %v2212 = vsel %vm1786, %v2148, 0
      %2214 = vmatpush.msra.mxu0 0.0
      %2215 = vmatpush.msra.mxu0 0.0
      %2216 = vmatpush.msra.mxu0 0.0
      %2217 = vmatpush.msra.mxu0 0.0
      %2218 = vmatpush.msra.mxu0 0.0
      %2219 = vmatpush.msra.mxu0 0.0
      %2220 = vmatpush.msra.mxu0 0.0
      %2221 = vmatpush.msra.mxu0 0.0
      %2222 = vmatpush.msra.mxu0 0.0
      %2223 = vmatpush.msra.mxu0 0.0
      %2224 = vmatpush.msra.mxu0 0.0
      %2225 = vmatpush.msra.mxu0 0.0
      %2226 = vmatpush.msra.mxu0 0.0
      %2227 = vmatpush.msra.mxu0 0.0
      %2228 = vmatpush.msra.mxu0 %v2212
      %2229 = vmatpush.msra.mxu0 %v2145
      %2230 = vmatmul.f32.gmra.mxu0 %v2209
      %v2231 = vpop.f32.mrf.mxu0
      %v2232 = vadd.f32 0.0, %v2231
      %2233 = vdwg.mxu0
      %v2234 = vld [vmem:[%s39] sm:$0xff]
      %v2235 = vld [vmem:[%s39 + $0x8] sm:$0xff]
      %v2236 = vld [vmem:[%s39 + $0x10] sm:$0xff]
      %v2237 = vld [vmem:[%s39 + $0x18] sm:$0xff]
      %s2238 = scalar_lea.vmem %s33, 64
      %v2239 = vld [vmem:[%s2238] sm:$0xff]
      %v2240 = vld [vmem:[%s2238 + $0x8] sm:$0xff]
      %v2241 = vld [vmem:[%s2238 + $0x10] sm:$0xff]
      %v2242 = vld [vmem:[%s2238 + $0x18] sm:$0xff]
      %v2243 = vld [vmem:[%s2238 + $0x20] sm:$0xff]
      %v2244 = vld [vmem:[%s2238 + $0x28] sm:$0xff]
      %v2245 = vld [vmem:[%s2238 + $0x30] sm:$0xff]
      %v2246 = vld [vmem:[%s2238 + $0x38] sm:$0xff]
      %2247 = vmatpush.msra.mxu0 0.0
      %2248 = vmatpush.msra.mxu0 0.0
      %2249 = vmatpush.msra.mxu0 0.0
      %2250 = vmatpush.msra.mxu0 0.0
      %2251 = vmatpush.msra.mxu0 0.0
      %2252 = vmatpush.msra.mxu0 0.0
      %2253 = vmatpush.msra.mxu0 0.0
      %2254 = vmatpush.msra.mxu0 0.0
      %2255 = vmatpush.msra.mxu0 %v2246
      %2256 = vmatpush.msra.mxu0 %v2245
      %2257 = vmatpush.msra.mxu0 %v2244
      %2258 = vmatpush.msra.mxu0 %v2243
      %2259 = vmatpush.msra.mxu0 %v2242
      %2260 = vmatpush.msra.mxu0 %v2241
      %2261 = vmatpush.msra.mxu0 %v2240
      %2262 = vmatpush.msra.mxu0 %v2239
      %2263 = vmatmul.f32.gmra.mxu0 %v2063
      %v2264 = vpop.f32.mrf.mxu0
      %v2265 = vadd.f32 0.0, %v2264
      %2266 = vdwg.mxu0
      %s2267 = scalar_lea.vmem %s35, 64
      %v2268 = vld [vmem:[%s2267] sm:$0xff]
      %v2269 = vld [vmem:[%s2267 + $0x8] sm:$0xff]
      %v2270 = vld [vmem:[%s2267 + $0x10] sm:$0xff]
      %v2271 = vld [vmem:[%s2267 + $0x18] sm:$0xff]
      %v2272 = vld [vmem:[%s2267 + $0x20] sm:$0xff]
      %v2273 = vld [vmem:[%s2267 + $0x28] sm:$0xff]
      %v2274 = vld [vmem:[%s2267 + $0x30] sm:$0xff]
      %v2275 = vld [vmem:[%s2267 + $0x38] sm:$0xff]
      %2276 = vmatpush.msra.mxu0 0.0
      %2277 = vmatpush.msra.mxu0 0.0
      %2278 = vmatpush.msra.mxu0 0.0
      %2279 = vmatpush.msra.mxu0 0.0
      %2280 = vmatpush.msra.mxu0 0.0
      %2281 = vmatpush.msra.mxu0 0.0
      %2282 = vmatpush.msra.mxu0 0.0
      %2283 = vmatpush.msra.mxu0 0.0
      %2284 = vmatpush.msra.mxu0 %v2275
      %2285 = vmatpush.msra.mxu0 %v2274
      %2286 = vmatpush.msra.mxu0 %v2273
      %2287 = vmatpush.msra.mxu0 %v2272
      %2288 = vmatpush.msra.mxu0 %v2271
      %2289 = vmatpush.msra.mxu0 %v2270
      %2290 = vmatpush.msra.mxu0 %v2269
      %2291 = vmatpush.msra.mxu0 %v2268
      %2292 = vmatmul.f32.gmra.mxu0 %v2063
      %v2293 = vpop.f32.mrf.mxu0
      %v2294 = vadd.f32 0.0, %v2293
      %2295 = vmatmul.f32.gmra.mxu0 %v2094
      %v2296 = vpop.f32.mrf.mxu0
      %v2297 = vadd.f32 0.0, %v2296
      %2298 = vdwg.mxu0
      %s2299 = scalar_lea.vmem %s37, 64
      %v2300 = vld [vmem:[%s2299] sm:$0xff]
      %v2301 = vld [vmem:[%s2299 + $0x8] sm:$0xff]
      %v2302 = vld [vmem:[%s2299 + $0x10] sm:$0xff]
      %v2303 = vld [vmem:[%s2299 + $0x18] sm:$0xff]
      %v2304 = vld [vmem:[%s2299 + $0x20] sm:$0xff]
      %v2305 = vld [vmem:[%s2299 + $0x28] sm:$0xff]
      %v2306 = vld [vmem:[%s2299 + $0x30] sm:$0xff]
      %v2307 = vld [vmem:[%s2299 + $0x38] sm:$0xff]
      %2308 = vmatpush.msra.mxu0 0.0
      %2309 = vmatpush.msra.mxu0 0.0
      %2310 = vmatpush.msra.mxu0 0.0
      %2311 = vmatpush.msra.mxu0 0.0
      %2312 = vmatpush.msra.mxu0 0.0
      %2313 = vmatpush.msra.mxu0 0.0
      %2314 = vmatpush.msra.mxu0 0.0
      %2315 = vmatpush.msra.mxu0 0.0
      %2316 = vmatpush.msra.mxu0 %v2307
      %2317 = vmatpush.msra.mxu0 %v2306
      %2318 = vmatpush.msra.mxu0 %v2305
      %2319 = vmatpush.msra.mxu0 %v2304
      %2320 = vmatpush.msra.mxu0 %v2303
      %2321 = vmatpush.msra.mxu0 %v2302
      %2322 = vmatpush.msra.mxu0 %v2301
      %2323 = vmatpush.msra.mxu0 %v2300
      %2324 = vmatmul.f32.gmra.mxu0 %v2063
      %v2325 = vpop.f32.mrf.mxu0
      %v2326 = vadd.f32 0.0, %v2325
      %2327 = vmatmul.f32.gmra.mxu0 %v2094
      %v2328 = vpop.f32.mrf.mxu0
      %v2329 = vadd.f32 0.0, %v2328
      %2330 = vdwg.mxu0
      %v2332 = vsel %vm1722, %v2265, 0
      %v2335 = vsel %vm1722, %v2294, 0
      %v2338 = vsel %vm1722, %v2297, 0
      %2340 = vmatpush.xpose.msra.mxu0 0.0
      %2341 = vmatpush.xpose.msra.mxu0 0.0
      %2342 = vmatpush.xpose.msra.mxu0 0.0
      %2343 = vmatpush.xpose.msra.mxu0 0.0
      %2344 = vmatpush.xpose.msra.mxu0 0.0
      %2345 = vmatpush.xpose.msra.mxu0 0.0
      %2346 = vmatpush.xpose.msra.mxu0 0.0
      %2347 = vmatpush.xpose.msra.mxu0 0.0
      %2348 = vmatpush.xpose.msra.mxu0 0.0
      %2349 = vmatpush.xpose.msra.mxu0 0.0
      %2350 = vmatpush.xpose.msra.mxu0 0.0
      %2351 = vmatpush.xpose.msra.mxu0 0.0
      %2352 = vmatpush.xpose.msra.mxu0 0.0
      %2353 = vmatpush.xpose.msra.mxu0 0.0
      %2354 = vmatpush.xpose.msra.mxu0 %v2338
      %2355 = vmatpush.xpose.msra.mxu0 %v2335
      %2356 = vmatmul.f32.gmra.mxu0 %v2332
      %v2357 = vpop.f32.mrf.mxu0
      %v2358 = vadd.f32 0.0, %v2357
      %2359 = vdwg.mxu0
      %v2360 = vmul.f32 %v2358, 0.17677669
      %v2361 = vsel %vm1511, -1e+30, %v2360
      %v2362 = vsel %vm1754, %v2361, -inf
      %2363 = vmax.xlane.f32.xlu0 %v2362
      %v2364 = vpop.xlane.xlu0 %2363
      %v2365 = vsub.f32 %v2361, %v2364
      %v2366 = vmul.f32 %v2365, 1.442695
      %v2367 = vpow.pop %v2366
      %v2368 = vsel %vm1511, 0.0, %v2367
      %v2369 = vsel %vm1754, %v2368, 0.0
      %2370 = vadd.xlane.f32.xlu0 %v2369
      %v2371 = vpop.xlane.xlu0 %2370
      %vm2372 = vcmp.gt.f32.partialorder %v2371, 0.0
      %v2373 = vsel %vm2372, %v2371, 1.0
      %v2374 = vrcp.pop %v2373
      %v2375 = vmul.f32 %v2373, %v2374
      %v2376 = vsub.f32 1.0, %v2375
      %v2377 = vmul.f32 %v2374, %v2376
      %v2378 = vadd.f32 %v2374, %v2377
      %vm2379 = vweird.f32 %v2373
      %vm2380 = vweird.f32 %v2374
      %vm2381 = vmor %vm2379, %vm2380
      %v2382 = vsel %vm2381, %v2374, %v2378
      %v2383 = vand.u32 2147483647, %v2373
      %vm2384 = vcmp.eq.f32.partialorder %v2383, 8.507059e+37
      %v2385 = vand.u32 %v2373, 2147483648
      %v2386 = vor.u32 1.1754944e-38, %v2385
      %v2387 = vsel %vm2384, %v2386, %v2382
      %v2388 = vmul.f32 %v2368, %v2387
      %v2390 = vsel %vm1782, %v2388, 0
      %v2393 = vsel %vm1786, %v2329, 0
      %2395 = vmatpush.msra.mxu0 0.0
      %2396 = vmatpush.msra.mxu0 0.0
      %2397 = vmatpush.msra.mxu0 0.0
      %2398 = vmatpush.msra.mxu0 0.0
      %2399 = vmatpush.msra.mxu0 0.0
      %2400 = vmatpush.msra.mxu0 0.0
      %2401 = vmatpush.msra.mxu0 0.0
      %2402 = vmatpush.msra.mxu0 0.0
      %2403 = vmatpush.msra.mxu0 0.0
      %2404 = vmatpush.msra.mxu0 0.0
      %2405 = vmatpush.msra.mxu0 0.0
      %2406 = vmatpush.msra.mxu0 0.0
      %2407 = vmatpush.msra.mxu0 0.0
      %2408 = vmatpush.msra.mxu0 0.0
      %2409 = vmatpush.msra.mxu0 %v2393
      %2410 = vmatpush.msra.mxu0 %v2326
      %2411 = vmatmul.f32.gmra.mxu0 %v2390
      %v2412 = vpop.f32.mrf.mxu0
      %v2413 = vadd.f32 0.0, %v2412
      %2414 = vdwg.mxu0
      %s2415 = scalar_lea.vmem %s39, 32
      %v2416 = vld [vmem:[%s2415] sm:$0xff]
      %v2417 = vld [vmem:[%s2415 + $0x8] sm:$0xff]
      %v2418 = vld [vmem:[%s2415 + $0x10] sm:$0xff]
      %v2419 = vld [vmem:[%s2415 + $0x18] sm:$0xff]
      %v2421 = vsel %vm1722, %v2413, 0
      %2423 = vmatpush.msra.mxu0 0.0
      %2424 = vmatpush.msra.mxu0 0.0
      %2425 = vmatpush.msra.mxu0 0.0
      %2426 = vmatpush.msra.mxu0 0.0
      %2427 = vmatpush.msra.mxu0 0.0
      %2428 = vmatpush.msra.mxu0 0.0
      %2429 = vmatpush.msra.mxu0 0.0
      %2430 = vmatpush.msra.mxu0 0.0
      %2431 = vmatpush.msra.mxu0 0.0
      %2432 = vmatpush.msra.mxu0 0.0
      %2433 = vmatpush.msra.mxu0 0.0
      %2434 = vmatpush.msra.mxu0 0.0
      %2435 = vmatpush.msra.mxu0 %v2419
      %2436 = vmatpush.msra.mxu0 %v2418
      %2437 = vmatpush.msra.mxu0 %v2417
      %2438 = vmatpush.msra.mxu0 %v2416
      %2439 = vmatmul.f32.gmra.mxu0 %v2421
      %v2440 = vpop.f32.mrf.mxu0
      %v2441 = vadd.f32 0.0, %v2440
      %2442 = vdwg.mxu0
      %v2444 = vsel %vm1722, %v2232, 0
      %2446 = vmatpush.msra.mxu0 0.0
      %2447 = vmatpush.msra.mxu0 0.0
      %2448 = vmatpush.msra.mxu0 0.0
      %2449 = vmatpush.msra.mxu0 0.0
      %2450 = vmatpush.msra.mxu0 0.0
      %2451 = vmatpush.msra.mxu0 0.0
      %2452 = vmatpush.msra.mxu0 0.0
      %2453 = vmatpush.msra.mxu0 0.0
      %2454 = vmatpush.msra.mxu0 0.0
      %2455 = vmatpush.msra.mxu0 0.0
      %2456 = vmatpush.msra.mxu0 0.0
      %2457 = vmatpush.msra.mxu0 0.0
      %2458 = vmatpush.msra.mxu0 %v2237
      %2459 = vmatpush.msra.mxu0 %v2236
      %2460 = vmatpush.msra.mxu0 %v2235
      %2461 = vmatpush.msra.mxu0 %v2234
      %2462 = vmatmul.f32.gmra.mxu0 %v2444
      %v2463 = vpop.f32.mrf.mxu0
      %v2464 = vadd.f32 %v2441, %v2463
      %2465 = vdwg.mxu0
      %v2466 = vld [vmem:[%s41] sm:$0x1]
      %v2468 = vperm.slane %v2466, 0
      %v2470 = vadd.f32 %v2464, %v2468
      %v2471 = vsel %vm2052, 0.0, %v2470
      %v2472 = vld [vmem:[%s43] sm:$0xff]
      %v2473 = vld [vmem:[%s43 + $0x8] sm:$0xff]
      %v2474 = vld [vmem:[%s43 + $0x10] sm:$0xff]
      %v2475 = vld [vmem:[%s43 + $0x18] sm:$0xff]
      %v2476 = vld [vmem:[%s43 + $0x20] sm:$0xff]
      %v2477 = vld [vmem:[%s43 + $0x28] sm:$0xff]
      %v2478 = vld [vmem:[%s43 + $0x30] sm:$0xff]
      %v2479 = vld [vmem:[%s43 + $0x38] sm:$0xff]
      %v2481 = vsel %vm1633, %v1623, 0
      %2483 = vmatpush.msra.mxu0 0.0
      %2484 = vmatpush.msra.mxu0 0.0
      %2485 = vmatpush.msra.mxu0 0.0
      %2486 = vmatpush.msra.mxu0 0.0
      %2487 = vmatpush.msra.mxu0 0.0
      %2488 = vmatpush.msra.mxu0 0.0
      %2489 = vmatpush.msra.mxu0 0.0
      %2490 = vmatpush.msra.mxu0 0.0
      %2491 = vmatpush.msra.mxu0 %v2479
      %2492 = vmatpush.msra.mxu0 %v2478
      %2493 = vmatpush.msra.mxu0 %v2477
      %2494 = vmatpush.msra.mxu0 %v2476
      %2495 = vmatpush.msra.mxu0 %v2475
      %2496 = vmatpush.msra.mxu0 %v2474
      %2497 = vmatpush.msra.mxu0 %v2473
      %2498 = vmatpush.msra.mxu0 %v2472
      %2499 = vmatmul.f32.gmra.mxu0 %v2481
      %v2500 = vpop.f32.mrf.mxu0
      %v2501 = vadd.f32 0.0, %v2500
      %2502 = vdwg.mxu0
      %v2503 = vld [vmem:[%s45] sm:$0xff]
      %v2504 = vld [vmem:[%s45 + $0x8] sm:$0xff]
      %v2505 = vld [vmem:[%s45 + $0x10] sm:$0xff]
      %v2506 = vld [vmem:[%s45 + $0x18] sm:$0xff]
      %v2507 = vld [vmem:[%s45 + $0x20] sm:$0xff]
      %v2508 = vld [vmem:[%s45 + $0x28] sm:$0xff]
      %v2509 = vld [vmem:[%s45 + $0x30] sm:$0xff]
      %v2510 = vld [vmem:[%s45 + $0x38] sm:$0xff]
      %v2512 = vsel %vm1633, %v1624, 0
      %2514 = vmatpush.msra.mxu0 0.0
      %2515 = vmatpush.msra.mxu0 0.0
      %2516 = vmatpush.msra.mxu0 0.0
      %2517 = vmatpush.msra.mxu0 0.0
      %2518 = vmatpush.msra.mxu0 0.0
      %2519 = vmatpush.msra.mxu0 0.0
      %2520 = vmatpush.msra.mxu0 0.0
      %2521 = vmatpush.msra.mxu0 0.0
      %2522 = vmatpush.msra.mxu0 %v2510
      %2523 = vmatpush.msra.mxu0 %v2509
      %2524 = vmatpush.msra.mxu0 %v2508
      %2525 = vmatpush.msra.mxu0 %v2507
      %2526 = vmatpush.msra.mxu0 %v2506
      %2527 = vmatpush.msra.mxu0 %v2505
      %2528 = vmatpush.msra.mxu0 %v2504
      %2529 = vmatpush.msra.mxu0 %v2503
      %2530 = vmatmul.f32.gmra.mxu0 %v2481
      %v2531 = vpop.f32.mrf.mxu0
      %v2532 = vadd.f32 0.0, %v2531
      %2533 = vmatmul.f32.gmra.mxu0 %v2512
      %v2534 = vpop.f32.mrf.mxu0
      %v2535 = vadd.f32 0.0, %v2534
      %2536 = vdwg.mxu0
      %v2537 = vld [vmem:[%s47] sm:$0xff]
      %v2538 = vld [vmem:[%s47 + $0x8] sm:$0xff]
      %v2539 = vld [vmem:[%s47 + $0x10] sm:$0xff]
      %v2540 = vld [vmem:[%s47 + $0x18] sm:$0xff]
      %v2541 = vld [vmem:[%s47 + $0x20] sm:$0xff]
      %v2542 = vld [vmem:[%s47 + $0x28] sm:$0xff]
      %v2543 = vld [vmem:[%s47 + $0x30] sm:$0xff]
      %v2544 = vld [vmem:[%s47 + $0x38] sm:$0xff]
      %2545 = vmatpush.msra.mxu0 0.0
      %2546 = vmatpush.msra.mxu0 0.0
      %2547 = vmatpush.msra.mxu0 0.0
      %2548 = vmatpush.msra.mxu0 0.0
      %2549 = vmatpush.msra.mxu0 0.0
      %2550 = vmatpush.msra.mxu0 0.0
      %2551 = vmatpush.msra.mxu0 0.0
      %2552 = vmatpush.msra.mxu0 0.0
      %2553 = vmatpush.msra.mxu0 %v2544
      %2554 = vmatpush.msra.mxu0 %v2543
      %2555 = vmatpush.msra.mxu0 %v2542
      %2556 = vmatpush.msra.mxu0 %v2541
      %2557 = vmatpush.msra.mxu0 %v2540
      %2558 = vmatpush.msra.mxu0 %v2539
      %2559 = vmatpush.msra.mxu0 %v2538
      %2560 = vmatpush.msra.mxu0 %v2537
      %2561 = vmatmul.f32.gmra.mxu0 %v2481
      %v2562 = vpop.f32.mrf.mxu0
      %v2563 = vadd.f32 0.0, %v2562
      %2564 = vmatmul.f32.gmra.mxu0 %v2512
      %v2565 = vpop.f32.mrf.mxu0
      %v2566 = vadd.f32 0.0, %v2565
      %2567 = vdwg.mxu0
      %v2569 = vsel %vm1722, %v2501, 0
      %v2572 = vsel %vm1722, %v2532, 0
      %v2575 = vsel %vm1722, %v2535, 0
      %2577 = vmatpush.xpose.msra.mxu0 0.0
      %2578 = vmatpush.xpose.msra.mxu0 0.0
      %2579 = vmatpush.xpose.msra.mxu0 0.0
      %2580 = vmatpush.xpose.msra.mxu0 0.0
      %2581 = vmatpush.xpose.msra.mxu0 0.0
      %2582 = vmatpush.xpose.msra.mxu0 0.0
      %2583 = vmatpush.xpose.msra.mxu0 0.0
      %2584 = vmatpush.xpose.msra.mxu0 0.0
      %2585 = vmatpush.xpose.msra.mxu0 0.0
      %2586 = vmatpush.xpose.msra.mxu0 0.0
      %2587 = vmatpush.xpose.msra.mxu0 0.0
      %2588 = vmatpush.xpose.msra.mxu0 0.0
      %2589 = vmatpush.xpose.msra.mxu0 0.0
      %2590 = vmatpush.xpose.msra.mxu0 0.0
      %2591 = vmatpush.xpose.msra.mxu0 %v2575
      %2592 = vmatpush.xpose.msra.mxu0 %v2572
      %2593 = vmatmul.f32.gmra.mxu0 %v2569
      %v2594 = vpop.f32.mrf.mxu0
      %v2595 = vadd.f32 0.0, %v2594
      %2596 = vdwg.mxu0
      %v2597 = vmul.f32 %v2595, 0.17677669
      %v2598 = vsel %vm1511, -1e+30, %v2597
      %v2599 = vsel %vm1754, %v2598, -inf
      %2600 = vmax.xlane.f32.xlu0 %v2599
      %v2601 = vpop.xlane.xlu0 %2600
      %v2602 = vsub.f32 %v2598, %v2601
      %v2603 = vmul.f32 %v2602, 1.442695
      %v2604 = vpow.pop %v2603
      %v2605 = vsel %vm1511, 0.0, %v2604
      %v2606 = vsel %vm1754, %v2605, 0.0
      %2607 = vadd.xlane.f32.xlu0 %v2606
      %v2608 = vpop.xlane.xlu0 %2607
      %vm2609 = vcmp.gt.f32.partialorder %v2608, 0.0
      %v2610 = vsel %vm2609, %v2608, 1.0
      %v2611 = vrcp.pop %v2610
      %v2612 = vmul.f32 %v2610, %v2611
      %v2613 = vsub.f32 1.0, %v2612
      %v2614 = vmul.f32 %v2611, %v2613
      %v2615 = vadd.f32 %v2611, %v2614
      %vm2616 = vweird.f32 %v2610
      %vm2617 = vweird.f32 %v2611
      %vm2618 = vmor %vm2616, %vm2617
      %v2619 = vsel %vm2618, %v2611, %v2615
      %v2620 = vand.u32 2147483647, %v2610
      %vm2621 = vcmp.eq.f32.partialorder %v2620, 8.507059e+37
      %v2622 = vand.u32 %v2610, 2147483648
      %v2623 = vor.u32 1.1754944e-38, %v2622
      %v2624 = vsel %vm2621, %v2623, %v2619
      %v2625 = vmul.f32 %v2605, %v2624
      %v2627 = vsel %vm1782, %v2625, 0
      %v2630 = vsel %vm1786, %v2566, 0
      %2632 = vmatpush.msra.mxu0 0.0
      %2633 = vmatpush.msra.mxu0 0.0
      %2634 = vmatpush.msra.mxu0 0.0
      %2635 = vmatpush.msra.mxu0 0.0
      %2636 = vmatpush.msra.mxu0 0.0
      %2637 = vmatpush.msra.mxu0 0.0
      %2638 = vmatpush.msra.mxu0 0.0
      %2639 = vmatpush.msra.mxu0 0.0
      %2640 = vmatpush.msra.mxu0 0.0
      %2641 = vmatpush.msra.mxu0 0.0
      %2642 = vmatpush.msra.mxu0 0.0
      %2643 = vmatpush.msra.mxu0 0.0
      %2644 = vmatpush.msra.mxu0 0.0
      %2645 = vmatpush.msra.mxu0 0.0
      %2646 = vmatpush.msra.mxu0 %v2630
      %2647 = vmatpush.msra.mxu0 %v2563
      %2648 = vmatmul.f32.gmra.mxu0 %v2627
      %v2649 = vpop.f32.mrf.mxu0
      %v2650 = vadd.f32 0.0, %v2649
      %2651 = vdwg.mxu0
      %v2652 = vld [vmem:[%s49] sm:$0xff]
      %v2653 = vld [vmem:[%s49 + $0x8] sm:$0xff]
      %v2654 = vld [vmem:[%s49 + $0x10] sm:$0xff]
      %v2655 = vld [vmem:[%s49 + $0x18] sm:$0xff]
      %s2656 = scalar_lea.vmem %s43, 64
      %v2657 = vld [vmem:[%s2656] sm:$0xff]
      %v2658 = vld [vmem:[%s2656 + $0x8] sm:$0xff]
      %v2659 = vld [vmem:[%s2656 + $0x10] sm:$0xff]
      %v2660 = vld [vmem:[%s2656 + $0x18] sm:$0xff]
      %v2661 = vld [vmem:[%s2656 + $0x20] sm:$0xff]
      %v2662 = vld [vmem:[%s2656 + $0x28] sm:$0xff]
      %v2663 = vld [vmem:[%s2656 + $0x30] sm:$0xff]
      %v2664 = vld [vmem:[%s2656 + $0x38] sm:$0xff]
      %2665 = vmatpush.msra.mxu0 0.0
      %2666 = vmatpush.msra.mxu0 0.0
      %2667 = vmatpush.msra.mxu0 0.0
      %2668 = vmatpush.msra.mxu0 0.0
      %2669 = vmatpush.msra.mxu0 0.0
      %2670 = vmatpush.msra.mxu0 0.0
      %2671 = vmatpush.msra.mxu0 0.0
      %2672 = vmatpush.msra.mxu0 0.0
      %2673 = vmatpush.msra.mxu0 %v2664
      %2674 = vmatpush.msra.mxu0 %v2663
      %2675 = vmatpush.msra.mxu0 %v2662
      %2676 = vmatpush.msra.mxu0 %v2661
      %2677 = vmatpush.msra.mxu0 %v2660
      %2678 = vmatpush.msra.mxu0 %v2659
      %2679 = vmatpush.msra.mxu0 %v2658
      %2680 = vmatpush.msra.mxu0 %v2657
      %2681 = vmatmul.f32.gmra.mxu0 %v2481
      %v2682 = vpop.f32.mrf.mxu0
      %v2683 = vadd.f32 0.0, %v2682
      %2684 = vdwg.mxu0
      %s2685 = scalar_lea.vmem %s45, 64
      %v2686 = vld [vmem:[%s2685] sm:$0xff]
      %v2687 = vld [vmem:[%s2685 + $0x8] sm:$0xff]
      %v2688 = vld [vmem:[%s2685 + $0x10] sm:$0xff]
      %v2689 = vld [vmem:[%s2685 + $0x18] sm:$0xff]
      %v2690 = vld [vmem:[%s2685 + $0x20] sm:$0xff]
      %v2691 = vld [vmem:[%s2685 + $0x28] sm:$0xff]
      %v2692 = vld [vmem:[%s2685 + $0x30] sm:$0xff]
      %v2693 = vld [vmem:[%s2685 + $0x38] sm:$0xff]
      %2694 = vmatpush.msra.mxu0 0.0
      %2695 = vmatpush.msra.mxu0 0.0
      %2696 = vmatpush.msra.mxu0 0.0
      %2697 = vmatpush.msra.mxu0 0.0
      %2698 = vmatpush.msra.mxu0 0.0
      %2699 = vmatpush.msra.mxu0 0.0
      %2700 = vmatpush.msra.mxu0 0.0
      %2701 = vmatpush.msra.mxu0 0.0
      %2702 = vmatpush.msra.mxu0 %v2693
      %2703 = vmatpush.msra.mxu0 %v2692
      %2704 = vmatpush.msra.mxu0 %v2691
      %2705 = vmatpush.msra.mxu0 %v2690
      %2706 = vmatpush.msra.mxu0 %v2689
      %2707 = vmatpush.msra.mxu0 %v2688
      %2708 = vmatpush.msra.mxu0 %v2687
      %2709 = vmatpush.msra.mxu0 %v2686
      %2710 = vmatmul.f32.gmra.mxu0 %v2481
      %v2711 = vpop.f32.mrf.mxu0
      %v2712 = vadd.f32 0.0, %v2711
      %2713 = vmatmul.f32.gmra.mxu0 %v2512
      %v2714 = vpop.f32.mrf.mxu0
      %v2715 = vadd.f32 0.0, %v2714
      %2716 = vdwg.mxu0
      %s2717 = scalar_lea.vmem %s47, 64
      %v2718 = vld [vmem:[%s2717] sm:$0xff]
      %v2719 = vld [vmem:[%s2717 + $0x8] sm:$0xff]
      %v2720 = vld [vmem:[%s2717 + $0x10] sm:$0xff]
      %v2721 = vld [vmem:[%s2717 + $0x18] sm:$0xff]
      %v2722 = vld [vmem:[%s2717 + $0x20] sm:$0xff]
      %v2723 = vld [vmem:[%s2717 + $0x28] sm:$0xff]
      %v2724 = vld [vmem:[%s2717 + $0x30] sm:$0xff]
      %v2725 = vld [vmem:[%s2717 + $0x38] sm:$0xff]
      %2726 = vmatpush.msra.mxu0 0.0
      %2727 = vmatpush.msra.mxu0 0.0
      %2728 = vmatpush.msra.mxu0 0.0
      %2729 = vmatpush.msra.mxu0 0.0
      %2730 = vmatpush.msra.mxu0 0.0
      %2731 = vmatpush.msra.mxu0 0.0
      %2732 = vmatpush.msra.mxu0 0.0
      %2733 = vmatpush.msra.mxu0 0.0
      %2734 = vmatpush.msra.mxu0 %v2725
      %2735 = vmatpush.msra.mxu0 %v2724
      %2736 = vmatpush.msra.mxu0 %v2723
      %2737 = vmatpush.msra.mxu0 %v2722
      %2738 = vmatpush.msra.mxu0 %v2721
      %2739 = vmatpush.msra.mxu0 %v2720
      %2740 = vmatpush.msra.mxu0 %v2719
      %2741 = vmatpush.msra.mxu0 %v2718
      %2742 = vmatmul.f32.gmra.mxu0 %v2481
      %v2743 = vpop.f32.mrf.mxu0
      %v2744 = vadd.f32 0.0, %v2743
      %2745 = vmatmul.f32.gmra.mxu0 %v2512
      %v2746 = vpop.f32.mrf.mxu0
      %v2747 = vadd.f32 0.0, %v2746
      %2748 = vdwg.mxu0
      %v2750 = vsel %vm1722, %v2683, 0
      %v2753 = vsel %vm1722, %v2712, 0
      %v2756 = vsel %vm1722, %v2715, 0
      %2758 = vmatpush.xpose.msra.mxu0 0.0
      %2759 = vmatpush.xpose.msra.mxu0 0.0
      %2760 = vmatpush.xpose.msra.mxu0 0.0
      %2761 = vmatpush.xpose.msra.mxu0 0.0
      %2762 = vmatpush.xpose.msra.mxu0 0.0
      %2763 = vmatpush.xpose.msra.mxu0 0.0
      %2764 = vmatpush.xpose.msra.mxu0 0.0
      %2765 = vmatpush.xpose.msra.mxu0 0.0
      %2766 = vmatpush.xpose.msra.mxu0 0.0
      %2767 = vmatpush.xpose.msra.mxu0 0.0
      %2768 = vmatpush.xpose.msra.mxu0 0.0
      %2769 = vmatpush.xpose.msra.mxu0 0.0
      %2770 = vmatpush.xpose.msra.mxu0 0.0
      %2771 = vmatpush.xpose.msra.mxu0 0.0
      %2772 = vmatpush.xpose.msra.mxu0 %v2756
      %2773 = vmatpush.xpose.msra.mxu0 %v2753
      %2774 = vmatmul.f32.gmra.mxu0 %v2750
      %v2775 = vpop.f32.mrf.mxu0
      %v2776 = vadd.f32 0.0, %v2775
      %2777 = vdwg.mxu0
      %v2778 = vmul.f32 %v2776, 0.17677669
      %v2779 = vsel %vm1511, -1e+30, %v2778
      %v2780 = vsel %vm1754, %v2779, -inf
      %2781 = vmax.xlane.f32.xlu0 %v2780
      %v2782 = vpop.xlane.xlu0 %2781
      %v2783 = vsub.f32 %v2779, %v2782
      %v2784 = vmul.f32 %v2783, 1.442695
      %v2785 = vpow.pop %v2784
      %v2786 = vsel %vm1511, 0.0, %v2785
      %v2787 = vsel %vm1754, %v2786, 0.0
      %2788 = vadd.xlane.f32.xlu0 %v2787
      %v2789 = vpop.xlane.xlu0 %2788
      %vm2790 = vcmp.gt.f32.partialorder %v2789, 0.0
      %v2791 = vsel %vm2790, %v2789, 1.0
      %v2792 = vrcp.pop %v2791
      %v2793 = vmul.f32 %v2791, %v2792
      %v2794 = vsub.f32 1.0, %v2793
      %v2795 = vmul.f32 %v2792, %v2794
      %v2796 = vadd.f32 %v2792, %v2795
      %vm2797 = vweird.f32 %v2791
      %vm2798 = vweird.f32 %v2792
      %vm2799 = vmor %vm2797, %vm2798
      %v2800 = vsel %vm2799, %v2792, %v2796
      %v2801 = vand.u32 2147483647, %v2791
      %vm2802 = vcmp.eq.f32.partialorder %v2801, 8.507059e+37
      %v2803 = vand.u32 %v2791, 2147483648
      %v2804 = vor.u32 1.1754944e-38, %v2803
      %v2805 = vsel %vm2802, %v2804, %v2800
      %v2806 = vmul.f32 %v2786, %v2805
      %v2808 = vsel %vm1782, %v2806, 0
      %v2811 = vsel %vm1786, %v2747, 0
      %2813 = vmatpush.msra.mxu0 0.0
      %2814 = vmatpush.msra.mxu0 0.0
      %2815 = vmatpush.msra.mxu0 0.0
      %2816 = vmatpush.msra.mxu0 0.0
      %2817 = vmatpush.msra.mxu0 0.0
      %2818 = vmatpush.msra.mxu0 0.0
      %2819 = vmatpush.msra.mxu0 0.0
      %2820 = vmatpush.msra.mxu0 0.0
      %2821 = vmatpush.msra.mxu0 0.0
      %2822 = vmatpush.msra.mxu0 0.0
      %2823 = vmatpush.msra.mxu0 0.0
      %2824 = vmatpush.msra.mxu0 0.0
      %2825 = vmatpush.msra.mxu0 0.0
      %2826 = vmatpush.msra.mxu0 0.0
      %2827 = vmatpush.msra.mxu0 %v2811
      %2828 = vmatpush.msra.mxu0 %v2744
      %2829 = vmatmul.f32.gmra.mxu0 %v2808
      %v2830 = vpop.f32.mrf.mxu0
      %v2831 = vadd.f32 0.0, %v2830
      %2832 = vdwg.mxu0
      %s2833 = scalar_lea.vmem %s49, 32
      %v2834 = vld [vmem:[%s2833] sm:$0xff]
      %v2835 = vld [vmem:[%s2833 + $0x8] sm:$0xff]
      %v2836 = vld [vmem:[%s2833 + $0x10] sm:$0xff]
      %v2837 = vld [vmem:[%s2833 + $0x18] sm:$0xff]
      %v2839 = vsel %vm1722, %v2831, 0
      %2841 = vmatpush.msra.mxu0 0.0
      %2842 = vmatpush.msra.mxu0 0.0
      %2843 = vmatpush.msra.mxu0 0.0
      %2844 = vmatpush.msra.mxu0 0.0
      %2845 = vmatpush.msra.mxu0 0.0
      %2846 = vmatpush.msra.mxu0 0.0
      %2847 = vmatpush.msra.mxu0 0.0
      %2848 = vmatpush.msra.mxu0 0.0
      %2849 = vmatpush.msra.mxu0 0.0
      %2850 = vmatpush.msra.mxu0 0.0
      %2851 = vmatpush.msra.mxu0 0.0
      %2852 = vmatpush.msra.mxu0 0.0
      %2853 = vmatpush.msra.mxu0 %v2837
      %2854 = vmatpush.msra.mxu0 %v2836
      %2855 = vmatpush.msra.mxu0 %v2835
      %2856 = vmatpush.msra.mxu0 %v2834
      %2857 = vmatmul.f32.gmra.mxu0 %v2839
      %v2858 = vpop.f32.mrf.mxu0
      %v2859 = vadd.f32 0.0, %v2858
      %2860 = vdwg.mxu0
      %v2862 = vsel %vm1722, %v2650, 0
      %2864 = vmatpush.msra.mxu0 0.0
      %2865 = vmatpush.msra.mxu0 0.0
      %2866 = vmatpush.msra.mxu0 0.0
      %2867 = vmatpush.msra.mxu0 0.0
      %2868 = vmatpush.msra.mxu0 0.0
      %2869 = vmatpush.msra.mxu0 0.0
      %2870 = vmatpush.msra.mxu0 0.0
      %2871 = vmatpush.msra.mxu0 0.0
      %2872 = vmatpush.msra.mxu0 0.0
      %2873 = vmatpush.msra.mxu0 0.0
      %2874 = vmatpush.msra.mxu0 0.0
      %2875 = vmatpush.msra.mxu0 0.0
      %2876 = vmatpush.msra.mxu0 %v2655
      %2877 = vmatpush.msra.mxu0 %v2654
      %2878 = vmatpush.msra.mxu0 %v2653
      %2879 = vmatpush.msra.mxu0 %v2652
      %2880 = vmatmul.f32.gmra.mxu0 %v2862
      %v2881 = vpop.f32.mrf.mxu0
      %v2882 = vadd.f32 %v2859, %v2881
      %2883 = vdwg.mxu0
      %v2884 = vld [vmem:[%s51] sm:$0x1]
      %v2886 = vperm.slane %v2884, 0
      %v2888 = vadd.f32 %v2882, %v2886
      %v2889 = vsel %vm2052, 0.0, %v2888
      %v2890 = vld [vmem:[%s63] sm:$0xff]
      %v2891 = vld [vmem:[%s63 + $0x8] sm:$0xff]
      %v2892 = vld [vmem:[%s63 + $0x10] sm:$0xff]
      %v2893 = vld [vmem:[%s63 + $0x18] sm:$0xff]
      %v2894 = vld [vmem:[%s63 + $0x20] sm:$0xff]
      %v2895 = vld [vmem:[%s63 + $0x28] sm:$0xff]
      %v2896 = vld [vmem:[%s63 + $0x30] sm:$0xff]
      %v2897 = vld [vmem:[%s63 + $0x38] sm:$0xff]
      %v2898 = vld [vmem:[%s65] sm:$0x1]
      %v2900 = vperm.slane %v2898, 0
      %v2903 = vsel %vm1633, %v2889, 0
      %2905 = vmatpush.msra.mxu0 0.0
      %2906 = vmatpush.msra.mxu0 0.0
      %2907 = vmatpush.msra.mxu0 0.0
      %2908 = vmatpush.msra.mxu0 0.0
      %2909 = vmatpush.msra.mxu0 0.0
      %2910 = vmatpush.msra.mxu0 0.0
      %2911 = vmatpush.msra.mxu0 0.0
      %2912 = vmatpush.msra.mxu0 0.0
      %2913 = vmatpush.msra.mxu0 %v2897
      %2914 = vmatpush.msra.mxu0 %v2896
      %2915 = vmatpush.msra.mxu0 %v2895
      %2916 = vmatpush.msra.mxu0 %v2894
      %2917 = vmatpush.msra.mxu0 %v2893
      %2918 = vmatpush.msra.mxu0 %v2892
      %2919 = vmatpush.msra.mxu0 %v2891
      %2920 = vmatpush.msra.mxu0 %v2890
      %2921 = vmatmul.f32.gmra.mxu0 %v2903
      %v2922 = vpop.f32.mrf.mxu0
      %v2923 = vadd.f32 %v2900, %v2922
      %2924 = vdwg.mxu0
      %2926 = vrot.lane.b32.xlu0 %v2923, 1
      %v2927 = vpop.permute.xlu0 %2926
      %vm2929 = vcmp.gt.f32.partialorder %v2923, %v2927
      %v2930 = vsel %vm2929, 1, 0
      %v2931 = vcvt.s32.f32 %v2930
      %2933 = vset.pattern.permute.xlu0 1
      %2934 = vperm.xlu0 %2933, %v2931
      %v2935 = vpop.permute.xlu0 %2934
      %v2937 = vmul.f32 %v2471, %v2935
      %v2938 = vld [vmem:[%s53] sm:$0xff]
      %v2939 = vld [vmem:[%s53 + $0x8] sm:$0xff]
      %v2940 = vld [vmem:[%s53 + $0x10] sm:$0xff]
      %v2941 = vld [vmem:[%s53 + $0x18] sm:$0xff]
      %v2942 = vld [vmem:[%s53 + $0x20] sm:$0xff]
      %v2943 = vld [vmem:[%s53 + $0x28] sm:$0xff]
      %v2944 = vld [vmem:[%s53 + $0x30] sm:$0xff]
      %v2945 = vld [vmem:[%s53 + $0x38] sm:$0xff]
      %v2947 = vsel %vm1633, %v2937, 0
      %2949 = vmatpush.msra.mxu0 0.0
      %2950 = vmatpush.msra.mxu0 0.0
      %2951 = vmatpush.msra.mxu0 0.0
      %2952 = vmatpush.msra.mxu0 0.0
      %2953 = vmatpush.msra.mxu0 0.0
      %2954 = vmatpush.msra.mxu0 0.0
      %2955 = vmatpush.msra.mxu0 0.0
      %2956 = vmatpush.msra.mxu0 0.0
      %2957 = vmatpush.msra.mxu0 %v2945
      %2958 = vmatpush.msra.mxu0 %v2944
      %2959 = vmatpush.msra.mxu0 %v2943
      %2960 = vmatpush.msra.mxu0 %v2942
      %2961 = vmatpush.msra.mxu0 %v2941
      %2962 = vmatpush.msra.mxu0 %v2940
      %2963 = vmatpush.msra.mxu0 %v2939
      %2964 = vmatpush.msra.mxu0 %v2938
      %2965 = vmatmul.f32.gmra.mxu0 %v2947
      %v2966 = vpop.f32.mrf.mxu0
      %v2967 = vadd.f32 0.0, %v2966
      %2968 = vdwg.mxu0
      %v2969 = vld [vmem:[%s55] sm:$0xff]
      %v2970 = vld [vmem:[%s55 + $0x8] sm:$0xff]
      %v2971 = vld [vmem:[%s55 + $0x10] sm:$0xff]
      %v2972 = vld [vmem:[%s55 + $0x18] sm:$0xff]
      %v2973 = vld [vmem:[%s55 + $0x20] sm:$0xff]
      %v2974 = vld [vmem:[%s55 + $0x28] sm:$0xff]
      %v2975 = vld [vmem:[%s55 + $0x30] sm:$0xff]
      %v2976 = vld [vmem:[%s55 + $0x38] sm:$0xff]
      %2977 = vmatpush.msra.mxu0 0.0
      %2978 = vmatpush.msra.mxu0 0.0
      %2979 = vmatpush.msra.mxu0 0.0
      %2980 = vmatpush.msra.mxu0 0.0
      %2981 = vmatpush.msra.mxu0 0.0
      %2982 = vmatpush.msra.mxu0 0.0
      %2983 = vmatpush.msra.mxu0 0.0
      %2984 = vmatpush.msra.mxu0 0.0
      %2985 = vmatpush.msra.mxu0 %v2976
      %2986 = vmatpush.msra.mxu0 %v2975
      %2987 = vmatpush.msra.mxu0 %v2974
      %2988 = vmatpush.msra.mxu0 %v2973
      %2989 = vmatpush.msra.mxu0 %v2972
      %2990 = vmatpush.msra.mxu0 %v2971
      %2991 = vmatpush.msra.mxu0 %v2970
      %2992 = vmatpush.msra.mxu0 %v2969
      %2993 = vmatmul.f32.gmra.mxu0 %v2947
      %v2994 = vpop.f32.mrf.mxu0
      %v2995 = vadd.f32 0.0, %v2994
      %2996 = vdwg.mxu0
      %v2997 = vld [vmem:[%s57] sm:$0xff]
      %v2998 = vld [vmem:[%s57 + $0x8] sm:$0xff]
      %v2999 = vld [vmem:[%s57 + $0x10] sm:$0xff]
      %v3000 = vld [vmem:[%s57 + $0x18] sm:$0xff]
      %v3001 = vld [vmem:[%s57 + $0x20] sm:$0xff]
      %v3002 = vld [vmem:[%s57 + $0x28] sm:$0xff]
      %v3003 = vld [vmem:[%s57 + $0x30] sm:$0xff]
      %v3004 = vld [vmem:[%s57 + $0x38] sm:$0xff]
      %3005 = vmatpush.msra.mxu0 0.0
      %3006 = vmatpush.msra.mxu0 0.0
      %3007 = vmatpush.msra.mxu0 0.0
      %3008 = vmatpush.msra.mxu0 0.0
      %3009 = vmatpush.msra.mxu0 0.0
      %3010 = vmatpush.msra.mxu0 0.0
      %3011 = vmatpush.msra.mxu0 0.0
      %3012 = vmatpush.msra.mxu0 0.0
      %3013 = vmatpush.msra.mxu0 %v3004
      %3014 = vmatpush.msra.mxu0 %v3003
      %3015 = vmatpush.msra.mxu0 %v3002
      %3016 = vmatpush.msra.mxu0 %v3001
      %3017 = vmatpush.msra.mxu0 %v3000
      %3018 = vmatpush.msra.mxu0 %v2999
      %3019 = vmatpush.msra.mxu0 %v2998
      %3020 = vmatpush.msra.mxu0 %v2997
      %3021 = vmatmul.f32.gmra.mxu0 %v2947
      %v3022 = vpop.f32.mrf.mxu0
      %v3023 = vadd.f32 0.0, %v3022
      %3024 = vdwg.mxu0
      %v3026 = vsel %vm1722, %v2967, 0
      %v3029 = vsel %vm1722, %v2995, 0
      %3031 = vmatpush.xpose.msra.mxu0 0.0
      %3032 = vmatpush.xpose.msra.mxu0 0.0
      %3033 = vmatpush.xpose.msra.mxu0 0.0
      %3034 = vmatpush.xpose.msra.mxu0 0.0
      %3035 = vmatpush.xpose.msra.mxu0 0.0
      %3036 = vmatpush.xpose.msra.mxu0 0.0
      %3037 = vmatpush.xpose.msra.mxu0 0.0
      %3038 = vmatpush.xpose.msra.mxu0 0.0
      %3039 = vmatpush.xpose.msra.mxu0 0.0
      %3040 = vmatpush.xpose.msra.mxu0 0.0
      %3041 = vmatpush.xpose.msra.mxu0 0.0
      %3042 = vmatpush.xpose.msra.mxu0 0.0
      %3043 = vmatpush.xpose.msra.mxu0 0.0
      %3044 = vmatpush.xpose.msra.mxu0 0.0
      %3045 = vmatpush.xpose.msra.mxu0 0.0
      %3046 = vmatpush.xpose.msra.mxu0 %v3029
      %3047 = vmatmul.f32.gmra.mxu0 %v3026
      %v3048 = vpop.f32.mrf.mxu0
      %v3049 = vadd.f32 0.0, %v3048
      %3050 = vdwg.mxu0
      %v3051 = vmul.f32 %v3049, 0.17677669
      %v3052 = vsel %vm1513, -1e+30, %v3051
      %vm3053 = vcmask 46080
      %v3054 = vsel %vm3053, %v3052, -inf
      %3055 = vmax.xlane.f32.xlu0 %v3054
      %v3056 = vpop.xlane.xlu0 %3055
      %v3057 = vsub.f32 %v3052, %v3056
      %v3058 = vmul.f32 %v3057, 1.442695
      %v3059 = vpow.pop %v3058
      %v3060 = vsel %vm1513, 0.0, %v3059
      %v3061 = vsel %vm3053, %v3060, 0.0
      %3062 = vadd.xlane.f32.xlu0 %v3061
      %v3063 = vpop.xlane.xlu0 %3062
      %vm3064 = vcmp.gt.f32.partialorder %v3063, 0.0
      %v3065 = vsel %vm3064, %v3063, 1.0
      %v3066 = vrcp.pop %v3065
      %v3067 = vmul.f32 %v3065, %v3066
      %v3068 = vsub.f32 1.0, %v3067
      %v3069 = vmul.f32 %v3066, %v3068
      %v3070 = vadd.f32 %v3066, %v3069
      %vm3071 = vweird.f32 %v3065
      %vm3072 = vweird.f32 %v3066
      %vm3073 = vmor %vm3071, %vm3072
      %v3074 = vsel %vm3073, %v3066, %v3070
      %v3075 = vand.u32 2147483647, %v3065
      %vm3076 = vcmp.eq.f32.partialorder %v3075, 8.507059e+37
      %v3077 = vand.u32 %v3065, 2147483648
      %v3078 = vor.u32 1.1754944e-38, %v3077
      %v3079 = vsel %vm3076, %v3078, %v3074
      %v3080 = vmul.f32 %v3060, %v3079
      %vm3081 = vcmask 48128
      %v3083 = vsel %vm3081, %v3080, 0
      %vm3085 = vcmask 1045504
      %v3087 = vsel %vm3085, %v3023, 0
      %3089 = vmatpush.msra.mxu0 0.0
      %3090 = vmatpush.msra.mxu0 0.0
      %3091 = vmatpush.msra.mxu0 0.0
      %3092 = vmatpush.msra.mxu0 0.0
      %3093 = vmatpush.msra.mxu0 0.0
      %3094 = vmatpush.msra.mxu0 0.0
      %3095 = vmatpush.msra.mxu0 0.0
      %3096 = vmatpush.msra.mxu0 0.0
      %3097 = vmatpush.msra.mxu0 0.0
      %3098 = vmatpush.msra.mxu0 0.0
      %3099 = vmatpush.msra.mxu0 0.0
      %3100 = vmatpush.msra.mxu0 0.0
      %3101 = vmatpush.msra.mxu0 0.0
      %3102 = vmatpush.msra.mxu0 0.0
      %3103 = vmatpush.msra.mxu0 0.0
      %3104 = vmatpush.msra.mxu0 %v3087
      %3105 = vmatmul.f32.gmra.mxu0 %v3083
      %v3106 = vpop.f32.mrf.mxu0
      %v3107 = vadd.f32 0.0, %v3106
      %3108 = vdwg.mxu0
      %v3109 = vld [vmem:[%s59] sm:$0xff]
      %v3110 = vld [vmem:[%s59 + $0x8] sm:$0xff]
      %v3111 = vld [vmem:[%s59 + $0x10] sm:$0xff]
      %v3112 = vld [vmem:[%s59 + $0x18] sm:$0xff]
      %s3113 = scalar_lea.vmem %s53, 64
      %v3114 = vld [vmem:[%s3113] sm:$0xff]
      %v3115 = vld [vmem:[%s3113 + $0x8] sm:$0xff]
      %v3116 = vld [vmem:[%s3113 + $0x10] sm:$0xff]
      %v3117 = vld [vmem:[%s3113 + $0x18] sm:$0xff]
      %v3118 = vld [vmem:[%s3113 + $0x20] sm:$0xff]
      %v3119 = vld [vmem:[%s3113 + $0x28] sm:$0xff]
      %v3120 = vld [vmem:[%s3113 + $0x30] sm:$0xff]
      %v3121 = vld [vmem:[%s3113 + $0x38] sm:$0xff]
      %3122 = vmatpush.msra.mxu0 0.0
      %3123 = vmatpush.msra.mxu0 0.0
      %3124 = vmatpush.msra.mxu0 0.0
      %3125 = vmatpush.msra.mxu0 0.0
      %3126 = vmatpush.msra.mxu0 0.0
      %3127 = vmatpush.msra.mxu0 0.0
      %3128 = vmatpush.msra.mxu0 0.0
      %3129 = vmatpush.msra.mxu0 0.0
      %3130 = vmatpush.msra.mxu0 %v3121
      %3131 = vmatpush.msra.mxu0 %v3120
      %3132 = vmatpush.msra.mxu0 %v3119
      %3133 = vmatpush.msra.mxu0 %v3118
      %3134 = vmatpush.msra.mxu0 %v3117
      %3135 = vmatpush.msra.mxu0 %v3116
      %3136 = vmatpush.msra.mxu0 %v3115
      %3137 = vmatpush.msra.mxu0 %v3114
      %3138 = vmatmul.f32.gmra.mxu0 %v2947
      %v3139 = vpop.f32.mrf.mxu0
      %v3140 = vadd.f32 0.0, %v3139
      %3141 = vdwg.mxu0
      %s3142 = scalar_lea.vmem %s55, 64
      %v3143 = vld [vmem:[%s3142] sm:$0xff]
      %v3144 = vld [vmem:[%s3142 + $0x8] sm:$0xff]
      %v3145 = vld [vmem:[%s3142 + $0x10] sm:$0xff]
      %v3146 = vld [vmem:[%s3142 + $0x18] sm:$0xff]
      %v3147 = vld [vmem:[%s3142 + $0x20] sm:$0xff]
      %v3148 = vld [vmem:[%s3142 + $0x28] sm:$0xff]
      %v3149 = vld [vmem:[%s3142 + $0x30] sm:$0xff]
      %v3150 = vld [vmem:[%s3142 + $0x38] sm:$0xff]
      %3151 = vmatpush.msra.mxu0 0.0
      %3152 = vmatpush.msra.mxu0 0.0
      %3153 = vmatpush.msra.mxu0 0.0
      %3154 = vmatpush.msra.mxu0 0.0
      %3155 = vmatpush.msra.mxu0 0.0
      %3156 = vmatpush.msra.mxu0 0.0
      %3157 = vmatpush.msra.mxu0 0.0
      %3158 = vmatpush.msra.mxu0 0.0
      %3159 = vmatpush.msra.mxu0 %v3150
      %3160 = vmatpush.msra.mxu0 %v3149
      %3161 = vmatpush.msra.mxu0 %v3148
      %3162 = vmatpush.msra.mxu0 %v3147
      %3163 = vmatpush.msra.mxu0 %v3146
      %3164 = vmatpush.msra.mxu0 %v3145
      %3165 = vmatpush.msra.mxu0 %v3144
      %3166 = vmatpush.msra.mxu0 %v3143
      %3167 = vmatmul.f32.gmra.mxu0 %v2947
      %v3168 = vpop.f32.mrf.mxu0
      %v3169 = vadd.f32 0.0, %v3168
      %3170 = vdwg.mxu0
      %s3171 = scalar_lea.vmem %s57, 64
      %v3172 = vld [vmem:[%s3171] sm:$0xff]
      %v3173 = vld [vmem:[%s3171 + $0x8] sm:$0xff]
      %v3174 = vld [vmem:[%s3171 + $0x10] sm:$0xff]
      %v3175 = vld [vmem:[%s3171 + $0x18] sm:$0xff]
      %v3176 = vld [vmem:[%s3171 + $0x20] sm:$0xff]
      %v3177 = vld [vmem:[%s3171 + $0x28] sm:$0xff]
      %v3178 = vld [vmem:[%s3171 + $0x30] sm:$0xff]
      %v3179 = vld [vmem:[%s3171 + $0x38] sm:$0xff]
      %3180 = vmatpush.msra.mxu0 0.0
      %3181 = vmatpush.msra.mxu0 0.0
      %3182 = vmatpush.msra.mxu0 0.0
      %3183 = vmatpush.msra.mxu0 0.0
      %3184 = vmatpush.msra.mxu0 0.0
      %3185 = vmatpush.msra.mxu0 0.0
      %3186 = vmatpush.msra.mxu0 0.0
      %3187 = vmatpush.msra.mxu0 0.0
      %3188 = vmatpush.msra.mxu0 %v3179
      %3189 = vmatpush.msra.mxu0 %v3178
      %3190 = vmatpush.msra.mxu0 %v3177
      %3191 = vmatpush.msra.mxu0 %v3176
      %3192 = vmatpush.msra.mxu0 %v3175
      %3193 = vmatpush.msra.mxu0 %v3174
      %3194 = vmatpush.msra.mxu0 %v3173
      %3195 = vmatpush.msra.mxu0 %v3172
      %3196 = vmatmul.f32.gmra.mxu0 %v2947
      %v3197 = vpop.f32.mrf.mxu0
      %v3198 = vadd.f32 0.0, %v3197
      %3199 = vdwg.mxu0
      %v3201 = vsel %vm1722, %v3140, 0
      %v3204 = vsel %vm1722, %v3169, 0
      %3206 = vmatpush.xpose.msra.mxu0 0.0
      %3207 = vmatpush.xpose.msra.mxu0 0.0
      %3208 = vmatpush.xpose.msra.mxu0 0.0
      %3209 = vmatpush.xpose.msra.mxu0 0.0
      %3210 = vmatpush.xpose.msra.mxu0 0.0
      %3211 = vmatpush.xpose.msra.mxu0 0.0
      %3212 = vmatpush.xpose.msra.mxu0 0.0
      %3213 = vmatpush.xpose.msra.mxu0 0.0
      %3214 = vmatpush.xpose.msra.mxu0 0.0
      %3215 = vmatpush.xpose.msra.mxu0 0.0
      %3216 = vmatpush.xpose.msra.mxu0 0.0
      %3217 = vmatpush.xpose.msra.mxu0 0.0
      %3218 = vmatpush.xpose.msra.mxu0 0.0
      %3219 = vmatpush.xpose.msra.mxu0 0.0
      %3220 = vmatpush.xpose.msra.mxu0 0.0
      %3221 = vmatpush.xpose.msra.mxu0 %v3204
      %3222 = vmatmul.f32.gmra.mxu0 %v3201
      %v3223 = vpop.f32.mrf.mxu0
      %v3224 = vadd.f32 0.0, %v3223
      %3225 = vdwg.mxu0
      %v3226 = vmul.f32 %v3224, 0.17677669
      %v3227 = vsel %vm1513, -1e+30, %v3226
      %v3228 = vsel %vm3053, %v3227, -inf
      %3229 = vmax.xlane.f32.xlu0 %v3228
      %v3230 = vpop.xlane.xlu0 %3229
      %v3231 = vsub.f32 %v3227, %v3230
      %v3232 = vmul.f32 %v3231, 1.442695
      %v3233 = vpow.pop %v3232
      %v3234 = vsel %vm1513, 0.0, %v3233
      %v3235 = vsel %vm3053, %v3234, 0.0
      %3236 = vadd.xlane.f32.xlu0 %v3235
      %v3237 = vpop.xlane.xlu0 %3236
      %vm3238 = vcmp.gt.f32.partialorder %v3237, 0.0
      %v3239 = vsel %vm3238, %v3237, 1.0
      %v3240 = vrcp.pop %v3239
      %v3241 = vmul.f32 %v3239, %v3240
      %v3242 = vsub.f32 1.0, %v3241
      %v3243 = vmul.f32 %v3240, %v3242
      %v3244 = vadd.f32 %v3240, %v3243
      %vm3245 = vweird.f32 %v3239
      %vm3246 = vweird.f32 %v3240
      %vm3247 = vmor %vm3245, %vm3246
      %v3248 = vsel %vm3247, %v3240, %v3244
      %v3249 = vand.u32 2147483647, %v3239
      %vm3250 = vcmp.eq.f32.partialorder %v3249, 8.507059e+37
      %v3251 = vand.u32 %v3239, 2147483648
      %v3252 = vor.u32 1.1754944e-38, %v3251
      %v3253 = vsel %vm3250, %v3252, %v3248
      %v3254 = vmul.f32 %v3234, %v3253
      %v3256 = vsel %vm3081, %v3254, 0
      %v3259 = vsel %vm3085, %v3198, 0
      %3261 = vmatpush.msra.mxu0 0.0
      %3262 = vmatpush.msra.mxu0 0.0
      %3263 = vmatpush.msra.mxu0 0.0
      %3264 = vmatpush.msra.mxu0 0.0
      %3265 = vmatpush.msra.mxu0 0.0
      %3266 = vmatpush.msra.mxu0 0.0
      %3267 = vmatpush.msra.mxu0 0.0
      %3268 = vmatpush.msra.mxu0 0.0
      %3269 = vmatpush.msra.mxu0 0.0
      %3270 = vmatpush.msra.mxu0 0.0
      %3271 = vmatpush.msra.mxu0 0.0
      %3272 = vmatpush.msra.mxu0 0.0
      %3273 = vmatpush.msra.mxu0 0.0
      %3274 = vmatpush.msra.mxu0 0.0
      %3275 = vmatpush.msra.mxu0 0.0
      %3276 = vmatpush.msra.mxu0 %v3259
      %3277 = vmatmul.f32.gmra.mxu0 %v3256
      %v3278 = vpop.f32.mrf.mxu0
      %v3279 = vadd.f32 0.0, %v3278
      %3280 = vdwg.mxu0
      %s3281 = scalar_lea.vmem %s59, 32
      %v3282 = vld [vmem:[%s3281] sm:$0xff]
      %v3283 = vld [vmem:[%s3281 + $0x8] sm:$0xff]
      %v3284 = vld [vmem:[%s3281 + $0x10] sm:$0xff]
      %v3285 = vld [vmem:[%s3281 + $0x18] sm:$0xff]
      %v3287 = vsel %vm1722, %v3279, 0
      %3289 = vmatpush.msra.mxu0 0.0
      %3290 = vmatpush.msra.mxu0 0.0
      %3291 = vmatpush.msra.mxu0 0.0
      %3292 = vmatpush.msra.mxu0 0.0
      %3293 = vmatpush.msra.mxu0 0.0
      %3294 = vmatpush.msra.mxu0 0.0
      %3295 = vmatpush.msra.mxu0 0.0
      %3296 = vmatpush.msra.mxu0 0.0
      %3297 = vmatpush.msra.mxu0 0.0
      %3298 = vmatpush.msra.mxu0 0.0
      %3299 = vmatpush.msra.mxu0 0.0
      %3300 = vmatpush.msra.mxu0 0.0
      %3301 = vmatpush.msra.mxu0 %v3285
      %3302 = vmatpush.msra.mxu0 %v3284
      %3303 = vmatpush.msra.mxu0 %v3283
      %3304 = vmatpush.msra.mxu0 %v3282
      %3305 = vmatmul.f32.gmra.mxu0 %v3287
      %v3306 = vpop.f32.mrf.mxu0
      %v3307 = vadd.f32 0.0, %v3306
      %3308 = vdwg.mxu0
      %v3310 = vsel %vm1722, %v3107, 0
      %3312 = vmatpush.msra.mxu0 0.0
      %3313 = vmatpush.msra.mxu0 0.0
      %3314 = vmatpush.msra.mxu0 0.0
      %3315 = vmatpush.msra.mxu0 0.0
      %3316 = vmatpush.msra.mxu0 0.0
      %3317 = vmatpush.msra.mxu0 0.0
      %3318 = vmatpush.msra.mxu0 0.0
      %3319 = vmatpush.msra.mxu0 0.0
      %3320 = vmatpush.msra.mxu0 0.0
      %3321 = vmatpush.msra.mxu0 0.0
      %3322 = vmatpush.msra.mxu0 0.0
      %3323 = vmatpush.msra.mxu0 0.0
      %3324 = vmatpush.msra.mxu0 %v3112
      %3325 = vmatpush.msra.mxu0 %v3111
      %3326 = vmatpush.msra.mxu0 %v3110
      %3327 = vmatpush.msra.mxu0 %v3109
      %3328 = vmatmul.f32.gmra.mxu0 %v3310
      %v3329 = vpop.f32.mrf.mxu0
      %v3330 = vadd.f32 %v3307, %v3329
      %3331 = vdwg.mxu0
      %v3332 = vld [vmem:[%s61] sm:$0x1]
      %v3334 = vperm.slane %v3332, 0
      %v3336 = vadd.f32 %v3330, %v3334
      %v3337 = vsel %vm2052, 0.0, %v3336
      %v3338 = vld [vmem:[%s67] sm:$0xff]
      %v3339 = vld [vmem:[%s67 + $0x8] sm:$0xff]
      %v3340 = vld [vmem:[%s67 + $0x10] sm:$0xff]
      %v3341 = vld [vmem:[%s67 + $0x18] sm:$0xff]
      %v3342 = vld [vmem:[%s67 + $0x20] sm:$0xff]
      %v3343 = vld [vmem:[%s67 + $0x28] sm:$0xff]
      %v3344 = vld [vmem:[%s67 + $0x30] sm:$0xff]
      %v3345 = vld [vmem:[%s67 + $0x38] sm:$0xff]
      %v3346 = vld [vmem:[%s69] sm:$0xff]
      %v3347 = vld [vmem:[%s69 + $0x8] sm:$0xff]
      %v3348 = vld [vmem:[%s69 + $0x10] sm:$0xff]
      %v3349 = vld [vmem:[%s69 + $0x18] sm:$0xff]
      %v3350 = vld [vmem:[%s69 + $0x20] sm:$0xff]
      %v3351 = vld [vmem:[%s69 + $0x28] sm:$0xff]
      %v3352 = vld [vmem:[%s69 + $0x30] sm:$0xff]
      %v3353 = vld [vmem:[%s69 + $0x38] sm:$0xff]
      %v3355 = vsel %vm1633, %v3337, 0
      %3357 = vmatpush.msra.mxu0 0.0
      %3358 = vmatpush.msra.mxu0 0.0
      %3359 = vmatpush.msra.mxu0 0.0
      %3360 = vmatpush.msra.mxu0 0.0
      %3361 = vmatpush.msra.mxu0 0.0
      %3362 = vmatpush.msra.mxu0 0.0
      %3363 = vmatpush.msra.mxu0 0.0
      %3364 = vmatpush.msra.mxu0 0.0
      %3365 = vmatpush.msra.mxu0 %v3353
      %3366 = vmatpush.msra.mxu0 %v3352
      %3367 = vmatpush.msra.mxu0 %v3351
      %3368 = vmatpush.msra.mxu0 %v3350
      %3369 = vmatpush.msra.mxu0 %v3349
      %3370 = vmatpush.msra.mxu0 %v3348
      %3371 = vmatpush.msra.mxu0 %v3347
      %3372 = vmatpush.msra.mxu0 %v3346
      %3373 = vmatmul.f32.gmra.mxu0 %v3355
      %v3374 = vpop.f32.mrf.mxu0
      %v3375 = vadd.f32 0.0, %v3374
      %3376 = vdwg.mxu0
      %v3378 = vsel %vm1633, %v2053, 0
      %3380 = vmatpush.msra.mxu0 0.0
      %3381 = vmatpush.msra.mxu0 0.0
      %3382 = vmatpush.msra.mxu0 0.0
      %3383 = vmatpush.msra.mxu0 0.0
      %3384 = vmatpush.msra.mxu0 0.0
      %3385 = vmatpush.msra.mxu0 0.0
      %3386 = vmatpush.msra.mxu0 0.0
      %3387 = vmatpush.msra.mxu0 0.0
      %3388 = vmatpush.msra.mxu0 %v3345
      %3389 = vmatpush.msra.mxu0 %v3344
      %3390 = vmatpush.msra.mxu0 %v3343
      %3391 = vmatpush.msra.mxu0 %v3342
      %3392 = vmatpush.msra.mxu0 %v3341
      %3393 = vmatpush.msra.mxu0 %v3340
      %3394 = vmatpush.msra.mxu0 %v3339
      %3395 = vmatpush.msra.mxu0 %v3338
      %3396 = vmatmul.f32.gmra.mxu0 %v3378
      %v3397 = vpop.f32.mrf.mxu0
      %v3398 = vadd.f32 %v3375, %v3397
      %3399 = vdwg.mxu0
      %v3400 = vld [vmem:[%s71] sm:$0x1]
      %v3402 = vperm.slane %v3400, 0
      %v3404 = vadd.f32 %v3398, %v3402
      %v3405 = vmax.f32 %v3404, 0.0
      %p3406 = scmp.eq.s32.totalorder %s106, 0
      // Predicated region
      $region189: #{_lambda_.1} parent=187 // pred_check
        %p3407 = pneg %p3406
      $region190: #{_lambda_.1} parent=187 // pred_check_branch
        %3409 = sbr.rel (%p3407) target = $region192
      $region191: #{_lambda_.1} parent=187 // pred_region
        %v3410 = vld [vmem:[%s1483] sm:$0x3f]
        %vm3411 = vcmask 521216
        %3412 = vst.msk [vmem:[#allocation2] sm:$0x3f] %vm3411, %v3410
      $region192: #{_lambda_.1} parent=187 // pred_fallthru
        _
      %v3413 = vld [vmem:[#allocation2] sm:$0x3f]
      %v3414 = vld [vmem:[%s73] sm:$0xff]
      %v3415 = vld [vmem:[%s73 + $0x8] sm:$0xff]
      %v3416 = vld [vmem:[%s73 + $0x10] sm:$0xff]
      %v3417 = vld [vmem:[%s73 + $0x18] sm:$0xff]
      %v3418 = vld [vmem:[%s73 + $0x20] sm:$0xff]
      %v3419 = vld [vmem:[%s73 + $0x28] sm:$0xff]
      %v3420 = vld [vmem:[%s73 + $0x30] sm:$0xff]
      %v3421 = vld [vmem:[%s73 + $0x38] sm:$0xff]
      %v3422 = vld [vmem:[%s75] sm:$0x1]
      %v3424 = vperm.slane %v3422, 0
      %v3427 = vsel %vm1633, %v3405, 0
      %3429 = vmatpush.msra.mxu0 0.0
      %3430 = vmatpush.msra.mxu0 0.0
      %3431 = vmatpush.msra.mxu0 0.0
      %3432 = vmatpush.msra.mxu0 0.0
      %3433 = vmatpush.msra.mxu0 0.0
      %3434 = vmatpush.msra.mxu0 0.0
      %3435 = vmatpush.msra.mxu0 0.0
      %3436 = vmatpush.msra.mxu0 0.0
      %3437 = vmatpush.msra.mxu0 %v3421
      %3438 = vmatpush.msra.mxu0 %v3420
      %3439 = vmatpush.msra.mxu0 %v3419
      %3440 = vmatpush.msra.mxu0 %v3418
      %3441 = vmatpush.msra.mxu0 %v3417
      %3442 = vmatpush.msra.mxu0 %v3416
      %3443 = vmatpush.msra.mxu0 %v3415
      %3444 = vmatpush.msra.mxu0 %v3414
      %3445 = vmatmul.f32.gmra.mxu0 %v3427
      %v3446 = vpop.f32.mrf.mxu0
      %v3447 = vadd.f32 %v3424, %v3446
      %3448 = vdwg.mxu0
      %v3449 = vld [vmem:[%s77] sm:$0xff]
      %v3450 = vld [vmem:[%s77 + $0x8] sm:$0xff]
      %v3451 = vld [vmem:[%s77 + $0x10] sm:$0xff]
      %v3452 = vld [vmem:[%s77 + $0x18] sm:$0xff]
      %v3453 = vld [vmem:[%s77 + $0x20] sm:$0xff]
      %v3454 = vld [vmem:[%s77 + $0x28] sm:$0xff]
      %v3455 = vld [vmem:[%s77 + $0x30] sm:$0xff]
      %v3456 = vld [vmem:[%s77 + $0x38] sm:$0xff]
      %v3458 = vsel %vm1633, %v3413, 0
      %3460 = vmatpush.msra.mxu0 0.0
      %3461 = vmatpush.msra.mxu0 0.0
      %3462 = vmatpush.msra.mxu0 0.0
      %3463 = vmatpush.msra.mxu0 0.0
      %3464 = vmatpush.msra.mxu0 0.0
      %3465 = vmatpush.msra.mxu0 0.0
      %3466 = vmatpush.msra.mxu0 0.0
      %3467 = vmatpush.msra.mxu0 0.0
      %3468 = vmatpush.msra.mxu0 %v3456
      %3469 = vmatpush.msra.mxu0 %v3455
      %3470 = vmatpush.msra.mxu0 %v3454
      %3471 = vmatpush.msra.mxu0 %v3453
      %3472 = vmatpush.msra.mxu0 %v3452
      %3473 = vmatpush.msra.mxu0 %v3451
      %3474 = vmatpush.msra.mxu0 %v3450
      %3475 = vmatpush.msra.mxu0 %v3449
      %3476 = vmatmul.f32.gmra.mxu0 %v3458
      %v3477 = vpop.f32.mrf.mxu0
      %v3478 = vadd.f32 0.0, %v3477
      %3479 = vdwg.mxu0
      %v3480 = vadd.f32 %v3447, %v3478
      %v3481 = vld [vmem:[%s79] sm:$0x1]
      %v3483 = vperm.slane %v3481, 0
      %v3485 = vadd.f32 %v3480, %v3483
      %v3486 = vxor.u32 %v3485, 2147483648
      %v3487 = vmul.f32 %v3486, 1.442695
      %v3488 = vpow.pop %v3487
      %v3489 = vadd.f32 %v3488, 1.0
      %v3490 = vrcp.pop %v3489
      %v3491 = vmul.f32 %v3489, %v3490
      %v3492 = vsub.f32 1.0, %v3491
      %v3493 = vmul.f32 %v3490, %v3492
      %v3494 = vadd.f32 %v3490, %v3493
      %vm3495 = vweird.f32 %v3489
      %vm3496 = vweird.f32 %v3490
      %vm3497 = vmor %vm3495, %vm3496
      %v3498 = vsel %vm3497, %v3490, %v3494
      %v3499 = vand.u32 2147483647, %v3489
      %vm3500 = vcmp.eq.f32.partialorder %v3499, 8.507059e+37
      %v3501 = vand.u32 %v3489, 2147483648
      %v3502 = vor.u32 1.1754944e-38, %v3501
      %v3503 = vsel %vm3500, %v3502, %v3498
      %v3504 = vmul.f32 1.0, %v3503
      %s3505 = scalar_lea.vmem %s73, 64
      %v3506 = vld [vmem:[%s3505] sm:$0xff]
      %v3507 = vld [vmem:[%s3505 + $0x8] sm:$0xff]
      %v3508 = vld [vmem:[%s3505 + $0x10] sm:$0xff]
      %v3509 = vld [vmem:[%s3505 + $0x18] sm:$0xff]
      %v3510 = vld [vmem:[%s3505 + $0x20] sm:$0xff]
      %v3511 = vld [vmem:[%s3505 + $0x28] sm:$0xff]
      %v3512 = vld [vmem:[%s3505 + $0x30] sm:$0xff]
      %v3513 = vld [vmem:[%s3505 + $0x38] sm:$0xff]
      %s3514 = scalar_lea.vmem %s75, 1
      %v3515 = vld [vmem:[%s3514] sm:$0x1]
      %v3517 = vperm.slane %v3515, 0
      %3519 = vmatpush.msra.mxu0 0.0
      %3520 = vmatpush.msra.mxu0 0.0
      %3521 = vmatpush.msra.mxu0 0.0
      %3522 = vmatpush.msra.mxu0 0.0
      %3523 = vmatpush.msra.mxu0 0.0
      %3524 = vmatpush.msra.mxu0 0.0
      %3525 = vmatpush.msra.mxu0 0.0
      %3526 = vmatpush.msra.mxu0 0.0
      %3527 = vmatpush.msra.mxu0 %v3513
      %3528 = vmatpush.msra.mxu0 %v3512
      %3529 = vmatpush.msra.mxu0 %v3511
      %3530 = vmatpush.msra.mxu0 %v3510
      %3531 = vmatpush.msra.mxu0 %v3509
      %3532 = vmatpush.msra.mxu0 %v3508
      %3533 = vmatpush.msra.mxu0 %v3507
      %3534 = vmatpush.msra.mxu0 %v3506
      %3535 = vmatmul.f32.gmra.mxu0 %v3427
      %v3536 = vpop.f32.mrf.mxu0
      %v3537 = vadd.f32 %v3517, %v3536
      %3538 = vdwg.mxu0
      %s3539 = scalar_lea.vmem %s77, 64
      %v3540 = vld [vmem:[%s3539] sm:$0xff]
      %v3541 = vld [vmem:[%s3539 + $0x8] sm:$0xff]
      %v3542 = vld [vmem:[%s3539 + $0x10] sm:$0xff]
      %v3543 = vld [vmem:[%s3539 + $0x18] sm:$0xff]
      %v3544 = vld [vmem:[%s3539 + $0x20] sm:$0xff]
      %v3545 = vld [vmem:[%s3539 + $0x28] sm:$0xff]
      %v3546 = vld [vmem:[%s3539 + $0x30] sm:$0xff]
      %v3547 = vld [vmem:[%s3539 + $0x38] sm:$0xff]
      %3548 = vmatpush.msra.mxu0 0.0
      %3549 = vmatpush.msra.mxu0 0.0
      %3550 = vmatpush.msra.mxu0 0.0
      %3551 = vmatpush.msra.mxu0 0.0
      %3552 = vmatpush.msra.mxu0 0.0
      %3553 = vmatpush.msra.mxu0 0.0
      %3554 = vmatpush.msra.mxu0 0.0
      %3555 = vmatpush.msra.mxu0 0.0
      %3556 = vmatpush.msra.mxu0 %v3547
      %3557 = vmatpush.msra.mxu0 %v3546
      %3558 = vmatpush.msra.mxu0 %v3545
      %3559 = vmatpush.msra.mxu0 %v3544
      %3560 = vmatpush.msra.mxu0 %v3543
      %3561 = vmatpush.msra.mxu0 %v3542
      %3562 = vmatpush.msra.mxu0 %v3541
      %3563 = vmatpush.msra.mxu0 %v3540
      %3564 = vmatmul.f32.gmra.mxu0 %v3458
      %v3565 = vpop.f32.mrf.mxu0
      %v3566 = vadd.f32 0.0, %v3565
      %3567 = vdwg.mxu0
      %v3568 = vadd.f32 %v3537, %v3566
      %s3569 = scalar_lea.vmem %s79, 1
      %v3570 = vld [vmem:[%s3569] sm:$0x1]
      %v3572 = vperm.slane %v3570, 0
      %v3574 = vadd.f32 %v3568, %v3572
      %v3575 = vxor.u32 %v3574, 2147483648
      %v3576 = vmul.f32 %v3575, 1.442695
      %v3577 = vpow.pop %v3576
      %v3578 = vadd.f32 %v3577, 1.0
      %v3579 = vrcp.pop %v3578
      %v3580 = vmul.f32 %v3578, %v3579
      %v3581 = vsub.f32 1.0, %v3580
      %v3582 = vmul.f32 %v3579, %v3581
      %v3583 = vadd.f32 %v3579, %v3582
      %vm3584 = vweird.f32 %v3578
      %vm3585 = vweird.f32 %v3579
      %vm3586 = vmor %vm3584, %vm3585
      %v3587 = vsel %vm3586, %v3579, %v3583
      %v3588 = vand.u32 2147483647, %v3578
      %vm3589 = vcmp.eq.f32.partialorder %v3588, 8.507059e+37
      %v3590 = vand.u32 %v3578, 2147483648
      %v3591 = vor.u32 1.1754944e-38, %v3590
      %v3592 = vsel %vm3589, %v3591, %v3587
      %v3593 = vmul.f32 1.0, %v3592
      %s3594 = scalar_lea.vmem %s73, 128
      %v3595 = vld [vmem:[%s3594] sm:$0xff]
      %v3596 = vld [vmem:[%s3594 + $0x8] sm:$0xff]
      %v3597 = vld [vmem:[%s3594 + $0x10] sm:$0xff]
      %v3598 = vld [vmem:[%s3594 + $0x18] sm:$0xff]
      %v3599 = vld [vmem:[%s3594 + $0x20] sm:$0xff]
      %v3600 = vld [vmem:[%s3594 + $0x28] sm:$0xff]
      %v3601 = vld [vmem:[%s3594 + $0x30] sm:$0xff]
      %v3602 = vld [vmem:[%s3594 + $0x38] sm:$0xff]
      %s3603 = scalar_lea.vmem %s75, 2
      %v3604 = vld [vmem:[%s3603] sm:$0x1]
      %v3606 = vperm.slane %v3604, 0
      %3608 = vmatpush.msra.mxu0 0.0
      %3609 = vmatpush.msra.mxu0 0.0
      %3610 = vmatpush.msra.mxu0 0.0
      %3611 = vmatpush.msra.mxu0 0.0
      %3612 = vmatpush.msra.mxu0 0.0
      %3613 = vmatpush.msra.mxu0 0.0
      %3614 = vmatpush.msra.mxu0 0.0
      %3615 = vmatpush.msra.mxu0 0.0
      %3616 = vmatpush.msra.mxu0 %v3602
      %3617 = vmatpush.msra.mxu0 %v3601
      %3618 = vmatpush.msra.mxu0 %v3600
      %3619 = vmatpush.msra.mxu0 %v3599
      %3620 = vmatpush.msra.mxu0 %v3598
      %3621 = vmatpush.msra.mxu0 %v3597
      %3622 = vmatpush.msra.mxu0 %v3596
      %3623 = vmatpush.msra.mxu0 %v3595
      %3624 = vmatmul.f32.gmra.mxu0 %v3427
      %v3625 = vpop.f32.mrf.mxu0
      %v3626 = vadd.f32 %v3606, %v3625
      %3627 = vdwg.mxu0
      %s3628 = scalar_lea.vmem %s77, 128
      %v3629 = vld [vmem:[%s3628] sm:$0xff]
      %v3630 = vld [vmem:[%s3628 + $0x8] sm:$0xff]
      %v3631 = vld [vmem:[%s3628 + $0x10] sm:$0xff]
      %v3632 = vld [vmem:[%s3628 + $0x18] sm:$0xff]
      %v3633 = vld [vmem:[%s3628 + $0x20] sm:$0xff]
      %v3634 = vld [vmem:[%s3628 + $0x28] sm:$0xff]
      %v3635 = vld [vmem:[%s3628 + $0x30] sm:$0xff]
      %v3636 = vld [vmem:[%s3628 + $0x38] sm:$0xff]
      %s3637 = scalar_lea.vmem %s79, 2
      %v3638 = vld [vmem:[%s3637] sm:$0x1]
      %v3640 = vperm.slane %v3638, 0
      %3642 = vmatpush.msra.mxu0 0.0
      %3643 = vmatpush.msra.mxu0 0.0
      %3644 = vmatpush.msra.mxu0 0.0
      %3645 = vmatpush.msra.mxu0 0.0
      %3646 = vmatpush.msra.mxu0 0.0
      %3647 = vmatpush.msra.mxu0 0.0
      %3648 = vmatpush.msra.mxu0 0.0
      %3649 = vmatpush.msra.mxu0 0.0
      %3650 = vmatpush.msra.mxu0 %v3636
      %3651 = vmatpush.msra.mxu0 %v3635
      %3652 = vmatpush.msra.mxu0 %v3634
      %3653 = vmatpush.msra.mxu0 %v3633
      %3654 = vmatpush.msra.mxu0 %v3632
      %3655 = vmatpush.msra.mxu0 %v3631
      %3656 = vmatpush.msra.mxu0 %v3630
      %3657 = vmatpush.msra.mxu0 %v3629
      %3658 = vmatmul.f32.gmra.mxu0 %v3458
      %v3659 = vpop.f32.mrf.mxu0
      %v3660 = vadd.f32 %v3640, %v3659
      %3661 = vdwg.mxu0
      %v3662 = vmul.f32 %v3504, %v3660
      %v3663 = vadd.f32 %v3626, %v3662
      %v3664 = vtanh.pop %v3663
      %v3665 = vsub.f32 1.0, %v3593
      %v3666 = vmul.f32 %v3665, %v3664
      %v3667 = vmul.f32 %v3593, %v3413
      %v3668 = vadd.f32 %v3666, %v3667
      %vm3669 = vcmask 521216
      %3670 = vst.msk [vmem:[#allocation2] sm:$0x3f] %vm3669, %v3668
      %v3671 = vld [vmem:[%s81] sm:$0xff]
      %v3672 = vld [vmem:[%s81 + $0x8] sm:$0xff]
      %v3673 = vld [vmem:[%s81 + $0x10] sm:$0xff]
      %v3674 = vld [vmem:[%s81 + $0x18] sm:$0xff]
      %v3675 = vld [vmem:[%s81 + $0x20] sm:$0xff]
      %v3676 = vld [vmem:[%s81 + $0x28] sm:$0xff]
      %v3677 = vld [vmem:[%s81 + $0x30] sm:$0xff]
      %v3678 = vld [vmem:[%s81 + $0x38] sm:$0xff]
      %v3679 = vld [vmem:[%s83] sm:$0x1]
      %v3681 = vperm.slane %v3679, 0
      %v3684 = vsel %vm1633, %v3668, 0
      %3686 = vmatpush.msra.mxu0 0.0
      %3687 = vmatpush.msra.mxu0 0.0
      %3688 = vmatpush.msra.mxu0 0.0
      %3689 = vmatpush.msra.mxu0 0.0
      %3690 = vmatpush.msra.mxu0 0.0
      %3691 = vmatpush.msra.mxu0 0.0
      %3692 = vmatpush.msra.mxu0 0.0
      %3693 = vmatpush.msra.mxu0 0.0
      %3694 = vmatpush.msra.mxu0 %v3678
      %3695 = vmatpush.msra.mxu0 %v3677
      %3696 = vmatpush.msra.mxu0 %v3676
      %3697 = vmatpush.msra.mxu0 %v3675
      %3698 = vmatpush.msra.mxu0 %v3674
      %3699 = vmatpush.msra.mxu0 %v3673
      %3700 = vmatpush.msra.mxu0 %v3672
      %3701 = vmatpush.msra.mxu0 %v3671
      %3702 = vmatmul.f32.gmra.mxu0 %v3684
      %v3703 = vpop.f32.mrf.mxu0
      %v3704 = vadd.f32 %v3681, %v3703
      %3705 = vdwg.mxu0
      %v3706 = vsel %vm2052, 0.0, %v3704
      %3707 = vst.msk [vmem:[%s1491] sm:$0x3f] %vm3669, %v3668
      %3708 = vst [vmem:[%s1499] sm:$0x3f] %v3706
      %3709 = vst [vmem:[%s1507] sm:$0x3f] %v2923
      %p3710 = scmp.lt.s32.totalorder %s105, 0
      %s3711 = scalar_select %p3710, %s105, 0
      %p3712 = scmp.lt.s32.totalorder %s106, 2
      %s3713 = scalar_select %p3712, %s106, 2
      %s3714 = smul.addr %s3711, 3
      %s3715 = sadd.s32 %s3713, %s3714
      %s3716 = smul.addr %s3715, 8
      %s3717 = scalar_lea.vmem %s85, %s3716
      %p3718 = scmp.lt.s32.totalorder %s105, 0
      %s3719 = scalar_select %p3718, %s105, 0
      %p3720 = scmp.lt.s32.totalorder %s106, 2
      %s3721 = scalar_select %p3720, %s106, 2
      %s3722 = smul.addr %s3719, 3
      %s3723 = sadd.s32 %s3721, %s3722
      %s3724 = smul.addr %s3723, 8
      %s3725 = scalar_lea.vmem %s87, %s3724
      %p3726 = scmp.lt.s32.totalorder %s105, 0
      %s3727 = scalar_select %p3726, %s105, 0
      %p3728 = scmp.lt.s32.totalorder %s106, 2
      %s3729 = scalar_select %p3728, %s106, 2
      %s3730 = smul.addr %s3727, 3
      %s3731 = sadd.s32 %s3729, %s3730
      %s3732 = smul.addr %s3731, 8
      %s3733 = scalar_lea.vmem %s89, %s3732
      // Predicated region
      $region193: #{_lambda_.1} parent=187 // pred_check
        %p3734 = pneg %p1048
      $region194: #{_lambda_.1} parent=187 // pred_check_branch
        %3736 = sbr.rel (%p3734) target = $region196
      $region195: #{_lambda_.1} parent=187 // pred_region
        _
      $region196: #{_lambda_.1} parent=187 // pred_fallthru
        _
      // Predicated region
      $region197: #{_lambda_.1} parent=187 // pred_check
        %p3737 = pneg %p1076
      $region198: #{_lambda_.1} parent=187 // pred_check_branch
        %3739 = sbr.rel (%p3737) target = $region200
      $region199: #{_lambda_.1} parent=187 // pred_region
        _
      $region200: #{_lambda_.1} parent=187 // pred_fallthru
        _
      // Predicated region
      $region201: #{_lambda_.1} parent=187 // pred_check
        %p3740 = pneg %p1104
      $region202: #{_lambda_.1} parent=187 // pred_check_branch
        %3742 = sbr.rel (%p3740) target = $region204
      $region203: #{_lambda_.1} parent=187 // pred_region
        _
      $region204: #{_lambda_.1} parent=187 // pred_fallthru
        _
    $region188: #{_lambda_.1} parent=5 // pred_fallthru
      _
    %p3743 = scmp.le.s32.totalorder 2, %s96
    // Predicated region
    $region205: #{_lambda_.1} parent=5 // pred_check
      %p3744 = pneg %p3743
    $region206: #{_lambda_.1} parent=5 // pred_check_branch
      %3746 = sbr.rel (%p3744) target = $region208
    $region207: #{_lambda_.1} parent=5 // pred_region
      %s3747 = ssub.s32 %s96, 2
      // Predicated region
      $region209: #{_lambda_.1} parent=207 // pred_check
        %p3748 = pneg %p1054
      $region210: #{_lambda_.1} parent=207 // pred_check_branch
        %3750 = sbr.rel (%p3748) target = $region212
      $region211: #{_lambda_.1} parent=207 // pred_region
        %p3751 = scmp.lt.s32.totalorder %s107, 0
        %s3752 = scalar_select %p3751, %s107, 0
        %p3753 = scmp.lt.s32.totalorder %s108, 2
        %s3754 = scalar_select %p3753, %s108, 2
        %s3755 = smul.addr %s3752, 3
        %s3756 = sadd.s32 %s3754, %s3755
        %s3757 = smul.addr %s3756, 8
        %s3758 = scalar_lea.vmem %s85, %s3757
      $region212: #{_lambda_.1} parent=207 // pred_fallthru
        _
      // Predicated region
      $region213: #{_lambda_.1} parent=207 // pred_check
        %p3759 = pneg %p1082
      $region214: #{_lambda_.1} parent=207 // pred_check_branch
        %3761 = sbr.rel (%p3759) target = $region216
      $region215: #{_lambda_.1} parent=207 // pred_region
        %p3762 = scmp.lt.s32.totalorder %s107, 0
        %s3763 = scalar_select %p3762, %s107, 0
        %p3764 = scmp.lt.s32.totalorder %s108, 2
        %s3765 = scalar_select %p3764, %s108, 2
        %s3766 = smul.addr %s3763, 3
        %s3767 = sadd.s32 %s3765, %s3766
        %s3768 = smul.addr %s3767, 8
        %s3769 = scalar_lea.vmem %s87, %s3768
      $region216: #{_lambda_.1} parent=207 // pred_fallthru
        _
      // Predicated region
      $region217: #{_lambda_.1} parent=207 // pred_check
        %p3770 = pneg %p1110
      $region218: #{_lambda_.1} parent=207 // pred_check_branch
        %3772 = sbr.rel (%p3770) target = $region220
      $region219: #{_lambda_.1} parent=207 // pred_region
        %p3773 = scmp.lt.s32.totalorder %s107, 0
        %s3774 = scalar_select %p3773, %s107, 0
        %p3775 = scmp.lt.s32.totalorder %s108, 2
        %s3776 = scalar_select %p3775, %s108, 2
        %s3777 = smul.addr %s3774, 3
        %s3778 = sadd.s32 %s3776, %s3777
        %s3779 = smul.addr %s3778, 8
        %s3780 = scalar_lea.vmem %s89, %s3779
      $region220: #{_lambda_.1} parent=207 // pred_fallthru
        _
    $region208: #{_lambda_.1} parent=5 // pred_fallthru
      _
  $region6: #{_lambda_.1} parent=0 // loop_footer
    %s100 = sadd.s32 1, %s96
  $region7: #{_lambda_.1} parent=0 // loop_footer_branch
    %95 = sbr.rel target = $region3
  $region8: #{_lambda_.1} parent=0 // loop_exit
    _

</llo_original>
